<compile_context>
chip_gen: v7x
topology: tpu7x:2x2x1
jax: 0.10.0
libtpu: 0.0.40
codegen_flags: <defaults>
</compile_context>

<pallas_src>
from functools import partial

import jax
import jax.numpy as jnp
from jax.experimental import pallas as pl
from jax.experimental.pallas import tpu as pltpu


def _round_up(v, m):
    return ((v + m - 1) // m) * m


def _device_kind():
    try:
        return (jax.devices()[0].device_kind or "").lower()
    except Exception:
        return ""


def _rgcn_config(n_nodes):
    """Chip-adaptive tile / VMEM choices (v5e / v6e / v7x)."""
    kind = _device_kind()
    big_mxu = ("v6" in kind) or ("v7" in kind)
    tile_n = 128
    if big_mxu and n_nodes % 256 == 0 and (n_nodes // 256) >= 2:
        tile_n = 256                      # fill 256x256 MXU, keep >=2 row tiles for 2 TCs
    if "v7" in kind:
        vmem = 48 * 1024 * 1024           # v7x: 64 MiB physical VMEM
    elif ("v5" in kind) or ("v6" in kind):
        vmem = 96 * 1024 * 1024           # 128 MiB parts: use the headroom
    else:
        vmem = 48 * 1024 * 1024           # unknown / interpret: conservative
    return tile_n, vmem


# ---------------------------------------------------------------------------
# Kernel 1: MLPFeatureTransformer — row-tiled per-node-type linear projection
#   writes directly into the concatenated (N_total_padded, hidden) buffer.
#   Scalar-prefetched per-row-tile type id selects the weight / bias block.
# ---------------------------------------------------------------------------
def feature_transform_kernel(tid_ref, x_ref, w_ref, b_ref, o_ref):
    del tid_ref  # only used by the index maps
    o_ref[...] = (
        jnp.dot(x_ref[...], w_ref[...], preferred_element_type=jnp.float32)
        + b_ref[...]
    ).astype(o_ref.dtype)


def feature_transform(x, ft_params, order, *, tile_r=128):
    names = list(order)
    hidden = ft_params[names[0]]["w"].shape[1]
    d_max = _round_up(max(x[n].shape[1] for n in names), 128)

    x_rows, type_ids, ws, bs = [], [], [], []
    for t, n in enumerate(names):
        xi = x[n]
        rows = _round_up(xi.shape[0], tile_r)
        x_rows.append(jnp.pad(xi, ((0, rows - xi.shape[0]), (0, d_max - xi.shape[1]))))
        type_ids.extend([t] * (rows // tile_r))
        wi = ft_params[n]["w"]
        ws.append(jnp.pad(wi, ((0, d_max - wi.shape[0]), (0, 0))))
        bs.append(ft_params[n]["b"].reshape(1, hidden))

    x_cat = jnp.concatenate(x_rows, axis=0).astype(jnp.bfloat16)   # (N_pad, d_max)
    w_stack = jnp.stack(ws).astype(jnp.bfloat16)                    # (T, d_max, hidden)
    b_stack = jnp.stack(bs)                                         # (T, 1, hidden) f32
    tids = jnp.asarray(type_ids, jnp.int32)                         # (num_tiles,)
    n_pad = x_cat.shape[0]
    num_tiles = n_pad // tile_r

    return pl.pallas_call(
        feature_transform_kernel,
        out_shape=jax.ShapeDtypeStruct((n_pad, hidden), jnp.bfloat16),
        grid_spec=pltpu.PrefetchScalarGridSpec(
            num_scalar_prefetch=1,
            grid=(num_tiles,),
            in_specs=[
                pl.BlockSpec((tile_r, d_max), lambda t, tid: (t, 0)),
                pl.BlockSpec((None, d_max, hidden), lambda t, tid: (tid[t], 0, 0)),
                pl.BlockSpec((None, 1, hidden), lambda t, tid: (tid[t], 0, 0)),
            ],
            out_specs=pl.BlockSpec((tile_r, hidden), lambda t, tid: (t, 0)),
        ),
        compiler_params=pltpu.CompilerParams(
            dimension_semantics=("parallel",),
        ),
    )(tids, x_cat, w_stack, b_stack)


# ---------------------------------------------------------------------------
# Kernel 2: one R-GCN layer (weight-side basis reassociation, bipartite-compact
# adjacency, K-tiled aggregation)
#   grid = (row tiles ["parallel"], relations ["arbitrary"], k tiles ["arbitrary"])
#   out[tile] = H_self[tile] @ W_self + bias + sum_r (A_r[tile, :] @ H) @ W_r
#   A_r is stored column-compacted (only the nonzero source-type columns); the
#   matching H row-block offset per relation is scalar-prefetched.
# ---------------------------------------------------------------------------
def rgcn_layer_kernel(
    col_blk_ref,   # SMEM (R,) int32  per-relation H column-block offset (prefetch)
    adj_ref,       # VMEM (tile_n, tile_k) bf16  compacted adjacency block
    h_ref,         # VMEM (tile_k, hid)    bf16  source hidden rows for (r, k)
    hself_ref,     # VMEM (tile_n, hid)    bf16  destination (self) hidden rows
    wrel_ref,      # VMEM (hid, hid)       bf16  W_r = sum_b coef[r,b] * V_b
    wself_ref,     # VMEM (hid, hid)       bf16
    bias_ref,      # VMEM (1, hid)         f32
    o_ref,         # VMEM (tile_n, hid)    bf16
    agg_ref,       # VMEM (tile_n, hid)    f32 scratch (aggregation over k)
    acc_ref,       # VMEM (tile_n, hid)    f32 scratch (output accumulator)
    *,
    apply_relu,
):
    del col_blk_ref  # only used by the index maps
    # All grid queries at top level (program_id inside pl.when does not lower
    # on the interpret path).
    r = pl.program_id(1)
    k = pl.program_id(2)
    last_r = pl.num_programs(1) - 1
    last_k = pl.num_programs(2) - 1

    @pl.when((r == 0) & (k == 0))
    def _init_out():
        acc_ref[...] = (
            jnp.dot(hself_ref[...], wself_ref[...], preferred_element_type=jnp.float32)
            + bias_ref[...]
        )

    @pl.when(k == 0)
    def _init_agg():
        agg_ref[...] = jnp.zeros(agg_ref.shape, jnp.float32)

    # message aggregation for relation r over this source (k) tile
    agg_ref[...] += jnp.dot(adj_ref[...], h_ref[...], preferred_element_type=jnp.float32)

    @pl.when(k == last_k)
    def _apply_wrel():
        # NOTE: aggregated messages are down-cast to bf16 for the MXU transform;
        # fine for inference, keep f32 here if training gradients matter.
        acc_ref[...] += jnp.dot(
            agg_ref[...].astype(wrel_ref.dtype), wrel_ref[...],
            preferred_element_type=jnp.float32,
        )

    @pl.when((r == last_r) & (k == last_k))
    def _finalize():
        out = acc_ref[...]
        if apply_relu:
            out = jnp.maximum(out, 0.0)
        o_ref[...] = out.astype(o_ref.dtype)


def rgcn_layer(adj_compact, col_blk_start, h, w_rel, w_self, bias, *,
               apply_relu, tile_n, tile_k, vmem_bytes):
    num_rels, n, kc = adj_compact.shape
    hid = h.shape[1]
    assert n % tile_n == 0 and kc % tile_k == 0

    kernel = partial(rgcn_layer_kernel, apply_relu=apply_relu)
    return pl.pallas_call(
        kernel,
        out_shape=jax.ShapeDtypeStruct((n, hid), jnp.bfloat16),
        grid_spec=pltpu.PrefetchScalarGridSpec(
            num_scalar_prefetch=1,
            grid=(n // tile_n, num_rels, kc // tile_k),
            in_specs=[
                # column-compacted per-relation adjacency block
                pl.BlockSpec((None, tile_n, tile_k), lambda i, r, k, cb: (r, i, k)),
                # matching source-node hidden rows (data-dependent block offset)
                pl.BlockSpec((tile_k, hid), lambda i, r, k, cb: (cb[r] + k, 0)),
                # self rows of this destination tile (pipelined, no in-kernel slice)
                pl.BlockSpec((tile_n, hid), lambda i, r, k, cb: (i, 0)),
                pl.BlockSpec((None, hid, hid), lambda i, r, k, cb: (r, 0, 0)),
                pl.BlockSpec((hid, hid), lambda i, r, k, cb: (0, 0)),
                pl.BlockSpec((1, hid), lambda i, r, k, cb: (0, 0)),
            ],
            out_specs=pl.BlockSpec((tile_n, hid), lambda i, r, k, cb: (i, 0)),
            scratch_shapes=[
                pltpu.VMEM((tile_n, hid), jnp.float32),   # agg over k
                pltpu.VMEM((tile_n, hid), jnp.float32),   # output accumulator
            ],
        ),
        compiler_params=pltpu.CompilerParams(
            dimension_semantics=("parallel", "arbitrary", "arbitrary"),
            vmem_limit_bytes=vmem_bytes,
        ),
    )(col_blk_start, adj_compact, h, h, w_rel, w_self, bias.reshape(1, hid))


# ---------------------------------------------------------------------------
# Kernel 3: DistMult edge scoring, lane-dense (1, E) output, large edge tiles
# ---------------------------------------------------------------------------
def distmult_kernel(hs_ref, hd_ref, r_ref, o_ref):
    prod = (
        hs_ref[...].astype(jnp.float32)
        * r_ref[...].astype(jnp.float32)
        * hd_ref[...].astype(jnp.float32)
    )
    o_ref[...] = jnp.sum(prod, axis=0, keepdims=True)


def distmult(emb, rel_emb_bf16, edges):
    # TODO(synk): fuse the src/dst/etype gathers into the kernel (scalar-prefetch
    # indices + manual DMA row gather) to drop the (H, E) HBM intermediates.
    src, etype, dst = edges
    hs = jnp.take(emb, src, axis=0).T              # sublane gather + one transpose -> (H, E)
    hd = jnp.take(emb, dst, axis=0).T
    r = jnp.take(rel_emb_bf16, etype, axis=0).T
    hdim, e = hs.shape

    # large lane-dense edge tiles; whole padded E in one block when small
    tile_e = _round_up(e, 128) if e <= 4096 else 2048
    e_pad = _round_up(e, tile_e)
    if e_pad != e:
        pad = ((0, 0), (0, e_pad - e))
        hs, hd, r = jnp.pad(hs, pad), jnp.pad(hd, pad), jnp.pad(r, pad)

    scores = pl.pallas_call(
        distmult_kernel,
        out_shape=jax.ShapeDtypeStruct((1, e_pad), jnp.float32),
        grid_spec=pltpu.PrefetchScalarGridSpec(
            num_scalar_prefetch=0,
            grid=(e_pad // tile_e,),
            in_specs=[
                pl.BlockSpec((hdim, tile_e), lambda t: (0, t)),
                pl.BlockSpec((hdim, tile_e), lambda t: (0, t)),
                pl.BlockSpec((hdim, tile_e), lambda t: (0, t)),
            ],
            out_specs=pl.BlockSpec((1, tile_e), lambda t: (0, t)),
        ),
        compiler_params=pltpu.CompilerParams(
            dimension_semantics=("parallel",),
        ),
    )(hs, hd, r)
    return scores[:, :e].reshape(e, 1)


# ---------------------------------------------------------------------------
# Full forward: RGCNLinkPrediction.forward(g, x, pos_graph, neg_graph)
# ---------------------------------------------------------------------------
def rgcn_link_prediction_forward(
    params, adj_compact, col_blk_start, x, pos_edges, neg_edges,
    *, order, tile_n, tile_k, vmem_bytes,
):
    # 1) MLPFeatureTransformer (row-tiled, writes the concatenated buffer directly)
    h = feature_transform(x, params["ft"], order)                    # (N, H) bf16

    # 2) RGCNEncoder: stacked R-GCN layers (ReLU on all but the last)
    num_layers = len(params["layers"])
    for li, lp in enumerate(params["layers"]):
        # weight-side basis reassociation: W_r = sum_b coef[r, b] * V_b (tiny RxHxH)
        w_rel = jnp.einsum("rb,bij->rij", lp["coef"], lp["basis"]).astype(jnp.bfloat16)
        h = rgcn_layer(
            adj_compact, col_blk_start, h, w_rel,
            lp["w_self"].astype(jnp.bfloat16), lp["bias"],
            apply_relu=(li < num_layers - 1),
            tile_n=tile_n, tile_k=tile_k, vmem_bytes=vmem_bytes,
        )

    # 3) GraphDistmultDecoder on positive and negative edge graphs
    rel_bf16 = params["rel_emb"].astype(jnp.bfloat16)
    pos_score = distmult(h, rel_bf16, pos_edges)
    neg_score = distmult(h, rel_bf16, neg_edges)
    return pos_score, neg_score


# ---------------------------------------------------------------------------
# Graph / parameter construction helpers (synthetic; no checkpoint load)
# ---------------------------------------------------------------------------
def compact_adjacency(adj, col_ranges, tile_k):
    """Column-compact the per-relation dense adjacency using bipartite structure:
    relation r only has nonzero columns in [start_r, start_r + width_r)."""
    n = adj.shape[1]
    kc = _round_up(max(w for _, w in col_ranges), tile_k)
    slabs, starts = [], []
    for r, (s, w) in enumerate(col_ranges):
        assert s % tile_k == 0 and s + kc <= n
        slab = adj[r, :, s:s + w]
        slabs.append(jnp.pad(slab, ((0, 0), (0, kc - w))))
        starts.append(s // tile_k)
    # TODO(synk): quantize the adjacency stream further (fp8 on v7x, int8+row
    # scale on v5e/v6e) — it is the HBM-roofline stream of this layer.
    return jnp.stack(slabs).astype(jnp.bfloat16), jnp.asarray(starts, jnp.int32)


def build_params(key, in_sizes, hidden, num_etypes, num_bases, num_layers):
    params = {"ft": {}, "layers": [], "rel_emb": None}
    for name, in_size in in_sizes.items():
        key, k1, k2 = jax.random.split(key, 3)
        params["ft"][name] = {
            "w": 0.1 * jax.random.normal(k1, (in_size, hidden), jnp.float32),
            "b": 0.1 * jax.random.normal(k2, (hidden,), jnp.float32),
        }
    for _ in range(num_layers):
        key, k1, k2, k3, k4 = jax.random.split(key, 5)
        params["layers"].append(
            {
                "basis": 0.1 * jax.random.normal(k1, (num_bases, hidden, hidden), jnp.float32),
                "coef": 0.1 * jax.random.normal(k2, (num_etypes, num_bases), jnp.float32),
                "w_self": 0.1 * jax.random.normal(k3, (hidden, hidden), jnp.float32),
                "bias": 0.1 * jax.random.normal(k4, (hidden,), jnp.float32),
            }
        )
    key, k1 = jax.random.split(key)
    params["rel_emb"] = 0.1 * jax.random.normal(k1, (num_etypes, hidden), jnp.float32)
    return params


if __name__ == "__main__":
    key = jax.random.PRNGKey(0)

    # --- small MovieLens-like setup (128-aligned for MXU lanes) ---
    order = ("user", "movie")
    etypes = ("rated", "rated-by")            # user->movie, movie->user
    num_etypes = len(etypes)
    in_sizes = {"user": 64, "movie": 96}
    counts = {"user": 128, "movie": 128}
    hidden = 128
    num_bases = 2
    num_encoder_layers = 2
    n_pos_edges = 256
    n_neg_edges = 256
    tile_r = 128      # feature-transform row tile (defines the node layout)
    tile_k = 128      # source-node (K) tile of the R-GCN layer

    # node layout: type-major, each type's rows padded to a tile_r multiple
    offsets, n_nodes = {}, 0
    for name in order:
        offsets[name] = n_nodes
        n_nodes += _round_up(counts[name], tile_r)

    tile_n, vmem_bytes = _rgcn_config(n_nodes)

    params = build_params(key, in_sizes, hidden, num_etypes, num_bases, num_encoder_layers)

    key, ku, km = jax.random.split(key, 3)
    x = {
        "user": jax.random.normal(ku, (counts["user"], in_sizes["user"]), jnp.float32),
        "movie": jax.random.normal(km, (counts["movie"], in_sizes["movie"]), jnp.float32),
    }

    # message-passing graph g: dense per-relation adjacency, dst-major rows,
    # in-degree ("right") normalized
    key, ka = jax.random.split(key)
    u0, m0 = offsets["user"], offsets["movie"]
    nu, nm = counts["user"], counts["movie"]
    mask_um = jax.random.bernoulli(ka, 0.1, (nm, nu)).astype(jnp.float32)
    adj = jnp.zeros((num_etypes, n_nodes, n_nodes), jnp.float32)
    adj = adj.at[0, m0:m0 + nm, u0:u0 + nu].set(mask_um)       # "rated": user -> movie
    adj = adj.at[1, u0:u0 + nu, m0:m0 + nm].set(mask_um.T)     # "rated-by": movie -> user
    deg = jnp.sum(adj, axis=-1, keepdims=True)
    adj = adj / jnp.maximum(deg, 1.0)

    # bipartite column ranges per relation (sources: users for rel 0, movies for rel 1)
    col_ranges = [(u0, _round_up(nu, tile_k)), (m0, _round_up(nm, tile_k))]
    adj_compact, col_blk_start = compact_adjacency(adj, col_ranges, tile_k)

    # positive / negative edge graphs: (src, etype, dst) triplets
    def make_edges(k, n_edges):
        k1, k2, k3 = jax.random.split(k, 3)
        et = jax.random.randint(k1, (n_edges,), 0, num_etypes)
        u = jax.random.randint(k2, (n_edges,), u0, u0 + nu)
        m = jax.random.randint(k3, (n_edges,), m0, m0 + nm)
        src = jnp.where(et == 0, u, m)
        dst = jnp.where(et == 0, m, u)
        return src, et, dst

    key, kp, kn = jax.random.split(key, 3)
    pos_edges = make_edges(kp, n_pos_edges)
    neg_edges = make_edges(kn, n_neg_edges)

    fwd = jax.jit(partial(
        rgcn_link_prediction_forward,
        order=order, tile_n=tile_n, tile_k=tile_k, vmem_bytes=vmem_bytes,
    ))
    pos_score, neg_score = fwd(params, adj_compact, col_blk_start, x, pos_edges, neg_edges)
    jax.block_until_ready((pos_score, neg_score))

    assert pos_score.shape == (n_pos_edges, 1) and neg_score.shape == (n_neg_edges, 1)
    assert bool(jnp.all(jnp.isfinite(pos_score))) and bool(jnp.all(jnp.isfinite(neg_score)))
    print("KERNEL_OK")
</pallas_src>

<mosaic_0001>
module attributes {stable_mosaic.version = 11 : i64} {
  func.func @feature_transform_kernel(%arg0: i32, %arg1: memref<2xi32, #tpu.memory_space<smem>>, %arg2: memref<128x128xbf16, #tpu.memory_space<vmem>>, %arg3: memref<1x128x128xbf16, #tpu.memory_space<vmem>>, %arg4: memref<1x1x128xf32, #tpu.memory_space<vmem>>, %arg5: memref<128x128xbf16, #tpu.memory_space<vmem>>) attributes {dimension_semantics = [#tpu.dimension_semantics<parallel>], iteration_bounds = array<i64: 2>, scalar_prefetch = 1 : i64, scratch_operands = 0 : i64, tpu.core_type = #tpu.core_type<tc>, window_params = [{transform_indices = @transform_0, window_bounds = array<i64: 128, 128>}, {transform_indices = @transform_1, window_bounds = array<i64: 1, 128, 128>}, {transform_indices = @transform_2, window_bounds = array<i64: 1, 1, 128>}, {transform_indices = @transform_3, window_bounds = array<i64: 128, 128>}]} {
    %c0 = arith.constant 0 : index
    %c0_0 = arith.constant 0 : index
    %0 = vector.load %arg2[%c0, %c0_0] : memref<128x128xbf16, #tpu.memory_space<vmem>>, vector<128x128xbf16>
    %c0_1 = arith.constant 0 : index
    %c0_2 = arith.constant 0 : index
    %c0_3 = arith.constant 0 : index
    %1 = vector.load %arg3[%c0_1, %c0_2, %c0_3] : memref<1x128x128xbf16, #tpu.memory_space<vmem>>, vector<1x128x128xbf16>
    %2 = vector.shape_cast %1 : vector<1x128x128xbf16> to vector<128x128xbf16>
    %cst = arith.constant dense<0.000000e+00> : vector<128x128xf32>
    %3 = tpu.matmul %0, %2, %cst {dimension_numbers = #tpu.dot_dimension_numbers<[1], [0], [0], [1], [0, 0, 1, 1], [], []>} : vector<128x128xbf16>, vector<128x128xbf16>, vector<128x128xf32> -> vector<128x128xf32>
    %c0_4 = arith.constant 0 : index
    %c0_5 = arith.constant 0 : index
    %c0_6 = arith.constant 0 : index
    %4 = vector.load %arg4[%c0_4, %c0_5, %c0_6] : memref<1x1x128xf32, #tpu.memory_space<vmem>>, vector<1x1x128xf32>
    %5 = vector.shape_cast %4 : vector<1x1x128xf32> to vector<1x128xf32>
    %6 = vector.broadcast %5 : vector<1x128xf32> to vector<128x128xf32>
    %7 = arith.addf %3, %6 : vector<128x128xf32>
    %8 = arith.truncf %7 : vector<128x128xf32> to vector<128x128xbf16>
    %c0_7 = arith.constant 0 : index
    %c0_8 = arith.constant 0 : index
    %9 = vector.load %arg5[%c0_7, %c0_8] : memref<128x128xbf16, #tpu.memory_space<vmem>>, vector<128x128xbf16>
    tpu.vector_store %arg5[%c0_7, %c0_8], %8 {strides = array<i32>} : memref<128x128xbf16, #tpu.memory_space<vmem>>, vector<128x128xbf16>,
    return
  }
  func.func @transform_0(%arg0: i32, %arg1: memref<2xi32, #tpu.memory_space<smem>>) -> (i32, i32) {
    %c0_i32 = arith.constant 0 : i32
    %c0_i32_0 = arith.constant 0 : i32
    return %arg0, %c0_i32 : i32, i32
  }
  func.func @transform_1(%arg0: i32, %arg1: memref<2xi32, #tpu.memory_space<smem>>) -> (i32, i32, i32) {
    %0 = arith.index_cast %arg0 : i32 to index
    %1 = memref.load %arg1[%0] : memref<2xi32, #tpu.memory_space<smem>>
    %c0_i32 = arith.constant 0 : i32
    %c0_i32_0 = arith.constant 0 : i32
    %c0_i32_1 = arith.constant 0 : i32
    return %1, %c0_i32, %c0_i32_0 : i32, i32, i32
  }
  func.func @transform_2(%arg0: i32, %arg1: memref<2xi32, #tpu.memory_space<smem>>) -> (i32, i32, i32) {
    %0 = arith.index_cast %arg0 : i32 to index
    %1 = memref.load %arg1[%0] : memref<2xi32, #tpu.memory_space<smem>>
    %c0_i32 = arith.constant 0 : i32
    %c0_i32_0 = arith.constant 0 : i32
    %c0_i32_1 = arith.constant 0 : i32
    return %1, %c0_i32, %c0_i32_0 : i32, i32, i32
  }
  func.func @transform_3(%arg0: i32, %arg1: memref<2xi32, #tpu.memory_space<smem>>) -> (i32, i32) {
    %c0_i32 = arith.constant 0 : i32
    %c0_i32_0 = arith.constant 0 : i32
    return %arg0, %c0_i32 : i32, i32
  }
}

module attributes {stable_mosaic.version = 11 : i64} {
  func.func @rgcn_layer_kernel(%arg0: i32, %arg1: i32, %arg2: i32, %arg3: memref<2xi32, #tpu.memory_space<smem>>, %arg4: memref<1x128x128xbf16, #tpu.memory_space<vmem>>, %arg5: memref<128x128xbf16, #tpu.memory_space<vmem>>, %arg6: memref<128x128xbf16, #tpu.memory_space<vmem>>, %arg7: memref<1x128x128xbf16, #tpu.memory_space<vmem>>, %arg8: memref<128x128xbf16, #tpu.memory_space<vmem>>, %arg9: memref<1x128xf32, #tpu.memory_space<vmem>>, %arg10: memref<128x128xbf16, #tpu.memory_space<vmem>>, %arg11: memref<128x128xf32, #tpu.memory_space<vmem>>, %arg12: memref<128x128xf32, #tpu.memory_space<vmem>>) attributes {dimension_semantics = [#tpu.dimension_semantics<parallel>, #tpu.dimension_semantics<arbitrary>, #tpu.dimension_semantics<arbitrary>], iteration_bounds = array<i64: 2, 2, 1>, scalar_prefetch = 1 : i64, scratch_operands = 2 : i64, tpu.core_type = #tpu.core_type<tc>, window_params = [{transform_indices = @transform_0, window_bounds = array<i64: 1, 128, 128>}, {transform_indices = @transform_1, window_bounds = array<i64: 128, 128>}, {transform_indices = @transform_2, window_bounds = array<i64: 128, 128>}, {transform_indices = @transform_3, window_bounds = array<i64: 1, 128, 128>}, {pipeline_mode = #tpu.pipeline_mode<synchronous>, transform_indices = @transform_4, window_bounds = array<i64: 128, 128>}, {pipeline_mode = #tpu.pipeline_mode<synchronous>, transform_indices = @transform_5, window_bounds = array<i64: 1, 128>}, {transform_indices = @transform_6, window_bounds = array<i64: 128, 128>}]} {
    %c0_i32 = arith.constant 0 : i32
    %0 = arith.cmpi eq, %arg1, %c0_i32 : i32
    %c0_i32_0 = arith.constant 0 : i32
    %1 = arith.cmpi eq, %arg2, %c0_i32_0 : i32
    %2 = arith.andi %0, %1 : i1
    %3 = arith.extui %2 : i1 to i32
    %c0_i32_1 = arith.constant 0 : i32
    %4 = arith.cmpi ne, %3, %c0_i32_1 : i32
    scf.if %4 {
      %c0_16 = arith.constant 0 : index
      %c0_17 = arith.constant 0 : index
      %23 = vector.load %arg6[%c0_16, %c0_17] : memref<128x128xbf16, #tpu.memory_space<vmem>>, vector<128x128xbf16>
      %c0_18 = arith.constant 0 : index
      %c0_19 = arith.constant 0 : index
      %24 = vector.load %arg8[%c0_18, %c0_19] : memref<128x128xbf16, #tpu.memory_space<vmem>>, vector<128x128xbf16>
      %cst_20 = arith.constant dense<0.000000e+00> : vector<128x128xf32>
      %25 = tpu.matmul %23, %24, %cst_20 {dimension_numbers = #tpu.dot_dimension_numbers<[1], [0], [0], [1], [0, 0, 1, 1], [], []>} : vector<128x128xbf16>, vector<128x128xbf16>, vector<128x128xf32> -> vector<128x128xf32>
      %c0_21 = arith.constant 0 : index
      %c0_22 = arith.constant 0 : index
      %26 = vector.load %arg9[%c0_21, %c0_22] : memref<1x128xf32, #tpu.memory_space<vmem>>, vector<1x128xf32>
      %27 = vector.broadcast %26 : vector<1x128xf32> to vector<128x128xf32>
      %28 = arith.addf %25, %27 : vector<128x128xf32>
      %c0_23 = arith.constant 0 : index
      %c0_24 = arith.constant 0 : index
      %29 = vector.load %arg12[%c0_23, %c0_24] : memref<128x128xf32, #tpu.memory_space<vmem>>, vector<128x128xf32>
      tpu.vector_store %arg12[%c0_23, %c0_24], %28 {strides = array<i32>} : memref<128x128xf32, #tpu.memory_space<vmem>>, vector<128x128xf32>,
    } else {
    }
    %c0_i32_2 = arith.constant 0 : i32
    %5 = arith.cmpi eq, %arg2, %c0_i32_2 : i32
    %6 = arith.extui %5 : i1 to i32
    %c0_i32_3 = arith.constant 0 : i32
    %7 = arith.cmpi ne, %6, %c0_i32_3 : i32
    scf.if %7 {
      %cst_16 = arith.constant 0.000000e+00 : f32
      %23 = vector.broadcast %cst_16 : f32 to vector<128x128xf32>
      %c0_17 = arith.constant 0 : index
      %c0_18 = arith.constant 0 : index
      %24 = vector.load %arg11[%c0_17, %c0_18] : memref<128x128xf32, #tpu.memory_space<vmem>>, vector<128x128xf32>
      tpu.vector_store %arg11[%c0_17, %c0_18], %23 {strides = array<i32>} : memref<128x128xf32, #tpu.memory_space<vmem>>, vector<128x128xf32>,
    } else {
    }
    %c0 = arith.constant 0 : index
    %c0_4 = arith.constant 0 : index
    %8 = vector.load %arg11[%c0, %c0_4] : memref<128x128xf32, #tpu.memory_space<vmem>>, vector<128x128xf32>
    %c0_5 = arith.constant 0 : index
    %c0_6 = arith.constant 0 : index
    %c0_7 = arith.constant 0 : index
    %9 = vector.load %arg4[%c0_5, %c0_6, %c0_7] : memref<1x128x128xbf16, #tpu.memory_space<vmem>>, vector<1x128x128xbf16>
    %10 = vector.shape_cast %9 : vector<1x128x128xbf16> to vector<128x128xbf16>
    %c0_8 = arith.constant 0 : index
    %c0_9 = arith.constant 0 : index
    %11 = vector.load %arg5[%c0_8, %c0_9] : memref<128x128xbf16, #tpu.memory_space<vmem>>, vector<128x128xbf16>
    %cst = arith.constant dense<0.000000e+00> : vector<128x128xf32>
    %12 = tpu.matmul %10, %11, %cst {dimension_numbers = #tpu.dot_dimension_numbers<[1], [0], [0], [1], [0, 0, 1, 1], [], []>} : vector<128x128xbf16>, vector<128x128xbf16>, vector<128x128xf32> -> vector<128x128xf32>
    %13 = arith.addf %8, %12 : vector<128x128xf32>
    %c0_10 = arith.constant 0 : index
    %c0_11 = arith.constant 0 : index
    %14 = vector.load %arg11[%c0_10, %c0_11] : memref<128x128xf32, #tpu.memory_space<vmem>>, vector<128x128xf32>
    tpu.vector_store %arg11[%c0_10, %c0_11], %13 {strides = array<i32>} : memref<128x128xf32, #tpu.memory_space<vmem>>, vector<128x128xf32>,
    %c0_i32_12 = arith.constant 0 : i32
    %15 = arith.cmpi eq, %arg2, %c0_i32_12 : i32
    %16 = arith.extui %15 : i1 to i32
    %c0_i32_13 = arith.constant 0 : i32
    %17 = arith.cmpi ne, %16, %c0_i32_13 : i32
    scf.if %17 {
      %c0_16 = arith.constant 0 : index
      %c0_17 = arith.constant 0 : index
      %23 = vector.load %arg12[%c0_16, %c0_17] : memref<128x128xf32, #tpu.memory_space<vmem>>, vector<128x128xf32>
      %c0_18 = arith.constant 0 : index
      %c0_19 = arith.constant 0 : index
      %24 = vector.load %arg11[%c0_18, %c0_19] : memref<128x128xf32, #tpu.memory_space<vmem>>, vector<128x128xf32>
      %25 = arith.truncf %24 : vector<128x128xf32> to vector<128x128xbf16>
      %c0_20 = arith.constant 0 : index
      %c0_21 = arith.constant 0 : index
      %c0_22 = arith.constant 0 : index
      %26 = vector.load %arg7[%c0_20, %c0_21, %c0_22] : memref<1x128x128xbf16, #tpu.memory_space<vmem>>, vector<1x128x128xbf16>
      %27 = vector.shape_cast %26 : vector<1x128x128xbf16> to vector<128x128xbf16>
      %cst_23 = arith.constant dense<0.000000e+00> : vector<128x128xf32>
      %28 = tpu.matmul %25, %27, %cst_23 {dimension_numbers = #tpu.dot_dimension_numbers<[1], [0], [0], [1], [0, 0, 1, 1], [], []>} : vector<128x128xbf16>, vector<128x128xbf16>, vector<128x128xf32> -> vector<128x128xf32>
      %29 = arith.addf %23, %28 : vector<128x128xf32>
      %c0_24 = arith.constant 0 : index
      %c0_25 = arith.constant 0 : index
      %30 = vector.load %arg12[%c0_24, %c0_25] : memref<128x128xf32, #tpu.memory_space<vmem>>, vector<128x128xf32>
      tpu.vector_store %arg12[%c0_24, %c0_25], %29 {strides = array<i32>} : memref<128x128xf32, #tpu.memory_space<vmem>>, vector<128x128xf32>,
    } else {
    }
    %c1_i32 = arith.constant 1 : i32
    %18 = arith.cmpi eq, %arg1, %c1_i32 : i32
    %c0_i32_14 = arith.constant 0 : i32
    %19 = arith.cmpi eq, %arg2, %c0_i32_14 : i32
    %20 = arith.andi %18, %19 : i1
    %21 = arith.extui %20 : i1 to i32
    %c0_i32_15 = arith.constant 0 : i32
    %22 = arith.cmpi ne, %21, %c0_i32_15 : i32
    scf.if %22 {
      %c0_16 = arith.constant 0 : index
      %c0_17 = arith.constant 0 : index
      %23 = vector.load %arg12[%c0_16, %c0_17] : memref<128x128xf32, #tpu.memory_space<vmem>>, vector<128x128xf32>
      %cst_18 = arith.constant 0.000000e+00 : f32
      %24 = vector.broadcast %cst_18 : f32 to vector<128x128xf32>
      %25 = arith.maximumf %23, %24 : vector<128x128xf32>
      %26 = arith.truncf %25 : vector<128x128xf32> to vector<128x128xbf16>
      %c0_19 = arith.constant 0 : index
      %c0_20 = arith.constant 0 : index
      %27 = vector.load %arg10[%c0_19, %c0_20] : memref<128x128xbf16, #tpu.memory_space<vmem>>, vector<128x128xbf16>
      tpu.vector_store %arg10[%c0_19, %c0_20], %26 {strides = array<i32>} : memref<128x128xbf16, #tpu.memory_space<vmem>>, vector<128x128xbf16>,
    } else {
    }
    return
  }
  func.func @transform_0(%arg0: i32, %arg1: i32, %arg2: i32, %arg3: memref<2xi32, #tpu.memory_space<smem>>) -> (i32, i32, i32) {
    %c0_i32 = arith.constant 0 : i32
    return %arg1, %arg0, %arg2 : i32, i32, i32
  }
  func.func @transform_1(%arg0: i32, %arg1: i32, %arg2: i32, %arg3: memref<2xi32, #tpu.memory_space<smem>>) -> (i32, i32) {
    %0 = arith.index_cast %arg1 : i32 to index
    %1 = memref.load %arg3[%0] : memref<2xi32, #tpu.memory_space<smem>>
    %2 = arith.addi %1, %arg2 : i32
    %c0_i32 = arith.constant 0 : i32
    %c0_i32_0 = arith.constant 0 : i32
    return %2, %c0_i32 : i32, i32
  }
  func.func @transform_2(%arg0: i32, %arg1: i32, %arg2: i32, %arg3: memref<2xi32, #tpu.memory_space<smem>>) -> (i32, i32) {
    %c0_i32 = arith.constant 0 : i32
    %c0_i32_0 = arith.constant 0 : i32
    return %arg0, %c0_i32 : i32, i32
  }
  func.func @transform_3(%arg0: i32, %arg1: i32, %arg2: i32, %arg3: memref<2xi32, #tpu.memory_space<smem>>) -> (i32, i32, i32) {
    %c0_i32 = arith.constant 0 : i32
    %c0_i32_0 = arith.constant 0 : i32
    %c0_i32_1 = arith.constant 0 : i32
    return %arg1, %c0_i32, %c0_i32_0 : i32, i32, i32
  }
  func.func @transform_4(%arg0: i32, %arg1: i32, %arg2: i32, %arg3: memref<2xi32, #tpu.memory_space<smem>>) -> (i32, i32) {
    %c0_i32 = arith.constant 0 : i32
    %c0_i32_0 = arith.constant 0 : i32
    %c0_i32_1 = arith.constant 0 : i32
    return %c0_i32, %c0_i32_0 : i32, i32
  }
  func.func @transform_5(%arg0: i32, %arg1: i32, %arg2: i32, %arg3: memref<2xi32, #tpu.memory_space<smem>>) -> (i32, i32) {
    %c0_i32 = arith.constant 0 : i32
    %c0_i32_0 = arith.constant 0 : i32
    %c0_i32_1 = arith.constant 0 : i32
    return %c0_i32, %c0_i32_0 : i32, i32
  }
  func.func @transform_6(%arg0: i32, %arg1: i32, %arg2: i32, %arg3: memref<2xi32, #tpu.memory_space<smem>>) -> (i32, i32) {
    %c0_i32 = arith.constant 0 : i32
    %c0_i32_0 = arith.constant 0 : i32
    return %arg0, %c0_i32 : i32, i32
  }
}

module attributes {stable_mosaic.version = 11 : i64} {
  func.func @rgcn_layer_kernel(%arg0: i32, %arg1: i32, %arg2: i32, %arg3: memref<2xi32, #tpu.memory_space<smem>>, %arg4: memref<1x128x128xbf16, #tpu.memory_space<vmem>>, %arg5: memref<128x128xbf16, #tpu.memory_space<vmem>>, %arg6: memref<128x128xbf16, #tpu.memory_space<vmem>>, %arg7: memref<1x128x128xbf16, #tpu.memory_space<vmem>>, %arg8: memref<128x128xbf16, #tpu.memory_space<vmem>>, %arg9: memref<1x128xf32, #tpu.memory_space<vmem>>, %arg10: memref<128x128xbf16, #tpu.memory_space<vmem>>, %arg11: memref<128x128xf32, #tpu.memory_space<vmem>>, %arg12: memref<128x128xf32, #tpu.memory_space<vmem>>) attributes {dimension_semantics = [#tpu.dimension_semantics<parallel>, #tpu.dimension_semantics<arbitrary>, #tpu.dimension_semantics<arbitrary>], iteration_bounds = array<i64: 2, 2, 1>, scalar_prefetch = 1 : i64, scratch_operands = 2 : i64, tpu.core_type = #tpu.core_type<tc>, window_params = [{transform_indices = @transform_0, window_bounds = array<i64: 1, 128, 128>}, {transform_indices = @transform_1, window_bounds = array<i64: 128, 128>}, {transform_indices = @transform_2, window_bounds = array<i64: 128, 128>}, {transform_indices = @transform_3, window_bounds = array<i64: 1, 128, 128>}, {pipeline_mode = #tpu.pipeline_mode<synchronous>, transform_indices = @transform_4, window_bounds = array<i64: 128, 128>}, {pipeline_mode = #tpu.pipeline_mode<synchronous>, transform_indices = @transform_5, window_bounds = array<i64: 1, 128>}, {transform_indices = @transform_6, window_bounds = array<i64: 128, 128>}]} {
    %c0_i32 = arith.constant 0 : i32
    %0 = arith.cmpi eq, %arg1, %c0_i32 : i32
    %c0_i32_0 = arith.constant 0 : i32
    %1 = arith.cmpi eq, %arg2, %c0_i32_0 : i32
    %2 = arith.andi %0, %1 : i1
    %3 = arith.extui %2 : i1 to i32
    %c0_i32_1 = arith.constant 0 : i32
    %4 = arith.cmpi ne, %3, %c0_i32_1 : i32
    scf.if %4 {
      %c0_16 = arith.constant 0 : index
      %c0_17 = arith.constant 0 : index
      %23 = vector.load %arg6[%c0_16, %c0_17] : memref<128x128xbf16, #tpu.memory_space<vmem>>, vector<128x128xbf16>
      %c0_18 = arith.constant 0 : index
      %c0_19 = arith.constant 0 : index
      %24 = vector.load %arg8[%c0_18, %c0_19] : memref<128x128xbf16, #tpu.memory_space<vmem>>, vector<128x128xbf16>
      %cst_20 = arith.constant dense<0.000000e+00> : vector<128x128xf32>
      %25 = tpu.matmul %23, %24, %cst_20 {dimension_numbers = #tpu.dot_dimension_numbers<[1], [0], [0], [1], [0, 0, 1, 1], [], []>} : vector<128x128xbf16>, vector<128x128xbf16>, vector<128x128xf32> -> vector<128x128xf32>
      %c0_21 = arith.constant 0 : index
      %c0_22 = arith.constant 0 : index
      %26 = vector.load %arg9[%c0_21, %c0_22] : memref<1x128xf32, #tpu.memory_space<vmem>>, vector<1x128xf32>
      %27 = vector.broadcast %26 : vector<1x128xf32> to vector<128x128xf32>
      %28 = arith.addf %25, %27 : vector<128x128xf32>
      %c0_23 = arith.constant 0 : index
      %c0_24 = arith.constant 0 : index
      %29 = vector.load %arg12[%c0_23, %c0_24] : memref<128x128xf32, #tpu.memory_space<vmem>>, vector<128x128xf32>
      tpu.vector_store %arg12[%c0_23, %c0_24], %28 {strides = array<i32>} : memref<128x128xf32, #tpu.memory_space<vmem>>, vector<128x128xf32>,
    } else {
    }
    %c0_i32_2 = arith.constant 0 : i32
    %5 = arith.cmpi eq, %arg2, %c0_i32_2 : i32
    %6 = arith.extui %5 : i1 to i32
    %c0_i32_3 = arith.constant 0 : i32
    %7 = arith.cmpi ne, %6, %c0_i32_3 : i32
    scf.if %7 {
      %cst_16 = arith.constant 0.000000e+00 : f32
      %23 = vector.broadcast %cst_16 : f32 to vector<128x128xf32>
      %c0_17 = arith.constant 0 : index
      %c0_18 = arith.constant 0 : index
      %24 = vector.load %arg11[%c0_17, %c0_18] : memref<128x128xf32, #tpu.memory_space<vmem>>, vector<128x128xf32>
      tpu.vector_store %arg11[%c0_17, %c0_18], %23 {strides = array<i32>} : memref<128x128xf32, #tpu.memory_space<vmem>>, vector<128x128xf32>,
    } else {
    }
    %c0 = arith.constant 0 : index
    %c0_4 = arith.constant 0 : index
    %8 = vector.load %arg11[%c0, %c0_4] : memref<128x128xf32, #tpu.memory_space<vmem>>, vector<128x128xf32>
    %c0_5 = arith.constant 0 : index
    %c0_6 = arith.constant 0 : index
    %c0_7 = arith.constant 0 : index
    %9 = vector.load %arg4[%c0_5, %c0_6, %c0_7] : memref<1x128x128xbf16, #tpu.memory_space<vmem>>, vector<1x128x128xbf16>
    %10 = vector.shape_cast %9 : vector<1x128x128xbf16> to vector<128x128xbf16>
    %c0_8 = arith.constant 0 : index
    %c0_9 = arith.constant 0 : index
    %11 = vector.load %arg5[%c0_8, %c0_9] : memref<128x128xbf16, #tpu.memory_space<vmem>>, vector<128x128xbf16>
    %cst = arith.constant dense<0.000000e+00> : vector<128x128xf32>
    %12 = tpu.matmul %10, %11, %cst {dimension_numbers = #tpu.dot_dimension_numbers<[1], [0], [0], [1], [0, 0, 1, 1], [], []>} : vector<128x128xbf16>, vector<128x128xbf16>, vector<128x128xf32> -> vector<128x128xf32>
    %13 = arith.addf %8, %12 : vector<128x128xf32>
    %c0_10 = arith.constant 0 : index
    %c0_11 = arith.constant 0 : index
    %14 = vector.load %arg11[%c0_10, %c0_11] : memref<128x128xf32, #tpu.memory_space<vmem>>, vector<128x128xf32>
    tpu.vector_store %arg11[%c0_10, %c0_11], %13 {strides = array<i32>} : memref<128x128xf32, #tpu.memory_space<vmem>>, vector<128x128xf32>,
    %c0_i32_12 = arith.constant 0 : i32
    %15 = arith.cmpi eq, %arg2, %c0_i32_12 : i32
    %16 = arith.extui %15 : i1 to i32
    %c0_i32_13 = arith.constant 0 : i32
    %17 = arith.cmpi ne, %16, %c0_i32_13 : i32
    scf.if %17 {
      %c0_16 = arith.constant 0 : index
      %c0_17 = arith.constant 0 : index
      %23 = vector.load %arg12[%c0_16, %c0_17] : memref<128x128xf32, #tpu.memory_space<vmem>>, vector<128x128xf32>
      %c0_18 = arith.constant 0 : index
      %c0_19 = arith.constant 0 : index
      %24 = vector.load %arg11[%c0_18, %c0_19] : memref<128x128xf32, #tpu.memory_space<vmem>>, vector<128x128xf32>
      %25 = arith.truncf %24 : vector<128x128xf32> to vector<128x128xbf16>
      %c0_20 = arith.constant 0 : index
      %c0_21 = arith.constant 0 : index
      %c0_22 = arith.constant 0 : index
      %26 = vector.load %arg7[%c0_20, %c0_21, %c0_22] : memref<1x128x128xbf16, #tpu.memory_space<vmem>>, vector<1x128x128xbf16>
      %27 = vector.shape_cast %26 : vector<1x128x128xbf16> to vector<128x128xbf16>
      %cst_23 = arith.constant dense<0.000000e+00> : vector<128x128xf32>
      %28 = tpu.matmul %25, %27, %cst_23 {dimension_numbers = #tpu.dot_dimension_numbers<[1], [0], [0], [1], [0, 0, 1, 1], [], []>} : vector<128x128xbf16>, vector<128x128xbf16>, vector<128x128xf32> -> vector<128x128xf32>
      %29 = arith.addf %23, %28 : vector<128x128xf32>
      %c0_24 = arith.constant 0 : index
      %c0_25 = arith.constant 0 : index
      %30 = vector.load %arg12[%c0_24, %c0_25] : memref<128x128xf32, #tpu.memory_space<vmem>>, vector<128x128xf32>
      tpu.vector_store %arg12[%c0_24, %c0_25], %29 {strides = array<i32>} : memref<128x128xf32, #tpu.memory_space<vmem>>, vector<128x128xf32>,
    } else {
    }
    %c1_i32 = arith.constant 1 : i32
    %18 = arith.cmpi eq, %arg1, %c1_i32 : i32
    %c0_i32_14 = arith.constant 0 : i32
    %19 = arith.cmpi eq, %arg2, %c0_i32_14 : i32
    %20 = arith.andi %18, %19 : i1
    %21 = arith.extui %20 : i1 to i32
    %c0_i32_15 = arith.constant 0 : i32
    %22 = arith.cmpi ne, %21, %c0_i32_15 : i32
    scf.if %22 {
      %c0_16 = arith.constant 0 : index
      %c0_17 = arith.constant 0 : index
      %23 = vector.load %arg12[%c0_16, %c0_17] : memref<128x128xf32, #tpu.memory_space<vmem>>, vector<128x128xf32>
      %24 = arith.truncf %23 : vector<128x128xf32> to vector<128x128xbf16>
      %c0_18 = arith.constant 0 : index
      %c0_19 = arith.constant 0 : index
      %25 = vector.load %arg10[%c0_18, %c0_19] : memref<128x128xbf16, #tpu.memory_space<vmem>>, vector<128x128xbf16>
      tpu.vector_store %arg10[%c0_18, %c0_19], %24 {strides = array<i32>} : memref<128x128xbf16, #tpu.memory_space<vmem>>, vector<128x128xbf16>,
    } else {
    }
    return
  }
  func.func @transform_0(%arg0: i32, %arg1: i32, %arg2: i32, %arg3: memref<2xi32, #tpu.memory_space<smem>>) -> (i32, i32, i32) {
    %c0_i32 = arith.constant 0 : i32
    return %arg1, %arg0, %arg2 : i32, i32, i32
  }
  func.func @transform_1(%arg0: i32, %arg1: i32, %arg2: i32, %arg3: memref<2xi32, #tpu.memory_space<smem>>) -> (i32, i32) {
    %0 = arith.index_cast %arg1 : i32 to index
    %1 = memref.load %arg3[%0] : memref<2xi32, #tpu.memory_space<smem>>
    %2 = arith.addi %1, %arg2 : i32
    %c0_i32 = arith.constant 0 : i32
    %c0_i32_0 = arith.constant 0 : i32
    return %2, %c0_i32 : i32, i32
  }
  func.func @transform_2(%arg0: i32, %arg1: i32, %arg2: i32, %arg3: memref<2xi32, #tpu.memory_space<smem>>) -> (i32, i32) {
    %c0_i32 = arith.constant 0 : i32
    %c0_i32_0 = arith.constant 0 : i32
    return %arg0, %c0_i32 : i32, i32
  }
  func.func @transform_3(%arg0: i32, %arg1: i32, %arg2: i32, %arg3: memref<2xi32, #tpu.memory_space<smem>>) -> (i32, i32, i32) {
    %c0_i32 = arith.constant 0 : i32
    %c0_i32_0 = arith.constant 0 : i32
    %c0_i32_1 = arith.constant 0 : i32
    return %arg1, %c0_i32, %c0_i32_0 : i32, i32, i32
  }
  func.func @transform_4(%arg0: i32, %arg1: i32, %arg2: i32, %arg3: memref<2xi32, #tpu.memory_space<smem>>) -> (i32, i32) {
    %c0_i32 = arith.constant 0 : i32
    %c0_i32_0 = arith.constant 0 : i32
    %c0_i32_1 = arith.constant 0 : i32
    return %c0_i32, %c0_i32_0 : i32, i32
  }
  func.func @transform_5(%arg0: i32, %arg1: i32, %arg2: i32, %arg3: memref<2xi32, #tpu.memory_space<smem>>) -> (i32, i32) {
    %c0_i32 = arith.constant 0 : i32
    %c0_i32_0 = arith.constant 0 : i32
    %c0_i32_1 = arith.constant 0 : i32
    return %c0_i32, %c0_i32_0 : i32, i32
  }
  func.func @transform_6(%arg0: i32, %arg1: i32, %arg2: i32, %arg3: memref<2xi32, #tpu.memory_space<smem>>) -> (i32, i32) {
    %c0_i32 = arith.constant 0 : i32
    %c0_i32_0 = arith.constant 0 : i32
    return %arg0, %c0_i32 : i32, i32
  }
}

module attributes {stable_mosaic.version = 11 : i64} {
  func.func @distmult_kernel(%arg0: i32, %arg1: memref<128x256xbf16, #tpu.memory_space<vmem>>, %arg2: memref<128x256xbf16, #tpu.memory_space<vmem>>, %arg3: memref<128x256xbf16, #tpu.memory_space<vmem>>, %arg4: memref<1x256xf32, #tpu.memory_space<vmem>>) attributes {dimension_semantics = [#tpu.dimension_semantics<parallel>], iteration_bounds = array<i64: 1>, scalar_prefetch = 0 : i64, scratch_operands = 0 : i64, tpu.core_type = #tpu.core_type<tc>, window_params = [{transform_indices = @transform_0, window_bounds = array<i64: 128, 256>}, {transform_indices = @transform_1, window_bounds = array<i64: 128, 256>}, {transform_indices = @transform_2, window_bounds = array<i64: 128, 256>}, {transform_indices = @transform_3, window_bounds = array<i64: 1, 256>}]} {
    %c0 = arith.constant 0 : index
    %c0_0 = arith.constant 0 : index
    %0 = vector.load %arg1[%c0, %c0_0] : memref<128x256xbf16, #tpu.memory_space<vmem>>, vector<128x256xbf16>
    %1 = arith.extf %0 : vector<128x256xbf16> to vector<128x256xf32>
    %c0_1 = arith.constant 0 : index
    %c0_2 = arith.constant 0 : index
    %2 = vector.load %arg3[%c0_1, %c0_2] : memref<128x256xbf16, #tpu.memory_space<vmem>>, vector<128x256xbf16>
    %3 = arith.extf %2 : vector<128x256xbf16> to vector<128x256xf32>
    %4 = arith.mulf %1, %3 : vector<128x256xf32>
    %c0_3 = arith.constant 0 : index
    %c0_4 = arith.constant 0 : index
    %5 = vector.load %arg2[%c0_3, %c0_4] : memref<128x256xbf16, #tpu.memory_space<vmem>>, vector<128x256xbf16>
    %6 = arith.extf %5 : vector<128x256xbf16> to vector<128x256xf32>
    %7 = arith.mulf %4, %6 : vector<128x256xf32>
    %cst = arith.constant dense<0.000000e+00> : vector<256xf32>
    %8 = vector.multi_reduction <add>, %7, %cst [0] : vector<128x256xf32> to vector<256xf32>
    %9 = vector.shape_cast %8 : vector<256xf32> to vector<1x256xf32>
    %c0_5 = arith.constant 0 : index
    %c0_6 = arith.constant 0 : index
    %10 = vector.load %arg4[%c0_5, %c0_6] : memref<1x256xf32, #tpu.memory_space<vmem>>, vector<1x256xf32>
    tpu.vector_store %arg4[%c0_5, %c0_6], %9 {strides = array<i32>} : memref<1x256xf32, #tpu.memory_space<vmem>>, vector<1x256xf32>,
    return
  }
  func.func @transform_0(%arg0: i32) -> (i32, i32) {
    %c0_i32 = arith.constant 0 : i32
    %c0_i32_0 = arith.constant 0 : i32
    return %c0_i32, %arg0 : i32, i32
  }
  func.func @transform_1(%arg0: i32) -> (i32, i32) {
    %c0_i32 = arith.constant 0 : i32
    %c0_i32_0 = arith.constant 0 : i32
    return %c0_i32, %arg0 : i32, i32
  }
  func.func @transform_2(%arg0: i32) -> (i32, i32) {
    %c0_i32 = arith.constant 0 : i32
    %c0_i32_0 = arith.constant 0 : i32
    return %c0_i32, %arg0 : i32, i32
  }
  func.func @transform_3(%arg0: i32) -> (i32, i32) {
    %c0_i32 = arith.constant 0 : i32
    %c0_i32_0 = arith.constant 0 : i32
    return %c0_i32, %arg0 : i32, i32
  }
}

</mosaic_0001>

<llo_original>
// kernel: rgcn_link_prediction_forward.5
$region0: #{rgcn_link_prediction_forward.5}
  #allocation0 [shape = 'u32[]', space=smem, size = 0x4, offset = 0x4, fixed_abs, tag = 'smem constant byte address 0x4 - core index']
  #allocation1 [shape = 'u32[144,128]{1,0:T(1,128)}', space=vmem, size = 0x12000, scoped, tag = 'internal scratch']
  #allocation2 [shape = 's32[1]{0}', space=sflag, size = 0x4, scoped, tag = 'scoped memory for rgcn_link_prediction_forward.5']
  #allocation3 [shape = 'u8[512]{0}', space=smem, size = 0x200, scoped, tag = 'prefetched SMEM operand 0']
  %s0 = inlined_call_operand.vmem [shape: s32[2], index: 0, kind: input, shape index: {}]
  %s1 = inlined_call_operand.vmem [shape: bf16[256,128], index: 1, kind: input, shape index: {}]
  %s2 = inlined_call_operand.vmem [shape: bf16[2,128,128], index: 2, kind: input, shape index: {}]
  %s3 = inlined_call_operand.vmem [shape: f32[2,1,128], index: 3, kind: input, shape index: {}]
  %s4 = inlined_call_operand.vmem [shape: bf16[256,128], index: 4, kind: output, shape index: {}]
  %s5 = sld [smem:[#allocation0]]
  $region45: #{rgcn_link_prediction_forward.5} parent=0
    _
  %s7 = ssub.s32 1, %s5
  %s8 = scalar_select 0, %s7, %s5
  %s9 = sshll.u32 %s0, 4
  %s10 = int_to_ptr.vmem [resolvable:$true] %s9
  %12 = dma.vmem_to_smem %s10, 16, [#allocation3], [#allocation2]
  %13 = dma.done [#allocation2], 16
  %14 = sfence
  loop: start=0, step=1, limit=4
  $region2: #{rgcn_link_prediction_forward.5} parent=0 // loop_pre_header
    _
  $region3: #{rgcn_link_prediction_forward.5} parent=0 // loop_header
    %s16 = sphi 0, %s20
    %p17 = scmp.ge.s32.totalorder %s16, 4
    %s26 = sphi 0, %s28
    %s29 = sphi 0, %s26
    %s30 = sphi 0, %s29
    %s46 = sphi 0, %s30
    %s54 = sphi 0, %s56
    %s57 = sphi 0, %s54
    %s58 = sphi 0, %s57
    %s74 = sphi 0, %s58
    %s82 = sphi 0, %s84
    %s85 = sphi 0, %s82
    %s86 = sphi 0, %s85
    %s102 = sphi 0, %s86
    %s108 = sphi 0, %s110
    %s111 = sphi 0, %s108
    %s112 = sphi 0, %s111
    %s128 = sphi 0, %s112
  $region4: #{rgcn_link_prediction_forward.5} parent=0 // loop_header_branch
    %19 = sbr.rel (%p17) target = $region8
  $region5: #{rgcn_link_prediction_forward.5} parent=0 // loop_body
    %s21 = ssub.s32 %s16, 1
    %s22 = ssub.s32 %s16, 2
    %s23 = sadd.s32 %s16, 1
    %s24 = ssub.s32 %s16, %s23
    %p25 = scmp.eq.s32.totalorder %s24, 0
    %s27 = sadd.s32 %s26, 1
    %s28 = scalar_select %p25, %s26, %s27
    %p31 = pneg %p25
    %p32 = scmp.eq.s32.totalorder %s16, 1
    %p33 = por %p31, %p32
    %p34 = scmp.ne.s32.totalorder %s26, %s29
    %p35 = scmp.eq.s32.totalorder %s16, 0
    %p36 = por %p34, %p35
    %p37 = scmp.ne.s32.totalorder %s26, %s29
    %p38 = scmp.eq.s32.totalorder %s21, 1
    %p39 = por %p37, %p38
    %p40 = scmp.ne.s32.totalorder %s29, %s30
    %p41 = scmp.eq.s32.totalorder %s21, 0
    %p42 = por %p40, %p41
    %p43 = scmp.ne.s32.totalorder %s29, %s30
    %p44 = scmp.eq.s32.totalorder %s22, 1
    %p45 = por %p43, %p44
    %p47 = scmp.ne.s32.totalorder %s30, %s46
    %p48 = scmp.eq.s32.totalorder %s22, 0
    %p49 = por %p47, %p48
    %s50 = sld [smem:[#allocation3 + %s16]]
    %s51 = sld [smem:[#allocation3 + %s23]]
    %s52 = ssub.s32 %s50, %s51
    %p53 = scmp.eq.s32.totalorder %s52, 0
    %s55 = sadd.s32 %s54, 1
    %s56 = scalar_select %p53, %s54, %s55
    %p59 = pneg %p53
    %p60 = scmp.eq.s32.totalorder %s16, 1
    %p61 = por %p59, %p60
    %p62 = scmp.ne.s32.totalorder %s54, %s57
    %p63 = scmp.eq.s32.totalorder %s16, 0
    %p64 = por %p62, %p63
    %p65 = scmp.ne.s32.totalorder %s54, %s57
    %p66 = scmp.eq.s32.totalorder %s21, 1
    %p67 = por %p65, %p66
    %p68 = scmp.ne.s32.totalorder %s57, %s58
    %p69 = scmp.eq.s32.totalorder %s21, 0
    %p70 = por %p68, %p69
    %p71 = scmp.ne.s32.totalorder %s57, %s58
    %p72 = scmp.eq.s32.totalorder %s22, 1
    %p73 = por %p71, %p72
    %p75 = scmp.ne.s32.totalorder %s58, %s74
    %p76 = scmp.eq.s32.totalorder %s22, 0
    %p77 = por %p75, %p76
    %s78 = sld [smem:[#allocation3 + %s16]]
    %s79 = sld [smem:[#allocation3 + %s23]]
    %s80 = ssub.s32 %s78, %s79
    %p81 = scmp.eq.s32.totalorder %s80, 0
    %s83 = sadd.s32 %s82, 1
    %s84 = scalar_select %p81, %s82, %s83
    %p87 = pneg %p81
    %p88 = scmp.eq.s32.totalorder %s16, 1
    %p89 = por %p87, %p88
    %p90 = scmp.ne.s32.totalorder %s82, %s85
    %p91 = scmp.eq.s32.totalorder %s16, 0
    %p92 = por %p90, %p91
    %p93 = scmp.ne.s32.totalorder %s82, %s85
    %p94 = scmp.eq.s32.totalorder %s21, 1
    %p95 = por %p93, %p94
    %p96 = scmp.ne.s32.totalorder %s85, %s86
    %p97 = scmp.eq.s32.totalorder %s21, 0
    %p98 = por %p96, %p97
    %p99 = scmp.ne.s32.totalorder %s85, %s86
    %p100 = scmp.eq.s32.totalorder %s22, 1
    %p101 = por %p99, %p100
    %p103 = scmp.ne.s32.totalorder %s86, %s102
    %p104 = scmp.eq.s32.totalorder %s22, 0
    %p105 = por %p103, %p104
    %s106 = ssub.s32 %s16, %s23
    %p107 = scmp.eq.s32.totalorder %s106, 0
    %s109 = sadd.s32 %s108, 1
    %s110 = scalar_select %p107, %s108, %s109
    %p113 = pneg %p107
    %p114 = scmp.eq.s32.totalorder %s16, 1
    %p115 = por %p113, %p114
    %p116 = scmp.ne.s32.totalorder %s108, %s111
    %p117 = scmp.eq.s32.totalorder %s16, 0
    %p118 = por %p116, %p117
    %p119 = scmp.ne.s32.totalorder %s108, %s111
    %p120 = scmp.eq.s32.totalorder %s21, 1
    %p121 = por %p119, %p120
    %p122 = scmp.ne.s32.totalorder %s111, %s112
    %p123 = scmp.eq.s32.totalorder %s21, 0
    %p124 = por %p122, %p123
    %p125 = scmp.ne.s32.totalorder %s111, %s112
    %p126 = scmp.eq.s32.totalorder %s22, 1
    %p127 = por %p125, %p126
    %p129 = scmp.ne.s32.totalorder %s112, %s128
    %p130 = scmp.eq.s32.totalorder %s22, 0
    %p131 = por %p129, %p130
    %p132 = scmp.le.s32.totalorder 1, %s16
    %p133 = scmp.lt.s32.totalorder %s16, 3
    %p134 = pnand %p132, %p133
    %p135 = pneg %p134
    // Predicated region
    $region9: #{rgcn_link_prediction_forward.5} parent=5 // pred_check
      _
    $region10: #{rgcn_link_prediction_forward.5} parent=5 // pred_check_branch
      %137 = sbr.rel (%p134) target = $region12
    $region11: #{rgcn_link_prediction_forward.5} parent=5 // pred_region
      %s138 = ssub.s32 %s16, 1
    $region12: #{rgcn_link_prediction_forward.5} parent=5 // pred_fallthru
      _
    %p139 = scmp.lt.s32.totalorder %s16, 2
    // Predicated region
    $region13: #{rgcn_link_prediction_forward.5} parent=5 // pred_check
      %p140 = pneg %p139
    $region14: #{rgcn_link_prediction_forward.5} parent=5 // pred_check_branch
      %142 = sbr.rel (%p140) target = $region16
    $region15: #{rgcn_link_prediction_forward.5} parent=5 // pred_region
      // Predicated region
      $region17: #{rgcn_link_prediction_forward.5} parent=15 // pred_check
        %p143 = pneg %p36
      $region18: #{rgcn_link_prediction_forward.5} parent=15 // pred_check_branch
        %145 = sbr.rel (%p143) target = $region20
      $region19: #{rgcn_link_prediction_forward.5} parent=15 // pred_region
        %s146 = smul.u32 16, %s16
        %p147 = scmp.lt.s32.totalorder %s146, 31
        %s148 = scalar_select %p147, %s146, 31
        %s149 = smul.addr %s148, 4
        %s150 = scalar_lea.vmem %s1, %s149
        %s151 = smul.u32 16, %s16
      $region20: #{rgcn_link_prediction_forward.5} parent=15 // pred_fallthru
        _
      // Predicated region
      $region21: #{rgcn_link_prediction_forward.5} parent=15 // pred_check
        %p152 = pneg %p64
      $region22: #{rgcn_link_prediction_forward.5} parent=15 // pred_check_branch
        %154 = sbr.rel (%p152) target = $region24
      $region23: #{rgcn_link_prediction_forward.5} parent=15 // pred_region
        %s155 = sld [smem:[#allocation3 + %s16]]
        %p156 = scmp.lt.s32.totalorder %s155, 1
        %s157 = scalar_select %p156, %s155, 1
        %s158 = smul.addr %s157, 16
        %s159 = smul.addr %s158, 4
        %s160 = scalar_lea.vmem %s2, %s159
        %s161 = sld [smem:[#allocation3 + %s16]]
      $region24: #{rgcn_link_prediction_forward.5} parent=15 // pred_fallthru
        _
      // Predicated region
      $region25: #{rgcn_link_prediction_forward.5} parent=15 // pred_check
        %p162 = pneg %p92
      $region26: #{rgcn_link_prediction_forward.5} parent=15 // pred_check_branch
        %164 = sbr.rel (%p162) target = $region28
      $region27: #{rgcn_link_prediction_forward.5} parent=15 // pred_region
        %s165 = sld [smem:[#allocation3 + %s16]]
        %p166 = scmp.lt.s32.totalorder %s165, 1
        %s167 = scalar_select %p166, %s165, 1
        %s168 = scalar_lea.vmem %s3, %s167
        %s169 = sld [smem:[#allocation3 + %s16]]
      $region28: #{rgcn_link_prediction_forward.5} parent=15 // pred_fallthru
        _
    $region16: #{rgcn_link_prediction_forward.5} parent=5 // pred_fallthru
      _
    %p170 = scmp.le.s32.totalorder 1, %s16
    %p171 = scmp.lt.s32.totalorder %s16, 3
    %p172 = pnand %p170, %p171
    %p173 = pneg %p172
    // Predicated region
    $region29: #{rgcn_link_prediction_forward.5} parent=5 // pred_check
      _
    $region30: #{rgcn_link_prediction_forward.5} parent=5 // pred_check_branch
      %175 = sbr.rel (%p172) target = $region32
    $region31: #{rgcn_link_prediction_forward.5} parent=5 // pred_region
      %s176 = ssub.s32 %s16, 1
      %s177 = smul.u32 16, %s21
      %p178 = scmp.lt.s32.totalorder %s177, 31
      %s179 = scalar_select %p178, %s177, 31
      %s180 = smul.addr %s179, 4
      %s181 = scalar_lea.vmem %s1, %s180
      %p182 = pneg %p42
      %p183 = pneg %p39
      %s184 = sld [smem:[#allocation3 + %s21]]
      %p185 = scmp.lt.s32.totalorder %s184, 1
      %s186 = scalar_select %p185, %s184, 1
      %s187 = smul.addr %s186, 16
      %s188 = smul.addr %s187, 4
      %s189 = scalar_lea.vmem %s2, %s188
      %p190 = pneg %p70
      %p191 = pneg %p67
      %s192 = sld [smem:[#allocation3 + %s21]]
      %p193 = scmp.lt.s32.totalorder %s192, 1
      %s194 = scalar_select %p193, %s192, 1
      %s195 = scalar_lea.vmem %s3, %s194
      %p196 = pneg %p98
      %p197 = pneg %p95
      %p198 = pneg %p124
      %p199 = pneg %p121
      %s200 = smul.u32 16, %s21
      %p201 = scmp.lt.s32.totalorder %s200, 31
      %s202 = scalar_select %p201, %s200, 31
      %s203 = smul.addr %s202, 4
      %s204 = scalar_lea.vmem %s4, %s203
      %s205 = smul.u32 16, %s21
      %p206 = scmp.lt.s32.totalorder %s205, 31
      %s207 = scalar_select %p206, %s205, 31
      %s208 = smul.addr %s207, 4
      %s209 = scalar_lea.vmem %s1, %s208
      %s210 = smul.u32 16, %s21
      %s211 = sld [smem:[#allocation3 + %s21]]
      %p212 = scmp.lt.s32.totalorder %s211, 1
      %s213 = scalar_select %p212, %s211, 1
      %s214 = smul.addr %s213, 16
      %s215 = smul.addr %s214, 4
      %s216 = scalar_lea.vmem %s2, %s215
      %s217 = sld [smem:[#allocation3 + %s21]]
      %s218 = sld [smem:[#allocation3 + %s21]]
      %p219 = scmp.lt.s32.totalorder %s218, 1
      %s220 = scalar_select %p219, %s218, 1
      %s221 = scalar_lea.vmem %s3, %s220
      %s222 = sld [smem:[#allocation3 + %s21]]
      %s223 = smul.u32 16, %s21
      %p224 = scmp.lt.s32.totalorder %s223, 31
      %s225 = scalar_select %p224, %s223, 31
      %s226 = smul.addr %s225, 4
      %s227 = scalar_lea.vmem %s4, %s226
      %s228 = smul.u32 16, %s21
      %v230 = vld [vmem:[%s209] sm:$0xf]
      %v231 = vld [vmem:[%s209 + $0x4] sm:$0xf]
      %v232 = vld [vmem:[%s209 + $0x8] sm:$0xf]
      %v233 = vld [vmem:[%s209 + $0xc] sm:$0xf]
      %v234 = vld [vmem:[%s209 + $0x10] sm:$0xf]
      %v235 = vld [vmem:[%s209 + $0x14] sm:$0xf]
      %v236 = vld [vmem:[%s209 + $0x18] sm:$0xf]
      %v237 = vld [vmem:[%s209 + $0x1c] sm:$0xf]
      %v238 = vld [vmem:[%s209 + $0x20] sm:$0xf]
      %v239 = vld [vmem:[%s209 + $0x24] sm:$0xf]
      %v240 = vld [vmem:[%s209 + $0x28] sm:$0xf]
      %v241 = vld [vmem:[%s209 + $0x2c] sm:$0xf]
      %v242 = vld [vmem:[%s209 + $0x30] sm:$0xf]
      %v243 = vld [vmem:[%s209 + $0x34] sm:$0xf]
      %v244 = vld [vmem:[%s209 + $0x38] sm:$0xf]
      %v245 = vld [vmem:[%s209 + $0x3c] sm:$0xf]
      %v246 = vld [vmem:[%s216] sm:$0xf]
      %v247 = vld [vmem:[%s216 + $0x4] sm:$0xf]
      %v248 = vld [vmem:[%s216 + $0x8] sm:$0xf]
      %v249 = vld [vmem:[%s216 + $0xc] sm:$0xf]
      %v250 = vld [vmem:[%s216 + $0x10] sm:$0xf]
      %v251 = vld [vmem:[%s216 + $0x14] sm:$0xf]
      %v252 = vld [vmem:[%s216 + $0x18] sm:$0xf]
      %v253 = vld [vmem:[%s216 + $0x1c] sm:$0xf]
      %v254 = vld [vmem:[%s216 + $0x20] sm:$0xf]
      %v255 = vld [vmem:[%s216 + $0x24] sm:$0xf]
      %v256 = vld [vmem:[%s216 + $0x28] sm:$0xf]
      %v257 = vld [vmem:[%s216 + $0x2c] sm:$0xf]
      %v258 = vld [vmem:[%s216 + $0x30] sm:$0xf]
      %v259 = vld [vmem:[%s216 + $0x34] sm:$0xf]
      %v260 = vld [vmem:[%s216 + $0x38] sm:$0xf]
      %v261 = vld [vmem:[%s216 + $0x3c] sm:$0xf]
      %v262 = vld [vmem:[%s221] sm:$0x1]
      %v264 = vlaneseq
      %v265 = vshrl.u32 %v264, 7
      %v266 = vsub.s32 0, %v265
      %v267 = vrot.slane %v262, %v266
      %v285 = vunpack.c.l.b16 %v230
      %v286 = vunpack.c.l.b16 %v231
      %v287 = vunpack.c.l.b16 %v232
      %v288 = vunpack.c.l.b16 %v233
      %v289 = vunpack.c.l.b16 %v234
      %v290 = vunpack.c.l.b16 %v235
      %v291 = vunpack.c.l.b16 %v236
      %v292 = vunpack.c.l.b16 %v237
      %v293 = vunpack.c.l.b16 %v238
      %v294 = vunpack.c.l.b16 %v239
      %v295 = vunpack.c.l.b16 %v240
      %v296 = vunpack.c.l.b16 %v241
      %v297 = vunpack.c.l.b16 %v242
      %v298 = vunpack.c.l.b16 %v243
      %v299 = vunpack.c.l.b16 %v244
      %v300 = vunpack.c.l.b16 %v245
      %v301 = vpack.c.b16 %v286, %v285
      %v302 = vpack.c.b16 %v288, %v287
      %v303 = vpack.c.b16 %v290, %v289
      %v304 = vpack.c.b16 %v292, %v291
      %v305 = vpack.c.b16 %v294, %v293
      %v306 = vpack.c.b16 %v296, %v295
      %v307 = vpack.c.b16 %v298, %v297
      %v308 = vpack.c.b16 %v300, %v299
      %v333 = vunpack.c.l.b16 %v246
      %v334 = vunpack.c.l.b16 %v247
      %v335 = vunpack.c.l.b16 %v248
      %v336 = vunpack.c.l.b16 %v249
      %v337 = vunpack.c.l.b16 %v250
      %v338 = vunpack.c.l.b16 %v251
      %v339 = vunpack.c.l.b16 %v252
      %v340 = vunpack.c.l.b16 %v253
      %v341 = vunpack.c.l.b16 %v254
      %v342 = vunpack.c.l.b16 %v255
      %v343 = vunpack.c.l.b16 %v256
      %v344 = vunpack.c.l.b16 %v257
      %v345 = vunpack.c.l.b16 %v258
      %v346 = vunpack.c.l.b16 %v259
      %v347 = vunpack.c.l.b16 %v260
      %v348 = vunpack.c.l.b16 %v261
      %v349 = vpack.c.b16 %v334, %v333
      %v350 = vpack.c.b16 %v336, %v335
      %v351 = vpack.c.b16 %v338, %v337
      %v352 = vpack.c.b16 %v340, %v339
      %v353 = vpack.c.b16 %v342, %v341
      %v354 = vpack.c.b16 %v344, %v343
      %v355 = vpack.c.b16 %v346, %v345
      %v356 = vpack.c.b16 %v348, %v347
      %365 = vmatprep.subr.bf16.mxu0 0
      %366 = vmatpush1.bf16.msra.mxu0 %v349
      %367 = vmatprep.subr.bf16.mxu0 0
      %368 = vmatpush1.bf16.msra.mxu0 %v350
      %369 = vmatprep.subr.bf16.mxu0 0
      %370 = vmatpush1.bf16.msra.mxu0 %v351
      %371 = vmatprep.subr.bf16.mxu0 0
      %372 = vmatpush1.bf16.msra.mxu0 %v352
      %373 = vmatprep.subr.bf16.mxu0 0
      %374 = vmatpush1.bf16.msra.mxu0 %v353
      %375 = vmatprep.subr.bf16.mxu0 0
      %376 = vmatpush1.bf16.msra.mxu0 %v354
      %377 = vmatprep.subr.bf16.mxu0 0
      %378 = vmatpush1.bf16.msra.mxu0 %v355
      %379 = vmatprep.subr.bf16.mxu0 0
      %380 = vmatpush1.bf16.msra.mxu0 %v356
      %381 = vmatprep.subr.bf16.mxu0 0
      %382 = vmatpush1.bf16.msra.mxu0 0
      %383 = vmatprep.subr.bf16.mxu0 0
      %384 = vmatpush1.bf16.msra.mxu0 0
      %385 = vmatprep.subr.bf16.mxu0 0
      %386 = vmatpush1.bf16.msra.mxu0 0
      %387 = vmatprep.subr.bf16.mxu0 0
      %388 = vmatpush1.bf16.msra.mxu0 0
      %389 = vmatprep.subr.bf16.mxu0 0
      %390 = vmatpush1.bf16.msra.mxu0 0
      %391 = vmatprep.subr.bf16.mxu0 0
      %392 = vmatpush1.bf16.msra.mxu0 0
      %393 = vmatprep.subr.bf16.mxu0 0
      %394 = vmatpush1.bf16.msra.mxu0 0
      %395 = vmatprep.subr.bf16.mxu0 0
      %396 = vmatpush1.bf16.msra.mxu0 0
      %397 = vmatprep.mubr.bf16.mxu0 0
      %398 = vmatmul.mubr.bf16.gmra.mrb[0].mxu0 %v301
      %v399 = vpop.f32.mrb[0].mxu0
      %v400 = vadd.f32 %v267, %v399
      %v401 = vpop.f32.mrb[0].mxu0
      %v402 = vpop.f32.mrb[0].mxu0
      %v403 = vadd.f32 %v267, %v402
      %v404 = vpop.f32.mrb[0].mxu0
      %405 = vmatprep.mubr.bf16.mxu0 0
      %406 = vmatmul.mubr.bf16.gmra.mrb[0].mxu0 %v302
      %v407 = vpop.f32.mrb[0].mxu0
      %v408 = vadd.f32 %v267, %v407
      %v409 = vpop.f32.mrb[0].mxu0
      %v410 = vpop.f32.mrb[0].mxu0
      %v411 = vadd.f32 %v267, %v410
      %v412 = vpop.f32.mrb[0].mxu0
      %413 = vmatprep.mubr.bf16.mxu0 0
      %414 = vmatmul.mubr.bf16.gmra.mrb[0].mxu0 %v303
      %v415 = vpop.f32.mrb[0].mxu0
      %v416 = vadd.f32 %v267, %v415
      %v417 = vpop.f32.mrb[0].mxu0
      %v418 = vpop.f32.mrb[0].mxu0
      %v419 = vadd.f32 %v267, %v418
      %v420 = vpop.f32.mrb[0].mxu0
      %421 = vmatprep.mubr.bf16.mxu0 0
      %422 = vmatmul.mubr.bf16.gmra.mrb[0].mxu0 %v304
      %v423 = vpop.f32.mrb[0].mxu0
      %v424 = vadd.f32 %v267, %v423
      %v425 = vpop.f32.mrb[0].mxu0
      %v426 = vpop.f32.mrb[0].mxu0
      %v427 = vadd.f32 %v267, %v426
      %v428 = vpop.f32.mrb[0].mxu0
      %429 = vmatprep.mubr.bf16.mxu0 0
      %430 = vmatmul.mubr.bf16.gmra.mrb[0].mxu0 %v305
      %v431 = vpop.f32.mrb[0].mxu0
      %v432 = vadd.f32 %v267, %v431
      %v433 = vpop.f32.mrb[0].mxu0
      %v434 = vpop.f32.mrb[0].mxu0
      %v435 = vadd.f32 %v267, %v434
      %v436 = vpop.f32.mrb[0].mxu0
      %437 = vmatprep.mubr.bf16.mxu0 0
      %438 = vmatmul.mubr.bf16.gmra.mrb[0].mxu0 %v306
      %v439 = vpop.f32.mrb[0].mxu0
      %v440 = vadd.f32 %v267, %v439
      %v441 = vpop.f32.mrb[0].mxu0
      %v442 = vpop.f32.mrb[0].mxu0
      %v443 = vadd.f32 %v267, %v442
      %v444 = vpop.f32.mrb[0].mxu0
      %445 = vmatprep.mubr.bf16.mxu0 0
      %446 = vmatmul.mubr.bf16.gmra.mrb[0].mxu0 %v307
      %v447 = vpop.f32.mrb[0].mxu0
      %v448 = vadd.f32 %v267, %v447
      %v449 = vpop.f32.mrb[0].mxu0
      %v450 = vpop.f32.mrb[0].mxu0
      %v451 = vadd.f32 %v267, %v450
      %v452 = vpop.f32.mrb[0].mxu0
      %453 = vmatprep.mubr.bf16.mxu0 0
      %454 = vmatmul.mubr.bf16.gmra.mrb[0].mxu0 %v308
      %v455 = vpop.f32.mrb[0].mxu0
      %v456 = vadd.f32 %v267, %v455
      %v457 = vpop.f32.mrb[0].mxu0
      %v458 = vpop.f32.mrb[0].mxu0
      %v459 = vadd.f32 %v267, %v458
      %v460 = vpop.f32.mrb[0].mxu0
      %461 = vdwg.mxu0
      %v462 = vpack.c.bf16 %v403, %v400
      %v463 = vpack.c.bf16 %v411, %v408
      %v464 = vpack.c.bf16 %v419, %v416
      %v465 = vpack.c.bf16 %v427, %v424
      %v466 = vpack.c.bf16 %v435, %v432
      %v467 = vpack.c.bf16 %v443, %v440
      %v468 = vpack.c.bf16 %v451, %v448
      %v469 = vpack.c.bf16 %v459, %v456
      %v478 = vunpack.c.l.b16 %v462
      %v479 = vunpack.c.h.b16 %v462
      %v480 = vunpack.c.l.b16 %v463
      %v481 = vunpack.c.h.b16 %v463
      %v482 = vunpack.c.l.b16 %v464
      %v483 = vunpack.c.h.b16 %v464
      %v484 = vunpack.c.l.b16 %v465
      %v485 = vunpack.c.h.b16 %v465
      %v486 = vunpack.c.l.b16 %v466
      %v487 = vunpack.c.h.b16 %v466
      %v488 = vunpack.c.l.b16 %v467
      %v489 = vunpack.c.h.b16 %v467
      %v490 = vunpack.c.l.b16 %v468
      %v491 = vunpack.c.h.b16 %v468
      %v492 = vunpack.c.l.b16 %v469
      %v493 = vunpack.c.h.b16 %v469
      %v494 = vpack.c.b16 %v478, %v478
      %v495 = vpack.c.b16 %v479, %v479
      %v496 = vpack.c.b16 %v480, %v480
      %v497 = vpack.c.b16 %v481, %v481
      %v498 = vpack.c.b16 %v482, %v482
      %v499 = vpack.c.b16 %v483, %v483
      %v500 = vpack.c.b16 %v484, %v484
      %v501 = vpack.c.b16 %v485, %v485
      %v502 = vpack.c.b16 %v486, %v486
      %v503 = vpack.c.b16 %v487, %v487
      %v504 = vpack.c.b16 %v488, %v488
      %v505 = vpack.c.b16 %v489, %v489
      %v506 = vpack.c.b16 %v490, %v490
      %v507 = vpack.c.b16 %v491, %v491
      %v508 = vpack.c.b16 %v492, %v492
      %v509 = vpack.c.b16 %v493, %v493
      %526 = vst [vmem:[%s227] sm:$0xf] %v494
      %527 = vst [vmem:[%s227 + $0x4] sm:$0xf] %v495
      %528 = vst [vmem:[%s227 + $0x8] sm:$0xf] %v496
      %529 = vst [vmem:[%s227 + $0xc] sm:$0xf] %v497
      %530 = vst [vmem:[%s227 + $0x10] sm:$0xf] %v498
      %531 = vst [vmem:[%s227 + $0x14] sm:$0xf] %v499
      %532 = vst [vmem:[%s227 + $0x18] sm:$0xf] %v500
      %533 = vst [vmem:[%s227 + $0x1c] sm:$0xf] %v501
      %534 = vst [vmem:[%s227 + $0x20] sm:$0xf] %v502
      %535 = vst [vmem:[%s227 + $0x24] sm:$0xf] %v503
      %536 = vst [vmem:[%s227 + $0x28] sm:$0xf] %v504
      %537 = vst [vmem:[%s227 + $0x2c] sm:$0xf] %v505
      %538 = vst [vmem:[%s227 + $0x30] sm:$0xf] %v506
      %539 = vst [vmem:[%s227 + $0x34] sm:$0xf] %v507
      %540 = vst [vmem:[%s227 + $0x38] sm:$0xf] %v508
      %541 = vst [vmem:[%s227 + $0x3c] sm:$0xf] %v509
      %s542 = smul.u32 16, %s21
      %p543 = scmp.lt.s32.totalorder %s542, 31
      %s544 = scalar_select %p543, %s542, 31
      %s545 = smul.addr %s544, 4
      %s546 = scalar_lea.vmem %s4, %s545
      // Predicated region
      $region33: #{rgcn_link_prediction_forward.5} parent=31 // pred_check
        %p547 = pneg %p121
      $region34: #{rgcn_link_prediction_forward.5} parent=31 // pred_check_branch
        %549 = sbr.rel (%p547) target = $region36
      $region35: #{rgcn_link_prediction_forward.5} parent=31 // pred_region
        %s550 = smul.u32 16, %s21
      $region36: #{rgcn_link_prediction_forward.5} parent=31 // pred_fallthru
        _
    $region32: #{rgcn_link_prediction_forward.5} parent=5 // pred_fallthru
      _
    %p551 = scmp.le.s32.totalorder 2, %s16
    // Predicated region
    $region37: #{rgcn_link_prediction_forward.5} parent=5 // pred_check
      %p552 = pneg %p551
    $region38: #{rgcn_link_prediction_forward.5} parent=5 // pred_check_branch
      %554 = sbr.rel (%p552) target = $region40
    $region39: #{rgcn_link_prediction_forward.5} parent=5 // pred_region
      %s555 = ssub.s32 %s16, 2
      // Predicated region
      $region41: #{rgcn_link_prediction_forward.5} parent=39 // pred_check
        %p556 = pneg %p127
      $region42: #{rgcn_link_prediction_forward.5} parent=39 // pred_check_branch
        %558 = sbr.rel (%p556) target = $region44
      $region43: #{rgcn_link_prediction_forward.5} parent=39 // pred_region
        %s559 = smul.u32 16, %s22
        %p560 = scmp.lt.s32.totalorder %s559, 31
        %s561 = scalar_select %p560, %s559, 31
        %s562 = smul.addr %s561, 4
        %s563 = scalar_lea.vmem %s4, %s562
      $region44: #{rgcn_link_prediction_forward.5} parent=39 // pred_fallthru
        _
    $region40: #{rgcn_link_prediction_forward.5} parent=5 // pred_fallthru
      _
  $region6: #{rgcn_link_prediction_forward.5} parent=0 // loop_footer
    %s20 = sadd.s32 1, %s16
  $region7: #{rgcn_link_prediction_forward.5} parent=0 // loop_footer_branch
    %15 = sbr.rel target = $region3
  $region8: #{rgcn_link_prediction_forward.5} parent=0 // loop_exit
    _

// kernel: rgcn_link_prediction_forward.6
$region0: #{rgcn_link_prediction_forward.6}
  #allocation0 [shape = 'u32[]', space=smem, size = 0x4, offset = 0x4, fixed_abs, tag = 'smem constant byte address 0x4 - core index']
  #allocation1 [shape = 'u32[144,128]{1,0:T(1,128)}', space=vmem, size = 0x12000, scoped, tag = 'internal scratch']
  #allocation2 [shape = 'f32[128,128]{1,0:T(8,128)}', space=vmem, size = 0x10000, scoped, tag = 'scratch operand']
  #allocation3 [shape = 'f32[128,128]{1,0:T(8,128)}', space=vmem, size = 0x10000, scoped, tag = 'scratch operand']
  #allocation4 [shape = 's32[1]{0}', space=sflag, size = 0x4, scoped, tag = 'scoped memory for rgcn_link_prediction_forward.6']
  #allocation5 [shape = 'u8[512]{0}', space=smem, size = 0x200, scoped, tag = 'prefetched SMEM operand 0']
  %s0 = inlined_call_operand.vmem [shape: s32[2], index: 0, kind: input, shape index: {}]
  %s1 = inlined_call_operand.vmem [shape: bf16[2,256,128], index: 1, kind: input, shape index: {}]
  %s2 = inlined_call_operand.vmem [shape: bf16[256,128], index: 2, kind: input, shape index: {}, may-alias: {2,3}]
  %s3 = inlined_call_operand.vmem [shape: bf16[256,128], index: 3, kind: input, shape index: {}, may-alias: {2,3}]
  %s4 = inlined_call_operand.vmem [shape: bf16[2,128,128], index: 4, kind: input, shape index: {}]
  %s5 = inlined_call_operand.vmem [shape: bf16[128,128], index: 5, kind: input, shape index: {}]
  %s6 = inlined_call_operand.vmem [shape: f32[1,128], index: 6, kind: input, shape index: {}]
  %s7 = inlined_call_operand.vmem [shape: bf16[256,128], index: 7, kind: output, shape index: {}]
  %s8 = sld [smem:[#allocation0]]
  $region73: #{rgcn_link_prediction_forward.6} parent=0
    _
  %s10 = ssub.s32 1, %s8
  %s11 = scalar_select 0, %s10, %s8
  %s12 = sshll.u32 %s0, 4
  %s13 = int_to_ptr.vmem [resolvable:$true] %s12
  %15 = dma.vmem_to_smem %s13, 16, [#allocation5], [#allocation4]
  %16 = dma.done [#allocation4], 16
  %17 = sfence
  loop: start=0, step=1, limit=6
  $region2: #{rgcn_link_prediction_forward.6} parent=0 // loop_pre_header
    _
  $region3: #{rgcn_link_prediction_forward.6} parent=0 // loop_header
    %s19 = sphi 0, %s23
    %p20 = scmp.ge.s32.totalorder %s19, 6
    %s26 = sphi 0, %s45
    %s27 = sphi 0, %s41
    %s28 = sphi 0, %s37
    %s29 = sphi 0, %s26
    %s30 = sphi 0, %s27
    %s31 = sphi 0, %s28
    %s32 = sphi 0, %s29
    %s33 = sphi 0, %s30
    %s34 = sphi 0, %s31
    %s52 = sphi 0, %s54
    %s55 = sphi 0, %s52
    %s56 = sphi 0, %s55
    %s72 = sphi 0, %s56
    %s82 = sphi 0, %s84
    %s85 = sphi 0, %s82
    %s86 = sphi 0, %s85
    %s102 = sphi 0, %s86
    %s108 = sphi 0, %s110
    %s111 = sphi 0, %s108
    %s112 = sphi 0, %s111
    %s128 = sphi 0, %s112
    %s134 = sphi 0, %s136
    %s137 = sphi 0, %s134
    %s138 = sphi 0, %s137
    %s154 = sphi 0, %s138
    %s158 = sphi 0, %s158
    %s160 = sphi 0, %s158
    %s161 = sphi 0, %s160
    %s175 = sphi 0, %s161
    %s179 = sphi 0, %s179
    %s181 = sphi 0, %s179
    %s182 = sphi 0, %s181
    %s196 = sphi 0, %s182
    %s202 = sphi 0, %s204
    %s205 = sphi 0, %s202
    %s206 = sphi 0, %s205
    %s222 = sphi 0, %s206
  $region4: #{rgcn_link_prediction_forward.6} parent=0 // loop_header_branch
    %22 = sbr.rel (%p20) target = $region8
  $region5: #{rgcn_link_prediction_forward.6} parent=0 // loop_body
    %s24 = ssub.s32 %s19, 1
    %s25 = ssub.s32 %s19, 2
    %s35 = sadd.s32 1, %s28
    %p36 = scmp.ge.s32.totalorder %s35, 1
    %s37 = scalar_select %p36, 0, %s35
    %s38 = sadd.s32 1, %s27
    %s39 = scalar_select %p36, %s38, %s27
    %p40 = scmp.ge.s32.totalorder %s39, 2
    %s41 = scalar_select %p40, 0, %s39
    %s42 = sadd.s32 1, %s26
    %s43 = scalar_select %p40, %s42, %s26
    %p44 = scmp.ge.s32.totalorder %s43, 2
    %s45 = scalar_select %p44, 0, %s43
    %s46 = ssub.s32 %s27, %s41
    %s47 = ssub.s32 %s26, %s45
    %s48 = sor.u32 %s46, %s47
    %s49 = ssub.s32 %s28, %s37
    %s50 = sor.u32 %s48, %s49
    %p51 = scmp.eq.s32.totalorder %s50, 0
    %s53 = sadd.s32 %s52, 1
    %s54 = scalar_select %p51, %s52, %s53
    %p57 = pneg %p51
    %p58 = scmp.eq.s32.totalorder %s19, 3
    %p59 = por %p57, %p58
    %p60 = scmp.ne.s32.totalorder %s52, %s55
    %p61 = scmp.eq.s32.totalorder %s19, 0
    %p62 = por %p60, %p61
    %p63 = scmp.ne.s32.totalorder %s52, %s55
    %p64 = scmp.eq.s32.totalorder %s24, 3
    %p65 = por %p63, %p64
    %p66 = scmp.ne.s32.totalorder %s55, %s56
    %p67 = scmp.eq.s32.totalorder %s24, 0
    %p68 = por %p66, %p67
    %p69 = scmp.ne.s32.totalorder %s55, %s56
    %p70 = scmp.eq.s32.totalorder %s25, 3
    %p71 = por %p69, %p70
    %p73 = scmp.ne.s32.totalorder %s56, %s72
    %p74 = scmp.eq.s32.totalorder %s25, 0
    %p75 = por %p73, %p74
    %s76 = sld [smem:[#allocation5 + %s27]]
    %s77 = sadd.s32 %s76, %s28
    %s78 = sld [smem:[#allocation5 + %s41]]
    %s79 = sadd.s32 %s78, %s37
    %s80 = ssub.s32 %s77, %s79
    %p81 = scmp.eq.s32.totalorder %s80, 0
    %s83 = sadd.s32 %s82, 1
    %s84 = scalar_select %p81, %s82, %s83
    %p87 = pneg %p81
    %p88 = scmp.eq.s32.totalorder %s19, 3
    %p89 = por %p87, %p88
    %p90 = scmp.ne.s32.totalorder %s82, %s85
    %p91 = scmp.eq.s32.totalorder %s19, 0
    %p92 = por %p90, %p91
    %p93 = scmp.ne.s32.totalorder %s82, %s85
    %p94 = scmp.eq.s32.totalorder %s24, 3
    %p95 = por %p93, %p94
    %p96 = scmp.ne.s32.totalorder %s85, %s86
    %p97 = scmp.eq.s32.totalorder %s24, 0
    %p98 = por %p96, %p97
    %p99 = scmp.ne.s32.totalorder %s85, %s86
    %p100 = scmp.eq.s32.totalorder %s25, 3
    %p101 = por %p99, %p100
    %p103 = scmp.ne.s32.totalorder %s86, %s102
    %p104 = scmp.eq.s32.totalorder %s25, 0
    %p105 = por %p103, %p104
    %s106 = ssub.s32 %s26, %s45
    %p107 = scmp.eq.s32.totalorder %s106, 0
    %s109 = sadd.s32 %s108, 1
    %s110 = scalar_select %p107, %s108, %s109
    %p113 = pneg %p107
    %p114 = scmp.eq.s32.totalorder %s19, 3
    %p115 = por %p113, %p114
    %p116 = scmp.ne.s32.totalorder %s108, %s111
    %p117 = scmp.eq.s32.totalorder %s19, 0
    %p118 = por %p116, %p117
    %p119 = scmp.ne.s32.totalorder %s108, %s111
    %p120 = scmp.eq.s32.totalorder %s24, 3
    %p121 = por %p119, %p120
    %p122 = scmp.ne.s32.totalorder %s111, %s112
    %p123 = scmp.eq.s32.totalorder %s24, 0
    %p124 = por %p122, %p123
    %p125 = scmp.ne.s32.totalorder %s111, %s112
    %p126 = scmp.eq.s32.totalorder %s25, 3
    %p127 = por %p125, %p126
    %p129 = scmp.ne.s32.totalorder %s112, %s128
    %p130 = scmp.eq.s32.totalorder %s25, 0
    %p131 = por %p129, %p130
    %s132 = ssub.s32 %s27, %s41
    %p133 = scmp.eq.s32.totalorder %s132, 0
    %s135 = sadd.s32 %s134, 1
    %s136 = scalar_select %p133, %s134, %s135
    %p139 = pneg %p133
    %p140 = scmp.eq.s32.totalorder %s19, 3
    %p141 = por %p139, %p140
    %p142 = scmp.ne.s32.totalorder %s134, %s137
    %p143 = scmp.eq.s32.totalorder %s19, 0
    %p144 = por %p142, %p143
    %p145 = scmp.ne.s32.totalorder %s134, %s137
    %p146 = scmp.eq.s32.totalorder %s24, 3
    %p147 = por %p145, %p146
    %p148 = scmp.ne.s32.totalorder %s137, %s138
    %p149 = scmp.eq.s32.totalorder %s24, 0
    %p150 = por %p148, %p149
    %p151 = scmp.ne.s32.totalorder %s137, %s138
    %p152 = scmp.eq.s32.totalorder %s25, 3
    %p153 = por %p151, %p152
    %p155 = scmp.ne.s32.totalorder %s138, %s154
    %p156 = scmp.eq.s32.totalorder %s25, 0
    %p157 = por %p155, %p156
    %s159 = sadd.s32 %s158, 1
    %p162 = scmp.eq.s32.totalorder %s19, 3
    %p163 = scmp.ne.s32.totalorder %s158, %s160
    %p164 = scmp.eq.s32.totalorder %s19, 0
    %p165 = por %p163, %p164
    %p166 = scmp.ne.s32.totalorder %s158, %s160
    %p167 = scmp.eq.s32.totalorder %s24, 3
    %p168 = por %p166, %p167
    %p169 = scmp.ne.s32.totalorder %s160, %s161
    %p170 = scmp.eq.s32.totalorder %s24, 0
    %p171 = por %p169, %p170
    %p172 = scmp.ne.s32.totalorder %s160, %s161
    %p173 = scmp.eq.s32.totalorder %s25, 3
    %p174 = por %p172, %p173
    %p176 = scmp.ne.s32.totalorder %s161, %s175
    %p177 = scmp.eq.s32.totalorder %s25, 0
    %p178 = por %p176, %p177
    %s180 = sadd.s32 %s179, 1
    %p183 = scmp.eq.s32.totalorder %s19, 3
    %p184 = scmp.ne.s32.totalorder %s179, %s181
    %p185 = scmp.eq.s32.totalorder %s19, 0
    %p186 = por %p184, %p185
    %p187 = scmp.ne.s32.totalorder %s179, %s181
    %p188 = scmp.eq.s32.totalorder %s24, 3
    %p189 = por %p187, %p188
    %p190 = scmp.ne.s32.totalorder %s181, %s182
    %p191 = scmp.eq.s32.totalorder %s24, 0
    %p192 = por %p190, %p191
    %p193 = scmp.ne.s32.totalorder %s181, %s182
    %p194 = scmp.eq.s32.totalorder %s25, 3
    %p195 = por %p193, %p194
    %p197 = scmp.ne.s32.totalorder %s182, %s196
    %p198 = scmp.eq.s32.totalorder %s25, 0
    %p199 = por %p197, %p198
    %s200 = ssub.s32 %s26, %s45
    %p201 = scmp.eq.s32.totalorder %s200, 0
    %s203 = sadd.s32 %s202, 1
    %s204 = scalar_select %p201, %s202, %s203
    %p207 = pneg %p201
    %p208 = scmp.eq.s32.totalorder %s19, 3
    %p209 = por %p207, %p208
    %p210 = scmp.ne.s32.totalorder %s202, %s205
    %p211 = scmp.eq.s32.totalorder %s19, 0
    %p212 = por %p210, %p211
    %p213 = scmp.ne.s32.totalorder %s202, %s205
    %p214 = scmp.eq.s32.totalorder %s24, 3
    %p215 = por %p213, %p214
    %p216 = scmp.ne.s32.totalorder %s205, %s206
    %p217 = scmp.eq.s32.totalorder %s24, 0
    %p218 = por %p216, %p217
    %p219 = scmp.ne.s32.totalorder %s205, %s206
    %p220 = scmp.eq.s32.totalorder %s25, 3
    %p221 = por %p219, %p220
    %p223 = scmp.ne.s32.totalorder %s206, %s222
    %p224 = scmp.eq.s32.totalorder %s25, 0
    %p225 = por %p223, %p224
    %p226 = scmp.le.s32.totalorder 1, %s19
    %p227 = scmp.lt.s32.totalorder %s19, 5
    %p228 = pnand %p226, %p227
    %p229 = pneg %p228
    // Predicated region
    $region9: #{rgcn_link_prediction_forward.6} parent=5 // pred_check
      _
    $region10: #{rgcn_link_prediction_forward.6} parent=5 // pred_check_branch
      %231 = sbr.rel (%p228) target = $region12
    $region11: #{rgcn_link_prediction_forward.6} parent=5 // pred_region
      %s232 = ssub.s32 %s19, 1
      // Predicated region
      $region13: #{rgcn_link_prediction_forward.6} parent=11 // pred_check
        %p233 = pneg %p171
      $region14: #{rgcn_link_prediction_forward.6} parent=11 // pred_check_branch
        %235 = sbr.rel (%p233) target = $region16
      $region15: #{rgcn_link_prediction_forward.6} parent=11 // pred_region
        _
      $region16: #{rgcn_link_prediction_forward.6} parent=11 // pred_fallthru
        _
      // Predicated region
      $region17: #{rgcn_link_prediction_forward.6} parent=11 // pred_check
        %p236 = pneg %p192
      $region18: #{rgcn_link_prediction_forward.6} parent=11 // pred_check_branch
        %238 = sbr.rel (%p236) target = $region20
      $region19: #{rgcn_link_prediction_forward.6} parent=11 // pred_region
        _
      $region20: #{rgcn_link_prediction_forward.6} parent=11 // pred_fallthru
        _
    $region12: #{rgcn_link_prediction_forward.6} parent=5 // pred_fallthru
      _
    %p239 = scmp.lt.s32.totalorder %s19, 4
    // Predicated region
    $region21: #{rgcn_link_prediction_forward.6} parent=5 // pred_check
      %p240 = pneg %p239
    $region22: #{rgcn_link_prediction_forward.6} parent=5 // pred_check_branch
      %242 = sbr.rel (%p240) target = $region24
    $region23: #{rgcn_link_prediction_forward.6} parent=5 // pred_region
      // Predicated region
      $region25: #{rgcn_link_prediction_forward.6} parent=23 // pred_check
        %p243 = pneg %p62
      $region26: #{rgcn_link_prediction_forward.6} parent=23 // pred_check_branch
        %245 = sbr.rel (%p243) target = $region28
      $region27: #{rgcn_link_prediction_forward.6} parent=23 // pred_region
        %s246 = smul.u32 16, %s26
        %p247 = scmp.lt.s32.totalorder %s27, 1
        %s248 = scalar_select %p247, %s27, 1
        %p249 = scmp.lt.s32.totalorder %s246, 31
        %s250 = scalar_select %p249, %s246, 31
        %p251 = scmp.lt.s32.totalorder %s28, 0
        %s252 = scalar_select %p251, %s28, 0
        %s253 = sadd.s32 %s252, %s250
        %s254 = smul.addr %s248, 32
        %s255 = sadd.s32 %s253, %s254
        %s256 = smul.addr %s255, 4
        %s257 = scalar_lea.vmem %s1, %s256
        %s258 = smul.u32 16, %s26
      $region28: #{rgcn_link_prediction_forward.6} parent=23 // pred_fallthru
        _
      // Predicated region
      $region29: #{rgcn_link_prediction_forward.6} parent=23 // pred_check
        %p259 = pneg %p92
      $region30: #{rgcn_link_prediction_forward.6} parent=23 // pred_check_branch
        %261 = sbr.rel (%p259) target = $region32
      $region31: #{rgcn_link_prediction_forward.6} parent=23 // pred_region
        %s262 = sld [smem:[#allocation5 + %s27]]
        %s263 = sadd.s32 %s262, %s28
        %s264 = smul.u32 16, %s263
        %p265 = scmp.lt.s32.totalorder %s264, 31
        %s266 = scalar_select %p265, %s264, 31
        %s267 = smul.addr %s266, 4
        %s268 = scalar_lea.vmem %s2, %s267
        %s269 = sld [smem:[#allocation5 + %s27]]
        %s270 = sadd.s32 %s269, %s28
        %s271 = smul.u32 16, %s270
      $region32: #{rgcn_link_prediction_forward.6} parent=23 // pred_fallthru
        _
      // Predicated region
      $region33: #{rgcn_link_prediction_forward.6} parent=23 // pred_check
        %p272 = pneg %p118
      $region34: #{rgcn_link_prediction_forward.6} parent=23 // pred_check_branch
        %274 = sbr.rel (%p272) target = $region36
      $region35: #{rgcn_link_prediction_forward.6} parent=23 // pred_region
        %s275 = smul.u32 16, %s26
        %p276 = scmp.lt.s32.totalorder %s275, 31
        %s277 = scalar_select %p276, %s275, 31
        %s278 = smul.addr %s277, 4
        %s279 = scalar_lea.vmem %s3, %s278
        %s280 = smul.u32 16, %s26
      $region36: #{rgcn_link_prediction_forward.6} parent=23 // pred_fallthru
        _
      // Predicated region
      $region37: #{rgcn_link_prediction_forward.6} parent=23 // pred_check
        %p281 = pneg %p144
      $region38: #{rgcn_link_prediction_forward.6} parent=23 // pred_check_branch
        %283 = sbr.rel (%p281) target = $region40
      $region39: #{rgcn_link_prediction_forward.6} parent=23 // pred_region
        %p284 = scmp.lt.s32.totalorder %s27, 1
        %s285 = scalar_select %p284, %s27, 1
        %s286 = smul.addr %s285, 16
        %s287 = smul.addr %s286, 4
        %s288 = scalar_lea.vmem %s4, %s287
      $region40: #{rgcn_link_prediction_forward.6} parent=23 // pred_fallthru
        _
    $region24: #{rgcn_link_prediction_forward.6} parent=5 // pred_fallthru
      _
    %p289 = scmp.le.s32.totalorder 1, %s19
    %p290 = scmp.lt.s32.totalorder %s19, 5
    %p291 = pnand %p289, %p290
    %p292 = pneg %p291
    // Predicated region
    $region41: #{rgcn_link_prediction_forward.6} parent=5 // pred_check
      _
    $region42: #{rgcn_link_prediction_forward.6} parent=5 // pred_check_branch
      %294 = sbr.rel (%p291) target = $region44
    $region43: #{rgcn_link_prediction_forward.6} parent=5 // pred_region
      %s295 = ssub.s32 %s19, 1
      %s296 = smul.u32 16, %s29
      %p297 = scmp.lt.s32.totalorder %s30, 1
      %s298 = scalar_select %p297, %s30, 1
      %p299 = scmp.lt.s32.totalorder %s296, 31
      %s300 = scalar_select %p299, %s296, 31
      %p301 = scmp.lt.s32.totalorder %s31, 0
      %s302 = scalar_select %p301, %s31, 0
      %s303 = sadd.s32 %s302, %s300
      %s304 = smul.addr %s298, 32
      %s305 = sadd.s32 %s303, %s304
      %s306 = smul.addr %s305, 4
      %s307 = scalar_lea.vmem %s1, %s306
      %p308 = pneg %p68
      %p309 = pneg %p65
      %s310 = sld [smem:[#allocation5 + %s30]]
      %s311 = sadd.s32 %s310, %s31
      %s312 = smul.u32 16, %s311
      %p313 = scmp.lt.s32.totalorder %s312, 31
      %s314 = scalar_select %p313, %s312, 31
      %s315 = smul.addr %s314, 4
      %s316 = scalar_lea.vmem %s2, %s315
      %p317 = pneg %p98
      %p318 = pneg %p95
      %s319 = smul.u32 16, %s29
      %p320 = scmp.lt.s32.totalorder %s319, 31
      %s321 = scalar_select %p320, %s319, 31
      %s322 = smul.addr %s321, 4
      %s323 = scalar_lea.vmem %s3, %s322
      %p324 = pneg %p124
      %p325 = pneg %p121
      %p326 = scmp.lt.s32.totalorder %s30, 1
      %s327 = scalar_select %p326, %s30, 1
      %s328 = smul.addr %s327, 16
      %s329 = smul.addr %s328, 4
      %s330 = scalar_lea.vmem %s4, %s329
      %p331 = pneg %p150
      %p332 = pneg %p147
      %p333 = pneg %p171
      %p334 = pneg %p168
      %p335 = pneg %p192
      %p336 = pneg %p189
      %p337 = pneg %p218
      %p338 = pneg %p215
      %s339 = smul.u32 16, %s29
      %p340 = scmp.lt.s32.totalorder %s339, 31
      %s341 = scalar_select %p340, %s339, 31
      %s342 = smul.addr %s341, 4
      %s343 = scalar_lea.vmem %s7, %s342
      %s344 = smul.u32 16, %s29
      %p345 = scmp.lt.s32.totalorder %s30, 1
      %s346 = scalar_select %p345, %s30, 1
      %p347 = scmp.lt.s32.totalorder %s344, 31
      %s348 = scalar_select %p347, %s344, 31
      %p349 = scmp.lt.s32.totalorder %s31, 0
      %s350 = scalar_select %p349, %s31, 0
      %s351 = sadd.s32 %s350, %s348
      %s352 = smul.addr %s346, 32
      %s353 = sadd.s32 %s351, %s352
      %s354 = smul.addr %s353, 4
      %s355 = scalar_lea.vmem %s1, %s354
      %s356 = smul.u32 16, %s29
      %s357 = sld [smem:[#allocation5 + %s30]]
      %s358 = sadd.s32 %s357, %s31
      %s359 = smul.u32 16, %s358
      %p360 = scmp.lt.s32.totalorder %s359, 31
      %s361 = scalar_select %p360, %s359, 31
      %s362 = smul.addr %s361, 4
      %s363 = scalar_lea.vmem %s2, %s362
      %s364 = sld [smem:[#allocation5 + %s30]]
      %s365 = sadd.s32 %s364, %s31
      %s366 = smul.u32 16, %s365
      %s367 = smul.u32 16, %s29
      %p368 = scmp.lt.s32.totalorder %s367, 31
      %s369 = scalar_select %p368, %s367, 31
      %s370 = smul.addr %s369, 4
      %s371 = scalar_lea.vmem %s3, %s370
      %s372 = smul.u32 16, %s29
      %p373 = scmp.lt.s32.totalorder %s30, 1
      %s374 = scalar_select %p373, %s30, 1
      %s375 = smul.addr %s374, 16
      %s376 = smul.addr %s375, 4
      %s377 = scalar_lea.vmem %s4, %s376
      %s378 = smul.u32 16, %s29
      %p379 = scmp.lt.s32.totalorder %s378, 31
      %s380 = scalar_select %p379, %s378, 31
      %s381 = smul.addr %s380, 4
      %s382 = scalar_lea.vmem %s7, %s381
      %s383 = smul.u32 16, %s29
      %p385 = scmp.eq.s32.totalorder %s30, 0
      %p386 = scmp.eq.s32.totalorder %s31, 0
      %p387 = pnand %p385, %p386
      %p388 = pneg %p387
      // Predicated region
      $region45: #{rgcn_link_prediction_forward.6} parent=43 // pred_check
        _
      $region46: #{rgcn_link_prediction_forward.6} parent=43 // pred_check_branch
        %390 = sbr.rel (%p387) target = $region48
      $region47: #{rgcn_link_prediction_forward.6} parent=43 // pred_region
        %v391 = vld [vmem:[%s371] sm:$0xf]
        %v392 = vld [vmem:[%s371 + $0x4] sm:$0xf]
        %v393 = vld [vmem:[%s371 + $0x8] sm:$0xf]
        %v394 = vld [vmem:[%s371 + $0xc] sm:$0xf]
        %v395 = vld [vmem:[%s371 + $0x10] sm:$0xf]
        %v396 = vld [vmem:[%s371 + $0x14] sm:$0xf]
        %v397 = vld [vmem:[%s371 + $0x18] sm:$0xf]
        %v398 = vld [vmem:[%s371 + $0x1c] sm:$0xf]
        %v399 = vld [vmem:[%s371 + $0x20] sm:$0xf]
        %v400 = vld [vmem:[%s371 + $0x24] sm:$0xf]
        %v401 = vld [vmem:[%s371 + $0x28] sm:$0xf]
        %v402 = vld [vmem:[%s371 + $0x2c] sm:$0xf]
        %v403 = vld [vmem:[%s371 + $0x30] sm:$0xf]
        %v404 = vld [vmem:[%s371 + $0x34] sm:$0xf]
        %v405 = vld [vmem:[%s371 + $0x38] sm:$0xf]
        %v406 = vld [vmem:[%s371 + $0x3c] sm:$0xf]
        %v407 = vld [vmem:[%s5] sm:$0xf]
        %v408 = vld [vmem:[%s5 + $0x4] sm:$0xf]
        %v409 = vld [vmem:[%s5 + $0x8] sm:$0xf]
        %v410 = vld [vmem:[%s5 + $0xc] sm:$0xf]
        %v411 = vld [vmem:[%s5 + $0x10] sm:$0xf]
        %v412 = vld [vmem:[%s5 + $0x14] sm:$0xf]
        %v413 = vld [vmem:[%s5 + $0x18] sm:$0xf]
        %v414 = vld [vmem:[%s5 + $0x1c] sm:$0xf]
        %v415 = vld [vmem:[%s5 + $0x20] sm:$0xf]
        %v416 = vld [vmem:[%s5 + $0x24] sm:$0xf]
        %v417 = vld [vmem:[%s5 + $0x28] sm:$0xf]
        %v418 = vld [vmem:[%s5 + $0x2c] sm:$0xf]
        %v419 = vld [vmem:[%s5 + $0x30] sm:$0xf]
        %v420 = vld [vmem:[%s5 + $0x34] sm:$0xf]
        %v421 = vld [vmem:[%s5 + $0x38] sm:$0xf]
        %v422 = vld [vmem:[%s5 + $0x3c] sm:$0xf]
        %v423 = vld [vmem:[%s6] sm:$0x1]
        %v425 = vlaneseq
        %v426 = vshrl.u32 %v425, 7
        %v427 = vsub.s32 0, %v426
        %v428 = vrot.slane %v423, %v427
        %v446 = vunpack.c.l.b16 %v391
        %v447 = vunpack.c.l.b16 %v392
        %v448 = vunpack.c.l.b16 %v393
        %v449 = vunpack.c.l.b16 %v394
        %v450 = vunpack.c.l.b16 %v395
        %v451 = vunpack.c.l.b16 %v396
        %v452 = vunpack.c.l.b16 %v397
        %v453 = vunpack.c.l.b16 %v398
        %v454 = vunpack.c.l.b16 %v399
        %v455 = vunpack.c.l.b16 %v400
        %v456 = vunpack.c.l.b16 %v401
        %v457 = vunpack.c.l.b16 %v402
        %v458 = vunpack.c.l.b16 %v403
        %v459 = vunpack.c.l.b16 %v404
        %v460 = vunpack.c.l.b16 %v405
        %v461 = vunpack.c.l.b16 %v406
        %v462 = vpack.c.b16 %v447, %v446
        %v463 = vpack.c.b16 %v449, %v448
        %v464 = vpack.c.b16 %v451, %v450
        %v465 = vpack.c.b16 %v453, %v452
        %v466 = vpack.c.b16 %v455, %v454
        %v467 = vpack.c.b16 %v457, %v456
        %v468 = vpack.c.b16 %v459, %v458
        %v469 = vpack.c.b16 %v461, %v460
        %v494 = vunpack.c.l.b16 %v407
        %v495 = vunpack.c.l.b16 %v408
        %v496 = vunpack.c.l.b16 %v409
        %v497 = vunpack.c.l.b16 %v410
        %v498 = vunpack.c.l.b16 %v411
        %v499 = vunpack.c.l.b16 %v412
        %v500 = vunpack.c.l.b16 %v413
        %v501 = vunpack.c.l.b16 %v414
        %v502 = vunpack.c.l.b16 %v415
        %v503 = vunpack.c.l.b16 %v416
        %v504 = vunpack.c.l.b16 %v417
        %v505 = vunpack.c.l.b16 %v418
        %v506 = vunpack.c.l.b16 %v419
        %v507 = vunpack.c.l.b16 %v420
        %v508 = vunpack.c.l.b16 %v421
        %v509 = vunpack.c.l.b16 %v422
        %v510 = vpack.c.b16 %v495, %v494
        %v511 = vpack.c.b16 %v497, %v496
        %v512 = vpack.c.b16 %v499, %v498
        %v513 = vpack.c.b16 %v501, %v500
        %v514 = vpack.c.b16 %v503, %v502
        %v515 = vpack.c.b16 %v505, %v504
        %v516 = vpack.c.b16 %v507, %v506
        %v517 = vpack.c.b16 %v509, %v508
        %526 = vmatprep.subr.bf16.mxu0 0
        %527 = vmatpush1.bf16.msra.mxu0 %v510
        %528 = vmatprep.subr.bf16.mxu0 0
        %529 = vmatpush1.bf16.msra.mxu0 %v511
        %530 = vmatprep.subr.bf16.mxu0 0
        %531 = vmatpush1.bf16.msra.mxu0 %v512
        %532 = vmatprep.subr.bf16.mxu0 0
        %533 = vmatpush1.bf16.msra.mxu0 %v513
        %534 = vmatprep.subr.bf16.mxu0 0
        %535 = vmatpush1.bf16.msra.mxu0 %v514
        %536 = vmatprep.subr.bf16.mxu0 0
        %537 = vmatpush1.bf16.msra.mxu0 %v515
        %538 = vmatprep.subr.bf16.mxu0 0
        %539 = vmatpush1.bf16.msra.mxu0 %v516
        %540 = vmatprep.subr.bf16.mxu0 0
        %541 = vmatpush1.bf16.msra.mxu0 %v517
        %542 = vmatprep.subr.bf16.mxu0 0
        %543 = vmatpush1.bf16.msra.mxu0 0
        %544 = vmatprep.subr.bf16.mxu0 0
        %545 = vmatpush1.bf16.msra.mxu0 0
        %546 = vmatprep.subr.bf16.mxu0 0
        %547 = vmatpush1.bf16.msra.mxu0 0
        %548 = vmatprep.subr.bf16.mxu0 0
        %549 = vmatpush1.bf16.msra.mxu0 0
        %550 = vmatprep.subr.bf16.mxu0 0
        %551 = vmatpush1.bf16.msra.mxu0 0
        %552 = vmatprep.subr.bf16.mxu0 0
        %553 = vmatpush1.bf16.msra.mxu0 0
        %554 = vmatprep.subr.bf16.mxu0 0
        %555 = vmatpush1.bf16.msra.mxu0 0
        %556 = vmatprep.subr.bf16.mxu0 0
        %557 = vmatpush1.bf16.msra.mxu0 0
        %558 = vmatprep.mubr.bf16.mxu0 0
        %559 = vmatmul.mubr.bf16.gmra.mrb[0].mxu0 %v462
        %v560 = vpop.f32.mrb[0].mxu0
        %v561 = vadd.f32 %v428, %v560
        %v562 = vpop.f32.mrb[0].mxu0
        %v563 = vpop.f32.mrb[0].mxu0
        %v564 = vadd.f32 %v428, %v563
        %v565 = vpop.f32.mrb[0].mxu0
        %566 = vmatprep.mubr.bf16.mxu0 0
        %567 = vmatmul.mubr.bf16.gmra.mrb[0].mxu0 %v463
        %v568 = vpop.f32.mrb[0].mxu0
        %v569 = vadd.f32 %v428, %v568
        %v570 = vpop.f32.mrb[0].mxu0
        %v571 = vpop.f32.mrb[0].mxu0
        %v572 = vadd.f32 %v428, %v571
        %v573 = vpop.f32.mrb[0].mxu0
        %574 = vmatprep.mubr.bf16.mxu0 0
        %575 = vmatmul.mubr.bf16.gmra.mrb[0].mxu0 %v464
        %v576 = vpop.f32.mrb[0].mxu0
        %v577 = vadd.f32 %v428, %v576
        %v578 = vpop.f32.mrb[0].mxu0
        %v579 = vpop.f32.mrb[0].mxu0
        %v580 = vadd.f32 %v428, %v579
        %v581 = vpop.f32.mrb[0].mxu0
        %582 = vmatprep.mubr.bf16.mxu0 0
        %583 = vmatmul.mubr.bf16.gmra.mrb[0].mxu0 %v465
        %v584 = vpop.f32.mrb[0].mxu0
        %v585 = vadd.f32 %v428, %v584
        %v586 = vpop.f32.mrb[0].mxu0
        %v587 = vpop.f32.mrb[0].mxu0
        %v588 = vadd.f32 %v428, %v587
        %v589 = vpop.f32.mrb[0].mxu0
        %590 = vmatprep.mubr.bf16.mxu0 0
        %591 = vmatmul.mubr.bf16.gmra.mrb[0].mxu0 %v466
        %v592 = vpop.f32.mrb[0].mxu0
        %v593 = vadd.f32 %v428, %v592
        %v594 = vpop.f32.mrb[0].mxu0
        %v595 = vpop.f32.mrb[0].mxu0
        %v596 = vadd.f32 %v428, %v595
        %v597 = vpop.f32.mrb[0].mxu0
        %598 = vmatprep.mubr.bf16.mxu0 0
        %599 = vmatmul.mubr.bf16.gmra.mrb[0].mxu0 %v467
        %v600 = vpop.f32.mrb[0].mxu0
        %v601 = vadd.f32 %v428, %v600
        %v602 = vpop.f32.mrb[0].mxu0
        %v603 = vpop.f32.mrb[0].mxu0
        %v604 = vadd.f32 %v428, %v603
        %v605 = vpop.f32.mrb[0].mxu0
        %606 = vmatprep.mubr.bf16.mxu0 0
        %607 = vmatmul.mubr.bf16.gmra.mrb[0].mxu0 %v468
        %v608 = vpop.f32.mrb[0].mxu0
        %v609 = vadd.f32 %v428, %v608
        %v610 = vpop.f32.mrb[0].mxu0
        %v611 = vpop.f32.mrb[0].mxu0
        %v612 = vadd.f32 %v428, %v611
        %v613 = vpop.f32.mrb[0].mxu0
        %614 = vmatprep.mubr.bf16.mxu0 0
        %615 = vmatmul.mubr.bf16.gmra.mrb[0].mxu0 %v469
        %v616 = vpop.f32.mrb[0].mxu0
        %v617 = vadd.f32 %v428, %v616
        %v618 = vpop.f32.mrb[0].mxu0
        %v619 = vpop.f32.mrb[0].mxu0
        %v620 = vadd.f32 %v428, %v619
        %v621 = vpop.f32.mrb[0].mxu0
        %622 = vdwg.mxu0
        %623 = vst [vmem:[#allocation3] sm:$0xff] %v561
        %624 = vst [vmem:[#allocation3 + $0x8] sm:$0xff] %v564
        %625 = vst [vmem:[#allocation3 + $0x10] sm:$0xff] %v569
        %626 = vst [vmem:[#allocation3 + $0x18] sm:$0xff] %v572
        %627 = vst [vmem:[#allocation3 + $0x20] sm:$0xff] %v577
        %628 = vst [vmem:[#allocation3 + $0x28] sm:$0xff] %v580
        %629 = vst [vmem:[#allocation3 + $0x30] sm:$0xff] %v585
        %630 = vst [vmem:[#allocation3 + $0x38] sm:$0xff] %v588
        %631 = vst [vmem:[#allocation3 + $0x40] sm:$0xff] %v593
        %632 = vst [vmem:[#allocation3 + $0x48] sm:$0xff] %v596
        %633 = vst [vmem:[#allocation3 + $0x50] sm:$0xff] %v601
        %634 = vst [vmem:[#allocation3 + $0x58] sm:$0xff] %v604
        %635 = vst [vmem:[#allocation3 + $0x60] sm:$0xff] %v609
        %636 = vst [vmem:[#allocation3 + $0x68] sm:$0xff] %v612
        %637 = vst [vmem:[#allocation3 + $0x70] sm:$0xff] %v617
        %638 = vst [vmem:[#allocation3 + $0x78] sm:$0xff] %v620
      $region48: #{rgcn_link_prediction_forward.6} parent=43 // pred_fallthru
        _
      // Predicated region
      $region49: #{rgcn_link_prediction_forward.6} parent=43 // pred_check
        %p639 = pneg %p386
      $region50: #{rgcn_link_prediction_forward.6} parent=43 // pred_check_branch
        %641 = sbr.rel (%p639) target = $region52
      $region51: #{rgcn_link_prediction_forward.6} parent=43 // pred_region
        %642 = vst [vmem:[#allocation2] sm:$0xff] 0.0
        %643 = vst [vmem:[#allocation2 + $0x8] sm:$0xff] 0.0
        %644 = vst [vmem:[#allocation2 + $0x10] sm:$0xff] 0.0
        %645 = vst [vmem:[#allocation2 + $0x18] sm:$0xff] 0.0
        %646 = vst [vmem:[#allocation2 + $0x20] sm:$0xff] 0.0
        %647 = vst [vmem:[#allocation2 + $0x28] sm:$0xff] 0.0
        %648 = vst [vmem:[#allocation2 + $0x30] sm:$0xff] 0.0
        %649 = vst [vmem:[#allocation2 + $0x38] sm:$0xff] 0.0
        %650 = vst [vmem:[#allocation2 + $0x40] sm:$0xff] 0.0
        %651 = vst [vmem:[#allocation2 + $0x48] sm:$0xff] 0.0
        %652 = vst [vmem:[#allocation2 + $0x50] sm:$0xff] 0.0
        %653 = vst [vmem:[#allocation2 + $0x58] sm:$0xff] 0.0
        %654 = vst [vmem:[#allocation2 + $0x60] sm:$0xff] 0.0
        %655 = vst [vmem:[#allocation2 + $0x68] sm:$0xff] 0.0
        %656 = vst [vmem:[#allocation2 + $0x70] sm:$0xff] 0.0
        %657 = vst [vmem:[#allocation2 + $0x78] sm:$0xff] 0.0
      $region52: #{rgcn_link_prediction_forward.6} parent=43 // pred_fallthru
        _
      %v658 = vld [vmem:[#allocation2] sm:$0xff]
      %v659 = vld [vmem:[#allocation2 + $0x8] sm:$0xff]
      %v660 = vld [vmem:[#allocation2 + $0x10] sm:$0xff]
      %v661 = vld [vmem:[#allocation2 + $0x18] sm:$0xff]
      %v662 = vld [vmem:[#allocation2 + $0x20] sm:$0xff]
      %v663 = vld [vmem:[#allocation2 + $0x28] sm:$0xff]
      %v664 = vld [vmem:[#allocation2 + $0x30] sm:$0xff]
      %v665 = vld [vmem:[#allocation2 + $0x38] sm:$0xff]
      %v666 = vld [vmem:[#allocation2 + $0x40] sm:$0xff]
      %v667 = vld [vmem:[#allocation2 + $0x48] sm:$0xff]
      %v668 = vld [vmem:[#allocation2 + $0x50] sm:$0xff]
      %v669 = vld [vmem:[#allocation2 + $0x58] sm:$0xff]
      %v670 = vld [vmem:[#allocation2 + $0x60] sm:$0xff]
      %v671 = vld [vmem:[#allocation2 + $0x68] sm:$0xff]
      %v672 = vld [vmem:[#allocation2 + $0x70] sm:$0xff]
      %v673 = vld [vmem:[#allocation2 + $0x78] sm:$0xff]
      %v674 = vld [vmem:[%s355] sm:$0xf]
      %v675 = vld [vmem:[%s355 + $0x4] sm:$0xf]
      %v676 = vld [vmem:[%s355 + $0x8] sm:$0xf]
      %v677 = vld [vmem:[%s355 + $0xc] sm:$0xf]
      %v678 = vld [vmem:[%s355 + $0x10] sm:$0xf]
      %v679 = vld [vmem:[%s355 + $0x14] sm:$0xf]
      %v680 = vld [vmem:[%s355 + $0x18] sm:$0xf]
      %v681 = vld [vmem:[%s355 + $0x1c] sm:$0xf]
      %v682 = vld [vmem:[%s355 + $0x20] sm:$0xf]
      %v683 = vld [vmem:[%s355 + $0x24] sm:$0xf]
      %v684 = vld [vmem:[%s355 + $0x28] sm:$0xf]
      %v685 = vld [vmem:[%s355 + $0x2c] sm:$0xf]
      %v686 = vld [vmem:[%s355 + $0x30] sm:$0xf]
      %v687 = vld [vmem:[%s355 + $0x34] sm:$0xf]
      %v688 = vld [vmem:[%s355 + $0x38] sm:$0xf]
      %v689 = vld [vmem:[%s355 + $0x3c] sm:$0xf]
      %v690 = vld [vmem:[%s363] sm:$0xf]
      %v691 = vld [vmem:[%s363 + $0x4] sm:$0xf]
      %v692 = vld [vmem:[%s363 + $0x8] sm:$0xf]
      %v693 = vld [vmem:[%s363 + $0xc] sm:$0xf]
      %v694 = vld [vmem:[%s363 + $0x10] sm:$0xf]
      %v695 = vld [vmem:[%s363 + $0x14] sm:$0xf]
      %v696 = vld [vmem:[%s363 + $0x18] sm:$0xf]
      %v697 = vld [vmem:[%s363 + $0x1c] sm:$0xf]
      %v698 = vld [vmem:[%s363 + $0x20] sm:$0xf]
      %v699 = vld [vmem:[%s363 + $0x24] sm:$0xf]
      %v700 = vld [vmem:[%s363 + $0x28] sm:$0xf]
      %v701 = vld [vmem:[%s363 + $0x2c] sm:$0xf]
      %v702 = vld [vmem:[%s363 + $0x30] sm:$0xf]
      %v703 = vld [vmem:[%s363 + $0x34] sm:$0xf]
      %v704 = vld [vmem:[%s363 + $0x38] sm:$0xf]
      %v705 = vld [vmem:[%s363 + $0x3c] sm:$0xf]
      %v722 = vunpack.c.l.b16 %v674
      %v723 = vunpack.c.l.b16 %v675
      %v724 = vunpack.c.l.b16 %v676
      %v725 = vunpack.c.l.b16 %v677
      %v726 = vunpack.c.l.b16 %v678
      %v727 = vunpack.c.l.b16 %v679
      %v728 = vunpack.c.l.b16 %v680
      %v729 = vunpack.c.l.b16 %v681
      %v730 = vunpack.c.l.b16 %v682
      %v731 = vunpack.c.l.b16 %v683
      %v732 = vunpack.c.l.b16 %v684
      %v733 = vunpack.c.l.b16 %v685
      %v734 = vunpack.c.l.b16 %v686
      %v735 = vunpack.c.l.b16 %v687
      %v736 = vunpack.c.l.b16 %v688
      %v737 = vunpack.c.l.b16 %v689
      %v738 = vpack.c.b16 %v723, %v722
      %v739 = vpack.c.b16 %v725, %v724
      %v740 = vpack.c.b16 %v727, %v726
      %v741 = vpack.c.b16 %v729, %v728
      %v742 = vpack.c.b16 %v731, %v730
      %v743 = vpack.c.b16 %v733, %v732
      %v744 = vpack.c.b16 %v735, %v734
      %v745 = vpack.c.b16 %v737, %v736
      %v770 = vunpack.c.l.b16 %v690
      %v771 = vunpack.c.l.b16 %v691
      %v772 = vunpack.c.l.b16 %v692
      %v773 = vunpack.c.l.b16 %v693
      %v774 = vunpack.c.l.b16 %v694
      %v775 = vunpack.c.l.b16 %v695
      %v776 = vunpack.c.l.b16 %v696
      %v777 = vunpack.c.l.b16 %v697
      %v778 = vunpack.c.l.b16 %v698
      %v779 = vunpack.c.l.b16 %v699
      %v780 = vunpack.c.l.b16 %v700
      %v781 = vunpack.c.l.b16 %v701
      %v782 = vunpack.c.l.b16 %v702
      %v783 = vunpack.c.l.b16 %v703
      %v784 = vunpack.c.l.b16 %v704
      %v785 = vunpack.c.l.b16 %v705
      %v786 = vpack.c.b16 %v771, %v770
      %v787 = vpack.c.b16 %v773, %v772
      %v788 = vpack.c.b16 %v775, %v774
      %v789 = vpack.c.b16 %v777, %v776
      %v790 = vpack.c.b16 %v779, %v778
      %v791 = vpack.c.b16 %v781, %v780
      %v792 = vpack.c.b16 %v783, %v782
      %v793 = vpack.c.b16 %v785, %v784
      %802 = vmatprep.subr.bf16.mxu0 0
      %803 = vmatpush1.bf16.msra.mxu0 %v786
      %804 = vmatprep.subr.bf16.mxu0 0
      %805 = vmatpush1.bf16.msra.mxu0 %v787
      %806 = vmatprep.subr.bf16.mxu0 0
      %807 = vmatpush1.bf16.msra.mxu0 %v788
      %808 = vmatprep.subr.bf16.mxu0 0
      %809 = vmatpush1.bf16.msra.mxu0 %v789
      %810 = vmatprep.subr.bf16.mxu0 0
      %811 = vmatpush1.bf16.msra.mxu0 %v790
      %812 = vmatprep.subr.bf16.mxu0 0
      %813 = vmatpush1.bf16.msra.mxu0 %v791
      %814 = vmatprep.subr.bf16.mxu0 0
      %815 = vmatpush1.bf16.msra.mxu0 %v792
      %816 = vmatprep.subr.bf16.mxu0 0
      %817 = vmatpush1.bf16.msra.mxu0 %v793
      %818 = vmatprep.subr.bf16.mxu0 0
      %819 = vmatpush1.bf16.msra.mxu0 0
      %820 = vmatprep.subr.bf16.mxu0 0
      %821 = vmatpush1.bf16.msra.mxu0 0
      %822 = vmatprep.subr.bf16.mxu0 0
      %823 = vmatpush1.bf16.msra.mxu0 0
      %824 = vmatprep.subr.bf16.mxu0 0
      %825 = vmatpush1.bf16.msra.mxu0 0
      %826 = vmatprep.subr.bf16.mxu0 0
      %827 = vmatpush1.bf16.msra.mxu0 0
      %828 = vmatprep.subr.bf16.mxu0 0
      %829 = vmatpush1.bf16.msra.mxu0 0
      %830 = vmatprep.subr.bf16.mxu0 0
      %831 = vmatpush1.bf16.msra.mxu0 0
      %832 = vmatprep.subr.bf16.mxu0 0
      %833 = vmatpush1.bf16.msra.mxu0 0
      %834 = vmatprep.mubr.bf16.mxu0 0
      %835 = vmatmul.mubr.bf16.gmra.mrb[0].mxu0 %v738
      %v836 = vpop.f32.mrb[0].mxu0
      %v837 = vadd.f32 0.0, %v836
      %v838 = vpop.f32.mrb[0].mxu0
      %v839 = vpop.f32.mrb[0].mxu0
      %v840 = vadd.f32 0.0, %v839
      %v841 = vpop.f32.mrb[0].mxu0
      %842 = vmatprep.mubr.bf16.mxu0 0
      %843 = vmatmul.mubr.bf16.gmra.mrb[0].mxu0 %v739
      %v844 = vpop.f32.mrb[0].mxu0
      %v845 = vadd.f32 0.0, %v844
      %v846 = vpop.f32.mrb[0].mxu0
      %v847 = vpop.f32.mrb[0].mxu0
      %v848 = vadd.f32 0.0, %v847
      %v849 = vpop.f32.mrb[0].mxu0
      %850 = vmatprep.mubr.bf16.mxu0 0
      %851 = vmatmul.mubr.bf16.gmra.mrb[0].mxu0 %v740
      %v852 = vpop.f32.mrb[0].mxu0
      %v853 = vadd.f32 0.0, %v852
      %v854 = vpop.f32.mrb[0].mxu0
      %v855 = vpop.f32.mrb[0].mxu0
      %v856 = vadd.f32 0.0, %v855
      %v857 = vpop.f32.mrb[0].mxu0
      %858 = vmatprep.mubr.bf16.mxu0 0
      %859 = vmatmul.mubr.bf16.gmra.mrb[0].mxu0 %v741
      %v860 = vpop.f32.mrb[0].mxu0
      %v861 = vadd.f32 0.0, %v860
      %v862 = vpop.f32.mrb[0].mxu0
      %v863 = vpop.f32.mrb[0].mxu0
      %v864 = vadd.f32 0.0, %v863
      %v865 = vpop.f32.mrb[0].mxu0
      %866 = vmatprep.mubr.bf16.mxu0 0
      %867 = vmatmul.mubr.bf16.gmra.mrb[0].mxu0 %v742
      %v868 = vpop.f32.mrb[0].mxu0
      %v869 = vadd.f32 0.0, %v868
      %v870 = vpop.f32.mrb[0].mxu0
      %v871 = vpop.f32.mrb[0].mxu0
      %v872 = vadd.f32 0.0, %v871
      %v873 = vpop.f32.mrb[0].mxu0
      %874 = vmatprep.mubr.bf16.mxu0 0
      %875 = vmatmul.mubr.bf16.gmra.mrb[0].mxu0 %v743
      %v876 = vpop.f32.mrb[0].mxu0
      %v877 = vadd.f32 0.0, %v876
      %v878 = vpop.f32.mrb[0].mxu0
      %v879 = vpop.f32.mrb[0].mxu0
      %v880 = vadd.f32 0.0, %v879
      %v881 = vpop.f32.mrb[0].mxu0
      %882 = vmatprep.mubr.bf16.mxu0 0
      %883 = vmatmul.mubr.bf16.gmra.mrb[0].mxu0 %v744
      %v884 = vpop.f32.mrb[0].mxu0
      %v885 = vadd.f32 0.0, %v884
      %v886 = vpop.f32.mrb[0].mxu0
      %v887 = vpop.f32.mrb[0].mxu0
      %v888 = vadd.f32 0.0, %v887
      %v889 = vpop.f32.mrb[0].mxu0
      %890 = vmatprep.mubr.bf16.mxu0 0
      %891 = vmatmul.mubr.bf16.gmra.mrb[0].mxu0 %v745
      %v892 = vpop.f32.mrb[0].mxu0
      %v893 = vadd.f32 0.0, %v892
      %v894 = vpop.f32.mrb[0].mxu0
      %v895 = vpop.f32.mrb[0].mxu0
      %v896 = vadd.f32 0.0, %v895
      %v897 = vpop.f32.mrb[0].mxu0
      %898 = vdwg.mxu0
      %v899 = vadd.f32 %v658, %v837
      %v900 = vadd.f32 %v659, %v840
      %v901 = vadd.f32 %v660, %v845
      %v902 = vadd.f32 %v661, %v848
      %v903 = vadd.f32 %v662, %v853
      %v904 = vadd.f32 %v663, %v856
      %v905 = vadd.f32 %v664, %v861
      %v906 = vadd.f32 %v665, %v864
      %v907 = vadd.f32 %v666, %v869
      %v908 = vadd.f32 %v667, %v872
      %v909 = vadd.f32 %v668, %v877
      %v910 = vadd.f32 %v669, %v880
      %v911 = vadd.f32 %v670, %v885
      %v912 = vadd.f32 %v671, %v888
      %v913 = vadd.f32 %v672, %v893
      %v914 = vadd.f32 %v673, %v896
      %915 = vst [vmem:[#allocation2] sm:$0xff] %v899
      %916 = vst [vmem:[#allocation2 + $0x8] sm:$0xff] %v900
      %917 = vst [vmem:[#allocation2 + $0x10] sm:$0xff] %v901
      %918 = vst [vmem:[#allocation2 + $0x18] sm:$0xff] %v902
      %919 = vst [vmem:[#allocation2 + $0x20] sm:$0xff] %v903
      %920 = vst [vmem:[#allocation2 + $0x28] sm:$0xff] %v904
      %921 = vst [vmem:[#allocation2 + $0x30] sm:$0xff] %v905
      %922 = vst [vmem:[#allocation2 + $0x38] sm:$0xff] %v906
      %923 = vst [vmem:[#allocation2 + $0x40] sm:$0xff] %v907
      %924 = vst [vmem:[#allocation2 + $0x48] sm:$0xff] %v908
      %925 = vst [vmem:[#allocation2 + $0x50] sm:$0xff] %v909
      %926 = vst [vmem:[#allocation2 + $0x58] sm:$0xff] %v910
      %927 = vst [vmem:[#allocation2 + $0x60] sm:$0xff] %v911
      %928 = vst [vmem:[#allocation2 + $0x68] sm:$0xff] %v912
      %929 = vst [vmem:[#allocation2 + $0x70] sm:$0xff] %v913
      %930 = vst [vmem:[#allocation2 + $0x78] sm:$0xff] %v914
      // Predicated region
      $region53: #{rgcn_link_prediction_forward.6} parent=43 // pred_check
        %p931 = pneg %p386
      $region54: #{rgcn_link_prediction_forward.6} parent=43 // pred_check_branch
        %933 = sbr.rel (%p931) target = $region56
      $region55: #{rgcn_link_prediction_forward.6} parent=43 // pred_region
        %v934 = vld [vmem:[#allocation3] sm:$0xff]
        %v935 = vld [vmem:[#allocation3 + $0x8] sm:$0xff]
        %v936 = vld [vmem:[#allocation3 + $0x10] sm:$0xff]
        %v937 = vld [vmem:[#allocation3 + $0x18] sm:$0xff]
        %v938 = vld [vmem:[#allocation3 + $0x20] sm:$0xff]
        %v939 = vld [vmem:[#allocation3 + $0x28] sm:$0xff]
        %v940 = vld [vmem:[#allocation3 + $0x30] sm:$0xff]
        %v941 = vld [vmem:[#allocation3 + $0x38] sm:$0xff]
        %v942 = vld [vmem:[#allocation3 + $0x40] sm:$0xff]
        %v943 = vld [vmem:[#allocation3 + $0x48] sm:$0xff]
        %v944 = vld [vmem:[#allocation3 + $0x50] sm:$0xff]
        %v945 = vld [vmem:[#allocation3 + $0x58] sm:$0xff]
        %v946 = vld [vmem:[#allocation3 + $0x60] sm:$0xff]
        %v947 = vld [vmem:[#allocation3 + $0x68] sm:$0xff]
        %v948 = vld [vmem:[#allocation3 + $0x70] sm:$0xff]
        %v949 = vld [vmem:[#allocation3 + $0x78] sm:$0xff]
        %v950 = vld [vmem:[#allocation2] sm:$0xff]
        %v951 = vld [vmem:[#allocation2 + $0x8] sm:$0xff]
        %v952 = vld [vmem:[#allocation2 + $0x10] sm:$0xff]
        %v953 = vld [vmem:[#allocation2 + $0x18] sm:$0xff]
        %v954 = vld [vmem:[#allocation2 + $0x20] sm:$0xff]
        %v955 = vld [vmem:[#allocation2 + $0x28] sm:$0xff]
        %v956 = vld [vmem:[#allocation2 + $0x30] sm:$0xff]
        %v957 = vld [vmem:[#allocation2 + $0x38] sm:$0xff]
        %v958 = vld [vmem:[#allocation2 + $0x40] sm:$0xff]
        %v959 = vld [vmem:[#allocation2 + $0x48] sm:$0xff]
        %v960 = vld [vmem:[#allocation2 + $0x50] sm:$0xff]
        %v961 = vld [vmem:[#allocation2 + $0x58] sm:$0xff]
        %v962 = vld [vmem:[#allocation2 + $0x60] sm:$0xff]
        %v963 = vld [vmem:[#allocation2 + $0x68] sm:$0xff]
        %v964 = vld [vmem:[#allocation2 + $0x70] sm:$0xff]
        %v965 = vld [vmem:[#allocation2 + $0x78] sm:$0xff]
        %v966 = vpack.c.bf16 %v951, %v950
        %v967 = vpack.c.bf16 %v953, %v952
        %v968 = vpack.c.bf16 %v955, %v954
        %v969 = vpack.c.bf16 %v957, %v956
        %v970 = vpack.c.bf16 %v959, %v958
        %v971 = vpack.c.bf16 %v961, %v960
        %v972 = vpack.c.bf16 %v963, %v962
        %v973 = vpack.c.bf16 %v965, %v964
        %v974 = vld [vmem:[%s377] sm:$0xf]
        %v975 = vld [vmem:[%s377 + $0x4] sm:$0xf]
        %v976 = vld [vmem:[%s377 + $0x8] sm:$0xf]
        %v977 = vld [vmem:[%s377 + $0xc] sm:$0xf]
        %v978 = vld [vmem:[%s377 + $0x10] sm:$0xf]
        %v979 = vld [vmem:[%s377 + $0x14] sm:$0xf]
        %v980 = vld [vmem:[%s377 + $0x18] sm:$0xf]
        %v981 = vld [vmem:[%s377 + $0x1c] sm:$0xf]
        %v982 = vld [vmem:[%s377 + $0x20] sm:$0xf]
        %v983 = vld [vmem:[%s377 + $0x24] sm:$0xf]
        %v984 = vld [vmem:[%s377 + $0x28] sm:$0xf]
        %v985 = vld [vmem:[%s377 + $0x2c] sm:$0xf]
        %v986 = vld [vmem:[%s377 + $0x30] sm:$0xf]
        %v987 = vld [vmem:[%s377 + $0x34] sm:$0xf]
        %v988 = vld [vmem:[%s377 + $0x38] sm:$0xf]
        %v989 = vld [vmem:[%s377 + $0x3c] sm:$0xf]
        %v1006 = vunpack.c.l.b16 %v974
        %v1007 = vunpack.c.l.b16 %v975
        %v1008 = vunpack.c.l.b16 %v976
        %v1009 = vunpack.c.l.b16 %v977
        %v1010 = vunpack.c.l.b16 %v978
        %v1011 = vunpack.c.l.b16 %v979
        %v1012 = vunpack.c.l.b16 %v980
        %v1013 = vunpack.c.l.b16 %v981
        %v1014 = vunpack.c.l.b16 %v982
        %v1015 = vunpack.c.l.b16 %v983
        %v1016 = vunpack.c.l.b16 %v984
        %v1017 = vunpack.c.l.b16 %v985
        %v1018 = vunpack.c.l.b16 %v986
        %v1019 = vunpack.c.l.b16 %v987
        %v1020 = vunpack.c.l.b16 %v988
        %v1021 = vunpack.c.l.b16 %v989
        %v1022 = vpack.c.b16 %v1007, %v1006
        %v1023 = vpack.c.b16 %v1009, %v1008
        %v1024 = vpack.c.b16 %v1011, %v1010
        %v1025 = vpack.c.b16 %v1013, %v1012
        %v1026 = vpack.c.b16 %v1015, %v1014
        %v1027 = vpack.c.b16 %v1017, %v1016
        %v1028 = vpack.c.b16 %v1019, %v1018
        %v1029 = vpack.c.b16 %v1021, %v1020
        %1038 = vmatprep.subr.bf16.mxu0 0
        %1039 = vmatpush1.bf16.msra.mxu0 %v1022
        %1040 = vmatprep.subr.bf16.mxu0 0
        %1041 = vmatpush1.bf16.msra.mxu0 %v1023
        %1042 = vmatprep.subr.bf16.mxu0 0
        %1043 = vmatpush1.bf16.msra.mxu0 %v1024
        %1044 = vmatprep.subr.bf16.mxu0 0
        %1045 = vmatpush1.bf16.msra.mxu0 %v1025
        %1046 = vmatprep.subr.bf16.mxu0 0
        %1047 = vmatpush1.bf16.msra.mxu0 %v1026
        %1048 = vmatprep.subr.bf16.mxu0 0
        %1049 = vmatpush1.bf16.msra.mxu0 %v1027
        %1050 = vmatprep.subr.bf16.mxu0 0
        %1051 = vmatpush1.bf16.msra.mxu0 %v1028
        %1052 = vmatprep.subr.bf16.mxu0 0
        %1053 = vmatpush1.bf16.msra.mxu0 %v1029
        %1054 = vmatprep.subr.bf16.mxu0 0
        %1055 = vmatpush1.bf16.msra.mxu0 0
        %1056 = vmatprep.subr.bf16.mxu0 0
        %1057 = vmatpush1.bf16.msra.mxu0 0
        %1058 = vmatprep.subr.bf16.mxu0 0
        %1059 = vmatpush1.bf16.msra.mxu0 0
        %1060 = vmatprep.subr.bf16.mxu0 0
        %1061 = vmatpush1.bf16.msra.mxu0 0
        %1062 = vmatprep.subr.bf16.mxu0 0
        %1063 = vmatpush1.bf16.msra.mxu0 0
        %1064 = vmatprep.subr.bf16.mxu0 0
        %1065 = vmatpush1.bf16.msra.mxu0 0
        %1066 = vmatprep.subr.bf16.mxu0 0
        %1067 = vmatpush1.bf16.msra.mxu0 0
        %1068 = vmatprep.subr.bf16.mxu0 0
        %1069 = vmatpush1.bf16.msra.mxu0 0
        %1070 = vmatprep.mubr.bf16.mxu0 0
        %1071 = vmatmul.mubr.bf16.gmra.mrb[0].mxu0 %v966
        %v1072 = vpop.f32.mrb[0].mxu0
        %v1073 = vadd.f32 0.0, %v1072
        %v1074 = vpop.f32.mrb[0].mxu0
        %v1075 = vpop.f32.mrb[0].mxu0
        %v1076 = vadd.f32 0.0, %v1075
        %v1077 = vpop.f32.mrb[0].mxu0
        %1078 = vmatprep.mubr.bf16.mxu0 0
        %1079 = vmatmul.mubr.bf16.gmra.mrb[0].mxu0 %v967
        %v1080 = vpop.f32.mrb[0].mxu0
        %v1081 = vadd.f32 0.0, %v1080
        %v1082 = vpop.f32.mrb[0].mxu0
        %v1083 = vpop.f32.mrb[0].mxu0
        %v1084 = vadd.f32 0.0, %v1083
        %v1085 = vpop.f32.mrb[0].mxu0
        %1086 = vmatprep.mubr.bf16.mxu0 0
        %1087 = vmatmul.mubr.bf16.gmra.mrb[0].mxu0 %v968
        %v1088 = vpop.f32.mrb[0].mxu0
        %v1089 = vadd.f32 0.0, %v1088
        %v1090 = vpop.f32.mrb[0].mxu0
        %v1091 = vpop.f32.mrb[0].mxu0
        %v1092 = vadd.f32 0.0, %v1091
        %v1093 = vpop.f32.mrb[0].mxu0
        %1094 = vmatprep.mubr.bf16.mxu0 0
        %1095 = vmatmul.mubr.bf16.gmra.mrb[0].mxu0 %v969
        %v1096 = vpop.f32.mrb[0].mxu0
        %v1097 = vadd.f32 0.0, %v1096
        %v1098 = vpop.f32.mrb[0].mxu0
        %v1099 = vpop.f32.mrb[0].mxu0
        %v1100 = vadd.f32 0.0, %v1099
        %v1101 = vpop.f32.mrb[0].mxu0
        %1102 = vmatprep.mubr.bf16.mxu0 0
        %1103 = vmatmul.mubr.bf16.gmra.mrb[0].mxu0 %v970
        %v1104 = vpop.f32.mrb[0].mxu0
        %v1105 = vadd.f32 0.0, %v1104
        %v1106 = vpop.f32.mrb[0].mxu0
        %v1107 = vpop.f32.mrb[0].mxu0
        %v1108 = vadd.f32 0.0, %v1107
        %v1109 = vpop.f32.mrb[0].mxu0
        %1110 = vmatprep.mubr.bf16.mxu0 0
        %1111 = vmatmul.mubr.bf16.gmra.mrb[0].mxu0 %v971
        %v1112 = vpop.f32.mrb[0].mxu0
        %v1113 = vadd.f32 0.0, %v1112
        %v1114 = vpop.f32.mrb[0].mxu0
        %v1115 = vpop.f32.mrb[0].mxu0
        %v1116 = vadd.f32 0.0, %v1115
        %v1117 = vpop.f32.mrb[0].mxu0
        %1118 = vmatprep.mubr.bf16.mxu0 0
        %1119 = vmatmul.mubr.bf16.gmra.mrb[0].mxu0 %v972
        %v1120 = vpop.f32.mrb[0].mxu0
        %v1121 = vadd.f32 0.0, %v1120
        %v1122 = vpop.f32.mrb[0].mxu0
        %v1123 = vpop.f32.mrb[0].mxu0
        %v1124 = vadd.f32 0.0, %v1123
        %v1125 = vpop.f32.mrb[0].mxu0
        %1126 = vmatprep.mubr.bf16.mxu0 0
        %1127 = vmatmul.mubr.bf16.gmra.mrb[0].mxu0 %v973
        %v1128 = vpop.f32.mrb[0].mxu0
        %v1129 = vadd.f32 0.0, %v1128
        %v1130 = vpop.f32.mrb[0].mxu0
        %v1131 = vpop.f32.mrb[0].mxu0
        %v1132 = vadd.f32 0.0, %v1131
        %v1133 = vpop.f32.mrb[0].mxu0
        %1134 = vdwg.mxu0
        %v1135 = vadd.f32 %v934, %v1073
        %v1136 = vadd.f32 %v935, %v1076
        %v1137 = vadd.f32 %v936, %v1081
        %v1138 = vadd.f32 %v937, %v1084
        %v1139 = vadd.f32 %v938, %v1089
        %v1140 = vadd.f32 %v939, %v1092
        %v1141 = vadd.f32 %v940, %v1097
        %v1142 = vadd.f32 %v941, %v1100
        %v1143 = vadd.f32 %v942, %v1105
        %v1144 = vadd.f32 %v943, %v1108
        %v1145 = vadd.f32 %v944, %v1113
        %v1146 = vadd.f32 %v945, %v1116
        %v1147 = vadd.f32 %v946, %v1121
        %v1148 = vadd.f32 %v947, %v1124
        %v1149 = vadd.f32 %v948, %v1129
        %v1150 = vadd.f32 %v949, %v1132
        %1151 = vst [vmem:[#allocation3] sm:$0xff] %v1135
        %1152 = vst [vmem:[#allocation3 + $0x8] sm:$0xff] %v1136
        %1153 = vst [vmem:[#allocation3 + $0x10] sm:$0xff] %v1137
        %1154 = vst [vmem:[#allocation3 + $0x18] sm:$0xff] %v1138
        %1155 = vst [vmem:[#allocation3 + $0x20] sm:$0xff] %v1139
        %1156 = vst [vmem:[#allocation3 + $0x28] sm:$0xff] %v1140
        %1157 = vst [vmem:[#allocation3 + $0x30] sm:$0xff] %v1141
        %1158 = vst [vmem:[#allocation3 + $0x38] sm:$0xff] %v1142
        %1159 = vst [vmem:[#allocation3 + $0x40] sm:$0xff] %v1143
        %1160 = vst [vmem:[#allocation3 + $0x48] sm:$0xff] %v1144
        %1161 = vst [vmem:[#allocation3 + $0x50] sm:$0xff] %v1145
        %1162 = vst [vmem:[#allocation3 + $0x58] sm:$0xff] %v1146
        %1163 = vst [vmem:[#allocation3 + $0x60] sm:$0xff] %v1147
        %1164 = vst [vmem:[#allocation3 + $0x68] sm:$0xff] %v1148
        %1165 = vst [vmem:[#allocation3 + $0x70] sm:$0xff] %v1149
        %1166 = vst [vmem:[#allocation3 + $0x78] sm:$0xff] %v1150
      $region56: #{rgcn_link_prediction_forward.6} parent=43 // pred_fallthru
        _
      %p1167 = scmp.eq.s32.totalorder %s30, 1
      %p1168 = pnand %p1167, %p386
      %p1169 = pneg %p1168
      // Predicated region
      $region57: #{rgcn_link_prediction_forward.6} parent=43 // pred_check
        _
      $region58: #{rgcn_link_prediction_forward.6} parent=43 // pred_check_branch
        %1171 = sbr.rel (%p1168) target = $region60
      $region59: #{rgcn_link_prediction_forward.6} parent=43 // pred_region
        %v1172 = vld [vmem:[#allocation3] sm:$0xff]
        %v1173 = vld [vmem:[#allocation3 + $0x8] sm:$0xff]
        %v1174 = vld [vmem:[#allocation3 + $0x10] sm:$0xff]
        %v1175 = vld [vmem:[#allocation3 + $0x18] sm:$0xff]
        %v1176 = vld [vmem:[#allocation3 + $0x20] sm:$0xff]
        %v1177 = vld [vmem:[#allocation3 + $0x28] sm:$0xff]
        %v1178 = vld [vmem:[#allocation3 + $0x30] sm:$0xff]
        %v1179 = vld [vmem:[#allocation3 + $0x38] sm:$0xff]
        %v1180 = vld [vmem:[#allocation3 + $0x40] sm:$0xff]
        %v1181 = vld [vmem:[#allocation3 + $0x48] sm:$0xff]
        %v1182 = vld [vmem:[#allocation3 + $0x50] sm:$0xff]
        %v1183 = vld [vmem:[#allocation3 + $0x58] sm:$0xff]
        %v1184 = vld [vmem:[#allocation3 + $0x60] sm:$0xff]
        %v1185 = vld [vmem:[#allocation3 + $0x68] sm:$0xff]
        %v1186 = vld [vmem:[#allocation3 + $0x70] sm:$0xff]
        %v1187 = vld [vmem:[#allocation3 + $0x78] sm:$0xff]
        %v1188 = vmax.f32 %v1172, 0.0
        %v1189 = vmax.f32 %v1173, 0.0
        %v1190 = vmax.f32 %v1174, 0.0
        %v1191 = vmax.f32 %v1175, 0.0
        %v1192 = vmax.f32 %v1176, 0.0
        %v1193 = vmax.f32 %v1177, 0.0
        %v1194 = vmax.f32 %v1178, 0.0
        %v1195 = vmax.f32 %v1179, 0.0
        %v1196 = vmax.f32 %v1180, 0.0
        %v1197 = vmax.f32 %v1181, 0.0
        %v1198 = vmax.f32 %v1182, 0.0
        %v1199 = vmax.f32 %v1183, 0.0
        %v1200 = vmax.f32 %v1184, 0.0
        %v1201 = vmax.f32 %v1185, 0.0
        %v1202 = vmax.f32 %v1186, 0.0
        %v1203 = vmax.f32 %v1187, 0.0
        %v1204 = vpack.c.bf16 %v1189, %v1188
        %v1205 = vpack.c.bf16 %v1191, %v1190
        %v1206 = vpack.c.bf16 %v1193, %v1192
        %v1207 = vpack.c.bf16 %v1195, %v1194
        %v1208 = vpack.c.bf16 %v1197, %v1196
        %v1209 = vpack.c.bf16 %v1199, %v1198
        %v1210 = vpack.c.bf16 %v1201, %v1200
        %v1211 = vpack.c.bf16 %v1203, %v1202
        %v1220 = vunpack.c.l.b16 %v1204
        %v1221 = vunpack.c.h.b16 %v1204
        %v1222 = vunpack.c.l.b16 %v1205
        %v1223 = vunpack.c.h.b16 %v1205
        %v1224 = vunpack.c.l.b16 %v1206
        %v1225 = vunpack.c.h.b16 %v1206
        %v1226 = vunpack.c.l.b16 %v1207
        %v1227 = vunpack.c.h.b16 %v1207
        %v1228 = vunpack.c.l.b16 %v1208
        %v1229 = vunpack.c.h.b16 %v1208
        %v1230 = vunpack.c.l.b16 %v1209
        %v1231 = vunpack.c.h.b16 %v1209
        %v1232 = vunpack.c.l.b16 %v1210
        %v1233 = vunpack.c.h.b16 %v1210
        %v1234 = vunpack.c.l.b16 %v1211
        %v1235 = vunpack.c.h.b16 %v1211
        %v1236 = vpack.c.b16 %v1220, %v1220
        %v1237 = vpack.c.b16 %v1221, %v1221
        %v1238 = vpack.c.b16 %v1222, %v1222
        %v1239 = vpack.c.b16 %v1223, %v1223
        %v1240 = vpack.c.b16 %v1224, %v1224
        %v1241 = vpack.c.b16 %v1225, %v1225
        %v1242 = vpack.c.b16 %v1226, %v1226
        %v1243 = vpack.c.b16 %v1227, %v1227
        %v1244 = vpack.c.b16 %v1228, %v1228
        %v1245 = vpack.c.b16 %v1229, %v1229
        %v1246 = vpack.c.b16 %v1230, %v1230
        %v1247 = vpack.c.b16 %v1231, %v1231
        %v1248 = vpack.c.b16 %v1232, %v1232
        %v1249 = vpack.c.b16 %v1233, %v1233
        %v1250 = vpack.c.b16 %v1234, %v1234
        %v1251 = vpack.c.b16 %v1235, %v1235
        %1268 = vst [vmem:[%s382] sm:$0xf] %v1236
        %1269 = vst [vmem:[%s382 + $0x4] sm:$0xf] %v1237
        %1270 = vst [vmem:[%s382 + $0x8] sm:$0xf] %v1238
        %1271 = vst [vmem:[%s382 + $0xc] sm:$0xf] %v1239
        %1272 = vst [vmem:[%s382 + $0x10] sm:$0xf] %v1240
        %1273 = vst [vmem:[%s382 + $0x14] sm:$0xf] %v1241
        %1274 = vst [vmem:[%s382 + $0x18] sm:$0xf] %v1242
        %1275 = vst [vmem:[%s382 + $0x1c] sm:$0xf] %v1243
        %1276 = vst [vmem:[%s382 + $0x20] sm:$0xf] %v1244
        %1277 = vst [vmem:[%s382 + $0x24] sm:$0xf] %v1245
        %1278 = vst [vmem:[%s382 + $0x28] sm:$0xf] %v1246
        %1279 = vst [vmem:[%s382 + $0x2c] sm:$0xf] %v1247
        %1280 = vst [vmem:[%s382 + $0x30] sm:$0xf] %v1248
        %1281 = vst [vmem:[%s382 + $0x34] sm:$0xf] %v1249
        %1282 = vst [vmem:[%s382 + $0x38] sm:$0xf] %v1250
        %1283 = vst [vmem:[%s382 + $0x3c] sm:$0xf] %v1251
      $region60: #{rgcn_link_prediction_forward.6} parent=43 // pred_fallthru
        _
      %s1284 = smul.u32 16, %s29
      %p1285 = scmp.lt.s32.totalorder %s1284, 31
      %s1286 = scalar_select %p1285, %s1284, 31
      %s1287 = smul.addr %s1286, 4
      %s1288 = scalar_lea.vmem %s7, %s1287
      // Predicated region
      $region61: #{rgcn_link_prediction_forward.6} parent=43 // pred_check
        %p1289 = pneg %p215
      $region62: #{rgcn_link_prediction_forward.6} parent=43 // pred_check_branch
        %1291 = sbr.rel (%p1289) target = $region64
      $region63: #{rgcn_link_prediction_forward.6} parent=43 // pred_region
        %s1292 = smul.u32 16, %s29
      $region64: #{rgcn_link_prediction_forward.6} parent=43 // pred_fallthru
        _
    $region44: #{rgcn_link_prediction_forward.6} parent=5 // pred_fallthru
      _
    %p1293 = scmp.le.s32.totalorder 2, %s19
    // Predicated region
    $region65: #{rgcn_link_prediction_forward.6} parent=5 // pred_check
      %p1294 = pneg %p1293
    $region66: #{rgcn_link_prediction_forward.6} parent=5 // pred_check_branch
      %1296 = sbr.rel (%p1294) target = $region68
    $region67: #{rgcn_link_prediction_forward.6} parent=5 // pred_region
      %s1297 = ssub.s32 %s19, 2
      // Predicated region
      $region69: #{rgcn_link_prediction_forward.6} parent=67 // pred_check
        %p1298 = pneg %p221
      $region70: #{rgcn_link_prediction_forward.6} parent=67 // pred_check_branch
        %1300 = sbr.rel (%p1298) target = $region72
      $region71: #{rgcn_link_prediction_forward.6} parent=67 // pred_region
        %s1301 = smul.u32 16, %s32
        %p1302 = scmp.lt.s32.totalorder %s1301, 31
        %s1303 = scalar_select %p1302, %s1301, 31
        %s1304 = smul.addr %s1303, 4
        %s1305 = scalar_lea.vmem %s7, %s1304
      $region72: #{rgcn_link_prediction_forward.6} parent=67 // pred_fallthru
        _
    $region68: #{rgcn_link_prediction_forward.6} parent=5 // pred_fallthru
      _
  $region6: #{rgcn_link_prediction_forward.6} parent=0 // loop_footer
    %s23 = sadd.s32 1, %s19
  $region7: #{rgcn_link_prediction_forward.6} parent=0 // loop_footer_branch
    %18 = sbr.rel target = $region3
  $region8: #{rgcn_link_prediction_forward.6} parent=0 // loop_exit
    _

// kernel: rgcn_link_prediction_forward.7
$region0: #{rgcn_link_prediction_forward.7}
  #allocation0 [shape = 'u32[]', space=smem, size = 0x4, offset = 0x4, fixed_abs, tag = 'smem constant byte address 0x4 - core index']
  #allocation1 [shape = 'u32[144,128]{1,0:T(1,128)}', space=vmem, size = 0x12000, scoped, tag = 'internal scratch']
  #allocation2 [shape = 'f32[128,128]{1,0:T(8,128)}', space=vmem, size = 0x10000, scoped, tag = 'scratch operand']
  #allocation3 [shape = 'f32[128,128]{1,0:T(8,128)}', space=vmem, size = 0x10000, scoped, tag = 'scratch operand']
  #allocation4 [shape = 's32[1]{0}', space=sflag, size = 0x4, scoped, tag = 'scoped memory for rgcn_link_prediction_forward.7']
  #allocation5 [shape = 'u8[512]{0}', space=smem, size = 0x200, scoped, tag = 'prefetched SMEM operand 0']
  %s0 = inlined_call_operand.vmem [shape: s32[2], index: 0, kind: input, shape index: {}]
  %s1 = inlined_call_operand.vmem [shape: bf16[2,256,128], index: 1, kind: input, shape index: {}]
  %s2 = inlined_call_operand.vmem [shape: bf16[256,128], index: 2, kind: input, shape index: {}, may-alias: {2,3}]
  %s3 = inlined_call_operand.vmem [shape: bf16[256,128], index: 3, kind: input, shape index: {}, may-alias: {2,3}]
  %s4 = inlined_call_operand.vmem [shape: bf16[2,128,128], index: 4, kind: input, shape index: {}]
  %s5 = inlined_call_operand.vmem [shape: bf16[128,128], index: 5, kind: input, shape index: {}]
  %s6 = inlined_call_operand.vmem [shape: f32[1,128], index: 6, kind: input, shape index: {}]
  %s7 = inlined_call_operand.vmem [shape: bf16[256,128], index: 7, kind: output, shape index: {}]
  %s8 = sld [smem:[#allocation0]]
  $region73: #{rgcn_link_prediction_forward.7} parent=0
    _
  %s10 = ssub.s32 1, %s8
  %s11 = scalar_select 0, %s10, %s8
  %s12 = sshll.u32 %s0, 4
  %s13 = int_to_ptr.vmem [resolvable:$true] %s12
  %15 = dma.vmem_to_smem %s13, 16, [#allocation5], [#allocation4]
  %16 = dma.done [#allocation4], 16
  %17 = sfence
  loop: start=0, step=1, limit=6
  $region2: #{rgcn_link_prediction_forward.7} parent=0 // loop_pre_header
    _
  $region3: #{rgcn_link_prediction_forward.7} parent=0 // loop_header
    %s19 = sphi 0, %s23
    %p20 = scmp.ge.s32.totalorder %s19, 6
    %s26 = sphi 0, %s45
    %s27 = sphi 0, %s41
    %s28 = sphi 0, %s37
    %s29 = sphi 0, %s26
    %s30 = sphi 0, %s27
    %s31 = sphi 0, %s28
    %s32 = sphi 0, %s29
    %s33 = sphi 0, %s30
    %s34 = sphi 0, %s31
    %s52 = sphi 0, %s54
    %s55 = sphi 0, %s52
    %s56 = sphi 0, %s55
    %s72 = sphi 0, %s56
    %s82 = sphi 0, %s84
    %s85 = sphi 0, %s82
    %s86 = sphi 0, %s85
    %s102 = sphi 0, %s86
    %s108 = sphi 0, %s110
    %s111 = sphi 0, %s108
    %s112 = sphi 0, %s111
    %s128 = sphi 0, %s112
    %s134 = sphi 0, %s136
    %s137 = sphi 0, %s134
    %s138 = sphi 0, %s137
    %s154 = sphi 0, %s138
    %s158 = sphi 0, %s158
    %s160 = sphi 0, %s158
    %s161 = sphi 0, %s160
    %s175 = sphi 0, %s161
    %s179 = sphi 0, %s179
    %s181 = sphi 0, %s179
    %s182 = sphi 0, %s181
    %s196 = sphi 0, %s182
    %s202 = sphi 0, %s204
    %s205 = sphi 0, %s202
    %s206 = sphi 0, %s205
    %s222 = sphi 0, %s206
  $region4: #{rgcn_link_prediction_forward.7} parent=0 // loop_header_branch
    %22 = sbr.rel (%p20) target = $region8
  $region5: #{rgcn_link_prediction_forward.7} parent=0 // loop_body
    %s24 = ssub.s32 %s19, 1
    %s25 = ssub.s32 %s19, 2
    %s35 = sadd.s32 1, %s28
    %p36 = scmp.ge.s32.totalorder %s35, 1
    %s37 = scalar_select %p36, 0, %s35
    %s38 = sadd.s32 1, %s27
    %s39 = scalar_select %p36, %s38, %s27
    %p40 = scmp.ge.s32.totalorder %s39, 2
    %s41 = scalar_select %p40, 0, %s39
    %s42 = sadd.s32 1, %s26
    %s43 = scalar_select %p40, %s42, %s26
    %p44 = scmp.ge.s32.totalorder %s43, 2
    %s45 = scalar_select %p44, 0, %s43
    %s46 = ssub.s32 %s27, %s41
    %s47 = ssub.s32 %s26, %s45
    %s48 = sor.u32 %s46, %s47
    %s49 = ssub.s32 %s28, %s37
    %s50 = sor.u32 %s48, %s49
    %p51 = scmp.eq.s32.totalorder %s50, 0
    %s53 = sadd.s32 %s52, 1
    %s54 = scalar_select %p51, %s52, %s53
    %p57 = pneg %p51
    %p58 = scmp.eq.s32.totalorder %s19, 3
    %p59 = por %p57, %p58
    %p60 = scmp.ne.s32.totalorder %s52, %s55
    %p61 = scmp.eq.s32.totalorder %s19, 0
    %p62 = por %p60, %p61
    %p63 = scmp.ne.s32.totalorder %s52, %s55
    %p64 = scmp.eq.s32.totalorder %s24, 3
    %p65 = por %p63, %p64
    %p66 = scmp.ne.s32.totalorder %s55, %s56
    %p67 = scmp.eq.s32.totalorder %s24, 0
    %p68 = por %p66, %p67
    %p69 = scmp.ne.s32.totalorder %s55, %s56
    %p70 = scmp.eq.s32.totalorder %s25, 3
    %p71 = por %p69, %p70
    %p73 = scmp.ne.s32.totalorder %s56, %s72
    %p74 = scmp.eq.s32.totalorder %s25, 0
    %p75 = por %p73, %p74
    %s76 = sld [smem:[#allocation5 + %s27]]
    %s77 = sadd.s32 %s76, %s28
    %s78 = sld [smem:[#allocation5 + %s41]]
    %s79 = sadd.s32 %s78, %s37
    %s80 = ssub.s32 %s77, %s79
    %p81 = scmp.eq.s32.totalorder %s80, 0
    %s83 = sadd.s32 %s82, 1
    %s84 = scalar_select %p81, %s82, %s83
    %p87 = pneg %p81
    %p88 = scmp.eq.s32.totalorder %s19, 3
    %p89 = por %p87, %p88
    %p90 = scmp.ne.s32.totalorder %s82, %s85
    %p91 = scmp.eq.s32.totalorder %s19, 0
    %p92 = por %p90, %p91
    %p93 = scmp.ne.s32.totalorder %s82, %s85
    %p94 = scmp.eq.s32.totalorder %s24, 3
    %p95 = por %p93, %p94
    %p96 = scmp.ne.s32.totalorder %s85, %s86
    %p97 = scmp.eq.s32.totalorder %s24, 0
    %p98 = por %p96, %p97
    %p99 = scmp.ne.s32.totalorder %s85, %s86
    %p100 = scmp.eq.s32.totalorder %s25, 3
    %p101 = por %p99, %p100
    %p103 = scmp.ne.s32.totalorder %s86, %s102
    %p104 = scmp.eq.s32.totalorder %s25, 0
    %p105 = por %p103, %p104
    %s106 = ssub.s32 %s26, %s45
    %p107 = scmp.eq.s32.totalorder %s106, 0
    %s109 = sadd.s32 %s108, 1
    %s110 = scalar_select %p107, %s108, %s109
    %p113 = pneg %p107
    %p114 = scmp.eq.s32.totalorder %s19, 3
    %p115 = por %p113, %p114
    %p116 = scmp.ne.s32.totalorder %s108, %s111
    %p117 = scmp.eq.s32.totalorder %s19, 0
    %p118 = por %p116, %p117
    %p119 = scmp.ne.s32.totalorder %s108, %s111
    %p120 = scmp.eq.s32.totalorder %s24, 3
    %p121 = por %p119, %p120
    %p122 = scmp.ne.s32.totalorder %s111, %s112
    %p123 = scmp.eq.s32.totalorder %s24, 0
    %p124 = por %p122, %p123
    %p125 = scmp.ne.s32.totalorder %s111, %s112
    %p126 = scmp.eq.s32.totalorder %s25, 3
    %p127 = por %p125, %p126
    %p129 = scmp.ne.s32.totalorder %s112, %s128
    %p130 = scmp.eq.s32.totalorder %s25, 0
    %p131 = por %p129, %p130
    %s132 = ssub.s32 %s27, %s41
    %p133 = scmp.eq.s32.totalorder %s132, 0
    %s135 = sadd.s32 %s134, 1
    %s136 = scalar_select %p133, %s134, %s135
    %p139 = pneg %p133
    %p140 = scmp.eq.s32.totalorder %s19, 3
    %p141 = por %p139, %p140
    %p142 = scmp.ne.s32.totalorder %s134, %s137
    %p143 = scmp.eq.s32.totalorder %s19, 0
    %p144 = por %p142, %p143
    %p145 = scmp.ne.s32.totalorder %s134, %s137
    %p146 = scmp.eq.s32.totalorder %s24, 3
    %p147 = por %p145, %p146
    %p148 = scmp.ne.s32.totalorder %s137, %s138
    %p149 = scmp.eq.s32.totalorder %s24, 0
    %p150 = por %p148, %p149
    %p151 = scmp.ne.s32.totalorder %s137, %s138
    %p152 = scmp.eq.s32.totalorder %s25, 3
    %p153 = por %p151, %p152
    %p155 = scmp.ne.s32.totalorder %s138, %s154
    %p156 = scmp.eq.s32.totalorder %s25, 0
    %p157 = por %p155, %p156
    %s159 = sadd.s32 %s158, 1
    %p162 = scmp.eq.s32.totalorder %s19, 3
    %p163 = scmp.ne.s32.totalorder %s158, %s160
    %p164 = scmp.eq.s32.totalorder %s19, 0
    %p165 = por %p163, %p164
    %p166 = scmp.ne.s32.totalorder %s158, %s160
    %p167 = scmp.eq.s32.totalorder %s24, 3
    %p168 = por %p166, %p167
    %p169 = scmp.ne.s32.totalorder %s160, %s161
    %p170 = scmp.eq.s32.totalorder %s24, 0
    %p171 = por %p169, %p170
    %p172 = scmp.ne.s32.totalorder %s160, %s161
    %p173 = scmp.eq.s32.totalorder %s25, 3
    %p174 = por %p172, %p173
    %p176 = scmp.ne.s32.totalorder %s161, %s175
    %p177 = scmp.eq.s32.totalorder %s25, 0
    %p178 = por %p176, %p177
    %s180 = sadd.s32 %s179, 1
    %p183 = scmp.eq.s32.totalorder %s19, 3
    %p184 = scmp.ne.s32.totalorder %s179, %s181
    %p185 = scmp.eq.s32.totalorder %s19, 0
    %p186 = por %p184, %p185
    %p187 = scmp.ne.s32.totalorder %s179, %s181
    %p188 = scmp.eq.s32.totalorder %s24, 3
    %p189 = por %p187, %p188
    %p190 = scmp.ne.s32.totalorder %s181, %s182
    %p191 = scmp.eq.s32.totalorder %s24, 0
    %p192 = por %p190, %p191
    %p193 = scmp.ne.s32.totalorder %s181, %s182
    %p194 = scmp.eq.s32.totalorder %s25, 3
    %p195 = por %p193, %p194
    %p197 = scmp.ne.s32.totalorder %s182, %s196
    %p198 = scmp.eq.s32.totalorder %s25, 0
    %p199 = por %p197, %p198
    %s200 = ssub.s32 %s26, %s45
    %p201 = scmp.eq.s32.totalorder %s200, 0
    %s203 = sadd.s32 %s202, 1
    %s204 = scalar_select %p201, %s202, %s203
    %p207 = pneg %p201
    %p208 = scmp.eq.s32.totalorder %s19, 3
    %p209 = por %p207, %p208
    %p210 = scmp.ne.s32.totalorder %s202, %s205
    %p211 = scmp.eq.s32.totalorder %s19, 0
    %p212 = por %p210, %p211
    %p213 = scmp.ne.s32.totalorder %s202, %s205
    %p214 = scmp.eq.s32.totalorder %s24, 3
    %p215 = por %p213, %p214
    %p216 = scmp.ne.s32.totalorder %s205, %s206
    %p217 = scmp.eq.s32.totalorder %s24, 0
    %p218 = por %p216, %p217
    %p219 = scmp.ne.s32.totalorder %s205, %s206
    %p220 = scmp.eq.s32.totalorder %s25, 3
    %p221 = por %p219, %p220
    %p223 = scmp.ne.s32.totalorder %s206, %s222
    %p224 = scmp.eq.s32.totalorder %s25, 0
    %p225 = por %p223, %p224
    %p226 = scmp.le.s32.totalorder 1, %s19
    %p227 = scmp.lt.s32.totalorder %s19, 5
    %p228 = pnand %p226, %p227
    %p229 = pneg %p228
    // Predicated region
    $region9: #{rgcn_link_prediction_forward.7} parent=5 // pred_check
      _
    $region10: #{rgcn_link_prediction_forward.7} parent=5 // pred_check_branch
      %231 = sbr.rel (%p228) target = $region12
    $region11: #{rgcn_link_prediction_forward.7} parent=5 // pred_region
      %s232 = ssub.s32 %s19, 1
      // Predicated region
      $region13: #{rgcn_link_prediction_forward.7} parent=11 // pred_check
        %p233 = pneg %p171
      $region14: #{rgcn_link_prediction_forward.7} parent=11 // pred_check_branch
        %235 = sbr.rel (%p233) target = $region16
      $region15: #{rgcn_link_prediction_forward.7} parent=11 // pred_region
        _
      $region16: #{rgcn_link_prediction_forward.7} parent=11 // pred_fallthru
        _
      // Predicated region
      $region17: #{rgcn_link_prediction_forward.7} parent=11 // pred_check
        %p236 = pneg %p192
      $region18: #{rgcn_link_prediction_forward.7} parent=11 // pred_check_branch
        %238 = sbr.rel (%p236) target = $region20
      $region19: #{rgcn_link_prediction_forward.7} parent=11 // pred_region
        _
      $region20: #{rgcn_link_prediction_forward.7} parent=11 // pred_fallthru
        _
    $region12: #{rgcn_link_prediction_forward.7} parent=5 // pred_fallthru
      _
    %p239 = scmp.lt.s32.totalorder %s19, 4
    // Predicated region
    $region21: #{rgcn_link_prediction_forward.7} parent=5 // pred_check
      %p240 = pneg %p239
    $region22: #{rgcn_link_prediction_forward.7} parent=5 // pred_check_branch
      %242 = sbr.rel (%p240) target = $region24
    $region23: #{rgcn_link_prediction_forward.7} parent=5 // pred_region
      // Predicated region
      $region25: #{rgcn_link_prediction_forward.7} parent=23 // pred_check
        %p243 = pneg %p62
      $region26: #{rgcn_link_prediction_forward.7} parent=23 // pred_check_branch
        %245 = sbr.rel (%p243) target = $region28
      $region27: #{rgcn_link_prediction_forward.7} parent=23 // pred_region
        %s246 = smul.u32 16, %s26
        %p247 = scmp.lt.s32.totalorder %s27, 1
        %s248 = scalar_select %p247, %s27, 1
        %p249 = scmp.lt.s32.totalorder %s246, 31
        %s250 = scalar_select %p249, %s246, 31
        %p251 = scmp.lt.s32.totalorder %s28, 0
        %s252 = scalar_select %p251, %s28, 0
        %s253 = sadd.s32 %s252, %s250
        %s254 = smul.addr %s248, 32
        %s255 = sadd.s32 %s253, %s254
        %s256 = smul.addr %s255, 4
        %s257 = scalar_lea.vmem %s1, %s256
        %s258 = smul.u32 16, %s26
      $region28: #{rgcn_link_prediction_forward.7} parent=23 // pred_fallthru
        _
      // Predicated region
      $region29: #{rgcn_link_prediction_forward.7} parent=23 // pred_check
        %p259 = pneg %p92
      $region30: #{rgcn_link_prediction_forward.7} parent=23 // pred_check_branch
        %261 = sbr.rel (%p259) target = $region32
      $region31: #{rgcn_link_prediction_forward.7} parent=23 // pred_region
        %s262 = sld [smem:[#allocation5 + %s27]]
        %s263 = sadd.s32 %s262, %s28
        %s264 = smul.u32 16, %s263
        %p265 = scmp.lt.s32.totalorder %s264, 31
        %s266 = scalar_select %p265, %s264, 31
        %s267 = smul.addr %s266, 4
        %s268 = scalar_lea.vmem %s2, %s267
        %s269 = sld [smem:[#allocation5 + %s27]]
        %s270 = sadd.s32 %s269, %s28
        %s271 = smul.u32 16, %s270
      $region32: #{rgcn_link_prediction_forward.7} parent=23 // pred_fallthru
        _
      // Predicated region
      $region33: #{rgcn_link_prediction_forward.7} parent=23 // pred_check
        %p272 = pneg %p118
      $region34: #{rgcn_link_prediction_forward.7} parent=23 // pred_check_branch
        %274 = sbr.rel (%p272) target = $region36
      $region35: #{rgcn_link_prediction_forward.7} parent=23 // pred_region
        %s275 = smul.u32 16, %s26
        %p276 = scmp.lt.s32.totalorder %s275, 31
        %s277 = scalar_select %p276, %s275, 31
        %s278 = smul.addr %s277, 4
        %s279 = scalar_lea.vmem %s3, %s278
        %s280 = smul.u32 16, %s26
      $region36: #{rgcn_link_prediction_forward.7} parent=23 // pred_fallthru
        _
      // Predicated region
      $region37: #{rgcn_link_prediction_forward.7} parent=23 // pred_check
        %p281 = pneg %p144
      $region38: #{rgcn_link_prediction_forward.7} parent=23 // pred_check_branch
        %283 = sbr.rel (%p281) target = $region40
      $region39: #{rgcn_link_prediction_forward.7} parent=23 // pred_region
        %p284 = scmp.lt.s32.totalorder %s27, 1
        %s285 = scalar_select %p284, %s27, 1
        %s286 = smul.addr %s285, 16
        %s287 = smul.addr %s286, 4
        %s288 = scalar_lea.vmem %s4, %s287
      $region40: #{rgcn_link_prediction_forward.7} parent=23 // pred_fallthru
        _
    $region24: #{rgcn_link_prediction_forward.7} parent=5 // pred_fallthru
      _
    %p289 = scmp.le.s32.totalorder 1, %s19
    %p290 = scmp.lt.s32.totalorder %s19, 5
    %p291 = pnand %p289, %p290
    %p292 = pneg %p291
    // Predicated region
    $region41: #{rgcn_link_prediction_forward.7} parent=5 // pred_check
      _
    $region42: #{rgcn_link_prediction_forward.7} parent=5 // pred_check_branch
      %294 = sbr.rel (%p291) target = $region44
    $region43: #{rgcn_link_prediction_forward.7} parent=5 // pred_region
      %s295 = ssub.s32 %s19, 1
      %s296 = smul.u32 16, %s29
      %p297 = scmp.lt.s32.totalorder %s30, 1
      %s298 = scalar_select %p297, %s30, 1
      %p299 = scmp.lt.s32.totalorder %s296, 31
      %s300 = scalar_select %p299, %s296, 31
      %p301 = scmp.lt.s32.totalorder %s31, 0
      %s302 = scalar_select %p301, %s31, 0
      %s303 = sadd.s32 %s302, %s300
      %s304 = smul.addr %s298, 32
      %s305 = sadd.s32 %s303, %s304
      %s306 = smul.addr %s305, 4
      %s307 = scalar_lea.vmem %s1, %s306
      %p308 = pneg %p68
      %p309 = pneg %p65
      %s310 = sld [smem:[#allocation5 + %s30]]
      %s311 = sadd.s32 %s310, %s31
      %s312 = smul.u32 16, %s311
      %p313 = scmp.lt.s32.totalorder %s312, 31
      %s314 = scalar_select %p313, %s312, 31
      %s315 = smul.addr %s314, 4
      %s316 = scalar_lea.vmem %s2, %s315
      %p317 = pneg %p98
      %p318 = pneg %p95
      %s319 = smul.u32 16, %s29
      %p320 = scmp.lt.s32.totalorder %s319, 31
      %s321 = scalar_select %p320, %s319, 31
      %s322 = smul.addr %s321, 4
      %s323 = scalar_lea.vmem %s3, %s322
      %p324 = pneg %p124
      %p325 = pneg %p121
      %p326 = scmp.lt.s32.totalorder %s30, 1
      %s327 = scalar_select %p326, %s30, 1
      %s328 = smul.addr %s327, 16
      %s329 = smul.addr %s328, 4
      %s330 = scalar_lea.vmem %s4, %s329
      %p331 = pneg %p150
      %p332 = pneg %p147
      %p333 = pneg %p171
      %p334 = pneg %p168
      %p335 = pneg %p192
      %p336 = pneg %p189
      %p337 = pneg %p218
      %p338 = pneg %p215
      %s339 = smul.u32 16, %s29
      %p340 = scmp.lt.s32.totalorder %s339, 31
      %s341 = scalar_select %p340, %s339, 31
      %s342 = smul.addr %s341, 4
      %s343 = scalar_lea.vmem %s7, %s342
      %s344 = smul.u32 16, %s29
      %p345 = scmp.lt.s32.totalorder %s30, 1
      %s346 = scalar_select %p345, %s30, 1
      %p347 = scmp.lt.s32.totalorder %s344, 31
      %s348 = scalar_select %p347, %s344, 31
      %p349 = scmp.lt.s32.totalorder %s31, 0
      %s350 = scalar_select %p349, %s31, 0
      %s351 = sadd.s32 %s350, %s348
      %s352 = smul.addr %s346, 32
      %s353 = sadd.s32 %s351, %s352
      %s354 = smul.addr %s353, 4
      %s355 = scalar_lea.vmem %s1, %s354
      %s356 = smul.u32 16, %s29
      %s357 = sld [smem:[#allocation5 + %s30]]
      %s358 = sadd.s32 %s357, %s31
      %s359 = smul.u32 16, %s358
      %p360 = scmp.lt.s32.totalorder %s359, 31
      %s361 = scalar_select %p360, %s359, 31
      %s362 = smul.addr %s361, 4
      %s363 = scalar_lea.vmem %s2, %s362
      %s364 = sld [smem:[#allocation5 + %s30]]
      %s365 = sadd.s32 %s364, %s31
      %s366 = smul.u32 16, %s365
      %s367 = smul.u32 16, %s29
      %p368 = scmp.lt.s32.totalorder %s367, 31
      %s369 = scalar_select %p368, %s367, 31
      %s370 = smul.addr %s369, 4
      %s371 = scalar_lea.vmem %s3, %s370
      %s372 = smul.u32 16, %s29
      %p373 = scmp.lt.s32.totalorder %s30, 1
      %s374 = scalar_select %p373, %s30, 1
      %s375 = smul.addr %s374, 16
      %s376 = smul.addr %s375, 4
      %s377 = scalar_lea.vmem %s4, %s376
      %s378 = smul.u32 16, %s29
      %p379 = scmp.lt.s32.totalorder %s378, 31
      %s380 = scalar_select %p379, %s378, 31
      %s381 = smul.addr %s380, 4
      %s382 = scalar_lea.vmem %s7, %s381
      %s383 = smul.u32 16, %s29
      %p385 = scmp.eq.s32.totalorder %s30, 0
      %p386 = scmp.eq.s32.totalorder %s31, 0
      %p387 = pnand %p385, %p386
      %p388 = pneg %p387
      // Predicated region
      $region45: #{rgcn_link_prediction_forward.7} parent=43 // pred_check
        _
      $region46: #{rgcn_link_prediction_forward.7} parent=43 // pred_check_branch
        %390 = sbr.rel (%p387) target = $region48
      $region47: #{rgcn_link_prediction_forward.7} parent=43 // pred_region
        %v391 = vld [vmem:[%s371] sm:$0xf]
        %v392 = vld [vmem:[%s371 + $0x4] sm:$0xf]
        %v393 = vld [vmem:[%s371 + $0x8] sm:$0xf]
        %v394 = vld [vmem:[%s371 + $0xc] sm:$0xf]
        %v395 = vld [vmem:[%s371 + $0x10] sm:$0xf]
        %v396 = vld [vmem:[%s371 + $0x14] sm:$0xf]
        %v397 = vld [vmem:[%s371 + $0x18] sm:$0xf]
        %v398 = vld [vmem:[%s371 + $0x1c] sm:$0xf]
        %v399 = vld [vmem:[%s371 + $0x20] sm:$0xf]
        %v400 = vld [vmem:[%s371 + $0x24] sm:$0xf]
        %v401 = vld [vmem:[%s371 + $0x28] sm:$0xf]
        %v402 = vld [vmem:[%s371 + $0x2c] sm:$0xf]
        %v403 = vld [vmem:[%s371 + $0x30] sm:$0xf]
        %v404 = vld [vmem:[%s371 + $0x34] sm:$0xf]
        %v405 = vld [vmem:[%s371 + $0x38] sm:$0xf]
        %v406 = vld [vmem:[%s371 + $0x3c] sm:$0xf]
        %v407 = vld [vmem:[%s5] sm:$0xf]
        %v408 = vld [vmem:[%s5 + $0x4] sm:$0xf]
        %v409 = vld [vmem:[%s5 + $0x8] sm:$0xf]
        %v410 = vld [vmem:[%s5 + $0xc] sm:$0xf]
        %v411 = vld [vmem:[%s5 + $0x10] sm:$0xf]
        %v412 = vld [vmem:[%s5 + $0x14] sm:$0xf]
        %v413 = vld [vmem:[%s5 + $0x18] sm:$0xf]
        %v414 = vld [vmem:[%s5 + $0x1c] sm:$0xf]
        %v415 = vld [vmem:[%s5 + $0x20] sm:$0xf]
        %v416 = vld [vmem:[%s5 + $0x24] sm:$0xf]
        %v417 = vld [vmem:[%s5 + $0x28] sm:$0xf]
        %v418 = vld [vmem:[%s5 + $0x2c] sm:$0xf]
        %v419 = vld [vmem:[%s5 + $0x30] sm:$0xf]
        %v420 = vld [vmem:[%s5 + $0x34] sm:$0xf]
        %v421 = vld [vmem:[%s5 + $0x38] sm:$0xf]
        %v422 = vld [vmem:[%s5 + $0x3c] sm:$0xf]
        %v423 = vld [vmem:[%s6] sm:$0x1]
        %v425 = vlaneseq
        %v426 = vshrl.u32 %v425, 7
        %v427 = vsub.s32 0, %v426
        %v428 = vrot.slane %v423, %v427
        %v446 = vunpack.c.l.b16 %v391
        %v447 = vunpack.c.l.b16 %v392
        %v448 = vunpack.c.l.b16 %v393
        %v449 = vunpack.c.l.b16 %v394
        %v450 = vunpack.c.l.b16 %v395
        %v451 = vunpack.c.l.b16 %v396
        %v452 = vunpack.c.l.b16 %v397
        %v453 = vunpack.c.l.b16 %v398
        %v454 = vunpack.c.l.b16 %v399
        %v455 = vunpack.c.l.b16 %v400
        %v456 = vunpack.c.l.b16 %v401
        %v457 = vunpack.c.l.b16 %v402
        %v458 = vunpack.c.l.b16 %v403
        %v459 = vunpack.c.l.b16 %v404
        %v460 = vunpack.c.l.b16 %v405
        %v461 = vunpack.c.l.b16 %v406
        %v462 = vpack.c.b16 %v447, %v446
        %v463 = vpack.c.b16 %v449, %v448
        %v464 = vpack.c.b16 %v451, %v450
        %v465 = vpack.c.b16 %v453, %v452
        %v466 = vpack.c.b16 %v455, %v454
        %v467 = vpack.c.b16 %v457, %v456
        %v468 = vpack.c.b16 %v459, %v458
        %v469 = vpack.c.b16 %v461, %v460
        %v494 = vunpack.c.l.b16 %v407
        %v495 = vunpack.c.l.b16 %v408
        %v496 = vunpack.c.l.b16 %v409
        %v497 = vunpack.c.l.b16 %v410
        %v498 = vunpack.c.l.b16 %v411
        %v499 = vunpack.c.l.b16 %v412
        %v500 = vunpack.c.l.b16 %v413
        %v501 = vunpack.c.l.b16 %v414
        %v502 = vunpack.c.l.b16 %v415
        %v503 = vunpack.c.l.b16 %v416
        %v504 = vunpack.c.l.b16 %v417
        %v505 = vunpack.c.l.b16 %v418
        %v506 = vunpack.c.l.b16 %v419
        %v507 = vunpack.c.l.b16 %v420
        %v508 = vunpack.c.l.b16 %v421
        %v509 = vunpack.c.l.b16 %v422
        %v510 = vpack.c.b16 %v495, %v494
        %v511 = vpack.c.b16 %v497, %v496
        %v512 = vpack.c.b16 %v499, %v498
        %v513 = vpack.c.b16 %v501, %v500
        %v514 = vpack.c.b16 %v503, %v502
        %v515 = vpack.c.b16 %v505, %v504
        %v516 = vpack.c.b16 %v507, %v506
        %v517 = vpack.c.b16 %v509, %v508
        %526 = vmatprep.subr.bf16.mxu0 0
        %527 = vmatpush1.bf16.msra.mxu0 %v510
        %528 = vmatprep.subr.bf16.mxu0 0
        %529 = vmatpush1.bf16.msra.mxu0 %v511
        %530 = vmatprep.subr.bf16.mxu0 0
        %531 = vmatpush1.bf16.msra.mxu0 %v512
        %532 = vmatprep.subr.bf16.mxu0 0
        %533 = vmatpush1.bf16.msra.mxu0 %v513
        %534 = vmatprep.subr.bf16.mxu0 0
        %535 = vmatpush1.bf16.msra.mxu0 %v514
        %536 = vmatprep.subr.bf16.mxu0 0
        %537 = vmatpush1.bf16.msra.mxu0 %v515
        %538 = vmatprep.subr.bf16.mxu0 0
        %539 = vmatpush1.bf16.msra.mxu0 %v516
        %540 = vmatprep.subr.bf16.mxu0 0
        %541 = vmatpush1.bf16.msra.mxu0 %v517
        %542 = vmatprep.subr.bf16.mxu0 0
        %543 = vmatpush1.bf16.msra.mxu0 0
        %544 = vmatprep.subr.bf16.mxu0 0
        %545 = vmatpush1.bf16.msra.mxu0 0
        %546 = vmatprep.subr.bf16.mxu0 0
        %547 = vmatpush1.bf16.msra.mxu0 0
        %548 = vmatprep.subr.bf16.mxu0 0
        %549 = vmatpush1.bf16.msra.mxu0 0
        %550 = vmatprep.subr.bf16.mxu0 0
        %551 = vmatpush1.bf16.msra.mxu0 0
        %552 = vmatprep.subr.bf16.mxu0 0
        %553 = vmatpush1.bf16.msra.mxu0 0
        %554 = vmatprep.subr.bf16.mxu0 0
        %555 = vmatpush1.bf16.msra.mxu0 0
        %556 = vmatprep.subr.bf16.mxu0 0
        %557 = vmatpush1.bf16.msra.mxu0 0
        %558 = vmatprep.mubr.bf16.mxu0 0
        %559 = vmatmul.mubr.bf16.gmra.mrb[0].mxu0 %v462
        %v560 = vpop.f32.mrb[0].mxu0
        %v561 = vadd.f32 %v428, %v560
        %v562 = vpop.f32.mrb[0].mxu0
        %v563 = vpop.f32.mrb[0].mxu0
        %v564 = vadd.f32 %v428, %v563
        %v565 = vpop.f32.mrb[0].mxu0
        %566 = vmatprep.mubr.bf16.mxu0 0
        %567 = vmatmul.mubr.bf16.gmra.mrb[0].mxu0 %v463
        %v568 = vpop.f32.mrb[0].mxu0
        %v569 = vadd.f32 %v428, %v568
        %v570 = vpop.f32.mrb[0].mxu0
        %v571 = vpop.f32.mrb[0].mxu0
        %v572 = vadd.f32 %v428, %v571
        %v573 = vpop.f32.mrb[0].mxu0
        %574 = vmatprep.mubr.bf16.mxu0 0
        %575 = vmatmul.mubr.bf16.gmra.mrb[0].mxu0 %v464
        %v576 = vpop.f32.mrb[0].mxu0
        %v577 = vadd.f32 %v428, %v576
        %v578 = vpop.f32.mrb[0].mxu0
        %v579 = vpop.f32.mrb[0].mxu0
        %v580 = vadd.f32 %v428, %v579
        %v581 = vpop.f32.mrb[0].mxu0
        %582 = vmatprep.mubr.bf16.mxu0 0
        %583 = vmatmul.mubr.bf16.gmra.mrb[0].mxu0 %v465
        %v584 = vpop.f32.mrb[0].mxu0
        %v585 = vadd.f32 %v428, %v584
        %v586 = vpop.f32.mrb[0].mxu0
        %v587 = vpop.f32.mrb[0].mxu0
        %v588 = vadd.f32 %v428, %v587
        %v589 = vpop.f32.mrb[0].mxu0
        %590 = vmatprep.mubr.bf16.mxu0 0
        %591 = vmatmul.mubr.bf16.gmra.mrb[0].mxu0 %v466
        %v592 = vpop.f32.mrb[0].mxu0
        %v593 = vadd.f32 %v428, %v592
        %v594 = vpop.f32.mrb[0].mxu0
        %v595 = vpop.f32.mrb[0].mxu0
        %v596 = vadd.f32 %v428, %v595
        %v597 = vpop.f32.mrb[0].mxu0
        %598 = vmatprep.mubr.bf16.mxu0 0
        %599 = vmatmul.mubr.bf16.gmra.mrb[0].mxu0 %v467
        %v600 = vpop.f32.mrb[0].mxu0
        %v601 = vadd.f32 %v428, %v600
        %v602 = vpop.f32.mrb[0].mxu0
        %v603 = vpop.f32.mrb[0].mxu0
        %v604 = vadd.f32 %v428, %v603
        %v605 = vpop.f32.mrb[0].mxu0
        %606 = vmatprep.mubr.bf16.mxu0 0
        %607 = vmatmul.mubr.bf16.gmra.mrb[0].mxu0 %v468
        %v608 = vpop.f32.mrb[0].mxu0
        %v609 = vadd.f32 %v428, %v608
        %v610 = vpop.f32.mrb[0].mxu0
        %v611 = vpop.f32.mrb[0].mxu0
        %v612 = vadd.f32 %v428, %v611
        %v613 = vpop.f32.mrb[0].mxu0
        %614 = vmatprep.mubr.bf16.mxu0 0
        %615 = vmatmul.mubr.bf16.gmra.mrb[0].mxu0 %v469
        %v616 = vpop.f32.mrb[0].mxu0
        %v617 = vadd.f32 %v428, %v616
        %v618 = vpop.f32.mrb[0].mxu0
        %v619 = vpop.f32.mrb[0].mxu0
        %v620 = vadd.f32 %v428, %v619
        %v621 = vpop.f32.mrb[0].mxu0
        %622 = vdwg.mxu0
        %623 = vst [vmem:[#allocation3] sm:$0xff] %v561
        %624 = vst [vmem:[#allocation3 + $0x8] sm:$0xff] %v564
        %625 = vst [vmem:[#allocation3 + $0x10] sm:$0xff] %v569
        %626 = vst [vmem:[#allocation3 + $0x18] sm:$0xff] %v572
        %627 = vst [vmem:[#allocation3 + $0x20] sm:$0xff] %v577
        %628 = vst [vmem:[#allocation3 + $0x28] sm:$0xff] %v580
        %629 = vst [vmem:[#allocation3 + $0x30] sm:$0xff] %v585
        %630 = vst [vmem:[#allocation3 + $0x38] sm:$0xff] %v588
        %631 = vst [vmem:[#allocation3 + $0x40] sm:$0xff] %v593
        %632 = vst [vmem:[#allocation3 + $0x48] sm:$0xff] %v596
        %633 = vst [vmem:[#allocation3 + $0x50] sm:$0xff] %v601
        %634 = vst [vmem:[#allocation3 + $0x58] sm:$0xff] %v604
        %635 = vst [vmem:[#allocation3 + $0x60] sm:$0xff] %v609
        %636 = vst [vmem:[#allocation3 + $0x68] sm:$0xff] %v612
        %637 = vst [vmem:[#allocation3 + $0x70] sm:$0xff] %v617
        %638 = vst [vmem:[#allocation3 + $0x78] sm:$0xff] %v620
      $region48: #{rgcn_link_prediction_forward.7} parent=43 // pred_fallthru
        _
      // Predicated region
      $region49: #{rgcn_link_prediction_forward.7} parent=43 // pred_check
        %p639 = pneg %p386
      $region50: #{rgcn_link_prediction_forward.7} parent=43 // pred_check_branch
        %641 = sbr.rel (%p639) target = $region52
      $region51: #{rgcn_link_prediction_forward.7} parent=43 // pred_region
        %642 = vst [vmem:[#allocation2] sm:$0xff] 0.0
        %643 = vst [vmem:[#allocation2 + $0x8] sm:$0xff] 0.0
        %644 = vst [vmem:[#allocation2 + $0x10] sm:$0xff] 0.0
        %645 = vst [vmem:[#allocation2 + $0x18] sm:$0xff] 0.0
        %646 = vst [vmem:[#allocation2 + $0x20] sm:$0xff] 0.0
        %647 = vst [vmem:[#allocation2 + $0x28] sm:$0xff] 0.0
        %648 = vst [vmem:[#allocation2 + $0x30] sm:$0xff] 0.0
        %649 = vst [vmem:[#allocation2 + $0x38] sm:$0xff] 0.0
        %650 = vst [vmem:[#allocation2 + $0x40] sm:$0xff] 0.0
        %651 = vst [vmem:[#allocation2 + $0x48] sm:$0xff] 0.0
        %652 = vst [vmem:[#allocation2 + $0x50] sm:$0xff] 0.0
        %653 = vst [vmem:[#allocation2 + $0x58] sm:$0xff] 0.0
        %654 = vst [vmem:[#allocation2 + $0x60] sm:$0xff] 0.0
        %655 = vst [vmem:[#allocation2 + $0x68] sm:$0xff] 0.0
        %656 = vst [vmem:[#allocation2 + $0x70] sm:$0xff] 0.0
        %657 = vst [vmem:[#allocation2 + $0x78] sm:$0xff] 0.0
      $region52: #{rgcn_link_prediction_forward.7} parent=43 // pred_fallthru
        _
      %v658 = vld [vmem:[#allocation2] sm:$0xff]
      %v659 = vld [vmem:[#allocation2 + $0x8] sm:$0xff]
      %v660 = vld [vmem:[#allocation2 + $0x10] sm:$0xff]
      %v661 = vld [vmem:[#allocation2 + $0x18] sm:$0xff]
      %v662 = vld [vmem:[#allocation2 + $0x20] sm:$0xff]
      %v663 = vld [vmem:[#allocation2 + $0x28] sm:$0xff]
      %v664 = vld [vmem:[#allocation2 + $0x30] sm:$0xff]
      %v665 = vld [vmem:[#allocation2 + $0x38] sm:$0xff]
      %v666 = vld [vmem:[#allocation2 + $0x40] sm:$0xff]
      %v667 = vld [vmem:[#allocation2 + $0x48] sm:$0xff]
      %v668 = vld [vmem:[#allocation2 + $0x50] sm:$0xff]
      %v669 = vld [vmem:[#allocation2 + $0x58] sm:$0xff]
      %v670 = vld [vmem:[#allocation2 + $0x60] sm:$0xff]
      %v671 = vld [vmem:[#allocation2 + $0x68] sm:$0xff]
      %v672 = vld [vmem:[#allocation2 + $0x70] sm:$0xff]
      %v673 = vld [vmem:[#allocation2 + $0x78] sm:$0xff]
      %v674 = vld [vmem:[%s355] sm:$0xf]
      %v675 = vld [vmem:[%s355 + $0x4] sm:$0xf]
      %v676 = vld [vmem:[%s355 + $0x8] sm:$0xf]
      %v677 = vld [vmem:[%s355 + $0xc] sm:$0xf]
      %v678 = vld [vmem:[%s355 + $0x10] sm:$0xf]
      %v679 = vld [vmem:[%s355 + $0x14] sm:$0xf]
      %v680 = vld [vmem:[%s355 + $0x18] sm:$0xf]
      %v681 = vld [vmem:[%s355 + $0x1c] sm:$0xf]
      %v682 = vld [vmem:[%s355 + $0x20] sm:$0xf]
      %v683 = vld [vmem:[%s355 + $0x24] sm:$0xf]
      %v684 = vld [vmem:[%s355 + $0x28] sm:$0xf]
      %v685 = vld [vmem:[%s355 + $0x2c] sm:$0xf]
      %v686 = vld [vmem:[%s355 + $0x30] sm:$0xf]
      %v687 = vld [vmem:[%s355 + $0x34] sm:$0xf]
      %v688 = vld [vmem:[%s355 + $0x38] sm:$0xf]
      %v689 = vld [vmem:[%s355 + $0x3c] sm:$0xf]
      %v690 = vld [vmem:[%s363] sm:$0xf]
      %v691 = vld [vmem:[%s363 + $0x4] sm:$0xf]
      %v692 = vld [vmem:[%s363 + $0x8] sm:$0xf]
      %v693 = vld [vmem:[%s363 + $0xc] sm:$0xf]
      %v694 = vld [vmem:[%s363 + $0x10] sm:$0xf]
      %v695 = vld [vmem:[%s363 + $0x14] sm:$0xf]
      %v696 = vld [vmem:[%s363 + $0x18] sm:$0xf]
      %v697 = vld [vmem:[%s363 + $0x1c] sm:$0xf]
      %v698 = vld [vmem:[%s363 + $0x20] sm:$0xf]
      %v699 = vld [vmem:[%s363 + $0x24] sm:$0xf]
      %v700 = vld [vmem:[%s363 + $0x28] sm:$0xf]
      %v701 = vld [vmem:[%s363 + $0x2c] sm:$0xf]
      %v702 = vld [vmem:[%s363 + $0x30] sm:$0xf]
      %v703 = vld [vmem:[%s363 + $0x34] sm:$0xf]
      %v704 = vld [vmem:[%s363 + $0x38] sm:$0xf]
      %v705 = vld [vmem:[%s363 + $0x3c] sm:$0xf]
      %v722 = vunpack.c.l.b16 %v674
      %v723 = vunpack.c.l.b16 %v675
      %v724 = vunpack.c.l.b16 %v676
      %v725 = vunpack.c.l.b16 %v677
      %v726 = vunpack.c.l.b16 %v678
      %v727 = vunpack.c.l.b16 %v679
      %v728 = vunpack.c.l.b16 %v680
      %v729 = vunpack.c.l.b16 %v681
      %v730 = vunpack.c.l.b16 %v682
      %v731 = vunpack.c.l.b16 %v683
      %v732 = vunpack.c.l.b16 %v684
      %v733 = vunpack.c.l.b16 %v685
      %v734 = vunpack.c.l.b16 %v686
      %v735 = vunpack.c.l.b16 %v687
      %v736 = vunpack.c.l.b16 %v688
      %v737 = vunpack.c.l.b16 %v689
      %v738 = vpack.c.b16 %v723, %v722
      %v739 = vpack.c.b16 %v725, %v724
      %v740 = vpack.c.b16 %v727, %v726
      %v741 = vpack.c.b16 %v729, %v728
      %v742 = vpack.c.b16 %v731, %v730
      %v743 = vpack.c.b16 %v733, %v732
      %v744 = vpack.c.b16 %v735, %v734
      %v745 = vpack.c.b16 %v737, %v736
      %v770 = vunpack.c.l.b16 %v690
      %v771 = vunpack.c.l.b16 %v691
      %v772 = vunpack.c.l.b16 %v692
      %v773 = vunpack.c.l.b16 %v693
      %v774 = vunpack.c.l.b16 %v694
      %v775 = vunpack.c.l.b16 %v695
      %v776 = vunpack.c.l.b16 %v696
      %v777 = vunpack.c.l.b16 %v697
      %v778 = vunpack.c.l.b16 %v698
      %v779 = vunpack.c.l.b16 %v699
      %v780 = vunpack.c.l.b16 %v700
      %v781 = vunpack.c.l.b16 %v701
      %v782 = vunpack.c.l.b16 %v702
      %v783 = vunpack.c.l.b16 %v703
      %v784 = vunpack.c.l.b16 %v704
      %v785 = vunpack.c.l.b16 %v705
      %v786 = vpack.c.b16 %v771, %v770
      %v787 = vpack.c.b16 %v773, %v772
      %v788 = vpack.c.b16 %v775, %v774
      %v789 = vpack.c.b16 %v777, %v776
      %v790 = vpack.c.b16 %v779, %v778
      %v791 = vpack.c.b16 %v781, %v780
      %v792 = vpack.c.b16 %v783, %v782
      %v793 = vpack.c.b16 %v785, %v784
      %802 = vmatprep.subr.bf16.mxu0 0
      %803 = vmatpush1.bf16.msra.mxu0 %v786
      %804 = vmatprep.subr.bf16.mxu0 0
      %805 = vmatpush1.bf16.msra.mxu0 %v787
      %806 = vmatprep.subr.bf16.mxu0 0
      %807 = vmatpush1.bf16.msra.mxu0 %v788
      %808 = vmatprep.subr.bf16.mxu0 0
      %809 = vmatpush1.bf16.msra.mxu0 %v789
      %810 = vmatprep.subr.bf16.mxu0 0
      %811 = vmatpush1.bf16.msra.mxu0 %v790
      %812 = vmatprep.subr.bf16.mxu0 0
      %813 = vmatpush1.bf16.msra.mxu0 %v791
      %814 = vmatprep.subr.bf16.mxu0 0
      %815 = vmatpush1.bf16.msra.mxu0 %v792
      %816 = vmatprep.subr.bf16.mxu0 0
      %817 = vmatpush1.bf16.msra.mxu0 %v793
      %818 = vmatprep.subr.bf16.mxu0 0
      %819 = vmatpush1.bf16.msra.mxu0 0
      %820 = vmatprep.subr.bf16.mxu0 0
      %821 = vmatpush1.bf16.msra.mxu0 0
      %822 = vmatprep.subr.bf16.mxu0 0
      %823 = vmatpush1.bf16.msra.mxu0 0
      %824 = vmatprep.subr.bf16.mxu0 0
      %825 = vmatpush1.bf16.msra.mxu0 0
      %826 = vmatprep.subr.bf16.mxu0 0
      %827 = vmatpush1.bf16.msra.mxu0 0
      %828 = vmatprep.subr.bf16.mxu0 0
      %829 = vmatpush1.bf16.msra.mxu0 0
      %830 = vmatprep.subr.bf16.mxu0 0
      %831 = vmatpush1.bf16.msra.mxu0 0
      %832 = vmatprep.subr.bf16.mxu0 0
      %833 = vmatpush1.bf16.msra.mxu0 0
      %834 = vmatprep.mubr.bf16.mxu0 0
      %835 = vmatmul.mubr.bf16.gmra.mrb[0].mxu0 %v738
      %v836 = vpop.f32.mrb[0].mxu0
      %v837 = vadd.f32 0.0, %v836
      %v838 = vpop.f32.mrb[0].mxu0
      %v839 = vpop.f32.mrb[0].mxu0
      %v840 = vadd.f32 0.0, %v839
      %v841 = vpop.f32.mrb[0].mxu0
      %842 = vmatprep.mubr.bf16.mxu0 0
      %843 = vmatmul.mubr.bf16.gmra.mrb[0].mxu0 %v739
      %v844 = vpop.f32.mrb[0].mxu0
      %v845 = vadd.f32 0.0, %v844
      %v846 = vpop.f32.mrb[0].mxu0
      %v847 = vpop.f32.mrb[0].mxu0
      %v848 = vadd.f32 0.0, %v847
      %v849 = vpop.f32.mrb[0].mxu0
      %850 = vmatprep.mubr.bf16.mxu0 0
      %851 = vmatmul.mubr.bf16.gmra.mrb[0].mxu0 %v740
      %v852 = vpop.f32.mrb[0].mxu0
      %v853 = vadd.f32 0.0, %v852
      %v854 = vpop.f32.mrb[0].mxu0
      %v855 = vpop.f32.mrb[0].mxu0
      %v856 = vadd.f32 0.0, %v855
      %v857 = vpop.f32.mrb[0].mxu0
      %858 = vmatprep.mubr.bf16.mxu0 0
      %859 = vmatmul.mubr.bf16.gmra.mrb[0].mxu0 %v741
      %v860 = vpop.f32.mrb[0].mxu0
      %v861 = vadd.f32 0.0, %v860
      %v862 = vpop.f32.mrb[0].mxu0
      %v863 = vpop.f32.mrb[0].mxu0
      %v864 = vadd.f32 0.0, %v863
      %v865 = vpop.f32.mrb[0].mxu0
      %866 = vmatprep.mubr.bf16.mxu0 0
      %867 = vmatmul.mubr.bf16.gmra.mrb[0].mxu0 %v742
      %v868 = vpop.f32.mrb[0].mxu0
      %v869 = vadd.f32 0.0, %v868
      %v870 = vpop.f32.mrb[0].mxu0
      %v871 = vpop.f32.mrb[0].mxu0
      %v872 = vadd.f32 0.0, %v871
      %v873 = vpop.f32.mrb[0].mxu0
      %874 = vmatprep.mubr.bf16.mxu0 0
      %875 = vmatmul.mubr.bf16.gmra.mrb[0].mxu0 %v743
      %v876 = vpop.f32.mrb[0].mxu0
      %v877 = vadd.f32 0.0, %v876
      %v878 = vpop.f32.mrb[0].mxu0
      %v879 = vpop.f32.mrb[0].mxu0
      %v880 = vadd.f32 0.0, %v879
      %v881 = vpop.f32.mrb[0].mxu0
      %882 = vmatprep.mubr.bf16.mxu0 0
      %883 = vmatmul.mubr.bf16.gmra.mrb[0].mxu0 %v744
      %v884 = vpop.f32.mrb[0].mxu0
      %v885 = vadd.f32 0.0, %v884
      %v886 = vpop.f32.mrb[0].mxu0
      %v887 = vpop.f32.mrb[0].mxu0
      %v888 = vadd.f32 0.0, %v887
      %v889 = vpop.f32.mrb[0].mxu0
      %890 = vmatprep.mubr.bf16.mxu0 0
      %891 = vmatmul.mubr.bf16.gmra.mrb[0].mxu0 %v745
      %v892 = vpop.f32.mrb[0].mxu0
      %v893 = vadd.f32 0.0, %v892
      %v894 = vpop.f32.mrb[0].mxu0
      %v895 = vpop.f32.mrb[0].mxu0
      %v896 = vadd.f32 0.0, %v895
      %v897 = vpop.f32.mrb[0].mxu0
      %898 = vdwg.mxu0
      %v899 = vadd.f32 %v658, %v837
      %v900 = vadd.f32 %v659, %v840
      %v901 = vadd.f32 %v660, %v845
      %v902 = vadd.f32 %v661, %v848
      %v903 = vadd.f32 %v662, %v853
      %v904 = vadd.f32 %v663, %v856
      %v905 = vadd.f32 %v664, %v861
      %v906 = vadd.f32 %v665, %v864
      %v907 = vadd.f32 %v666, %v869
      %v908 = vadd.f32 %v667, %v872
      %v909 = vadd.f32 %v668, %v877
      %v910 = vadd.f32 %v669, %v880
      %v911 = vadd.f32 %v670, %v885
      %v912 = vadd.f32 %v671, %v888
      %v913 = vadd.f32 %v672, %v893
      %v914 = vadd.f32 %v673, %v896
      %915 = vst [vmem:[#allocation2] sm:$0xff] %v899
      %916 = vst [vmem:[#allocation2 + $0x8] sm:$0xff] %v900
      %917 = vst [vmem:[#allocation2 + $0x10] sm:$0xff] %v901
      %918 = vst [vmem:[#allocation2 + $0x18] sm:$0xff] %v902
      %919 = vst [vmem:[#allocation2 + $0x20] sm:$0xff] %v903
      %920 = vst [vmem:[#allocation2 + $0x28] sm:$0xff] %v904
      %921 = vst [vmem:[#allocation2 + $0x30] sm:$0xff] %v905
      %922 = vst [vmem:[#allocation2 + $0x38] sm:$0xff] %v906
      %923 = vst [vmem:[#allocation2 + $0x40] sm:$0xff] %v907
      %924 = vst [vmem:[#allocation2 + $0x48] sm:$0xff] %v908
      %925 = vst [vmem:[#allocation2 + $0x50] sm:$0xff] %v909
      %926 = vst [vmem:[#allocation2 + $0x58] sm:$0xff] %v910
      %927 = vst [vmem:[#allocation2 + $0x60] sm:$0xff] %v911
      %928 = vst [vmem:[#allocation2 + $0x68] sm:$0xff] %v912
      %929 = vst [vmem:[#allocation2 + $0x70] sm:$0xff] %v913
      %930 = vst [vmem:[#allocation2 + $0x78] sm:$0xff] %v914
      // Predicated region
      $region53: #{rgcn_link_prediction_forward.7} parent=43 // pred_check
        %p931 = pneg %p386
      $region54: #{rgcn_link_prediction_forward.7} parent=43 // pred_check_branch
        %933 = sbr.rel (%p931) target = $region56
      $region55: #{rgcn_link_prediction_forward.7} parent=43 // pred_region
        %v934 = vld [vmem:[#allocation3] sm:$0xff]
        %v935 = vld [vmem:[#allocation3 + $0x8] sm:$0xff]
        %v936 = vld [vmem:[#allocation3 + $0x10] sm:$0xff]
        %v937 = vld [vmem:[#allocation3 + $0x18] sm:$0xff]
        %v938 = vld [vmem:[#allocation3 + $0x20] sm:$0xff]
        %v939 = vld [vmem:[#allocation3 + $0x28] sm:$0xff]
        %v940 = vld [vmem:[#allocation3 + $0x30] sm:$0xff]
        %v941 = vld [vmem:[#allocation3 + $0x38] sm:$0xff]
        %v942 = vld [vmem:[#allocation3 + $0x40] sm:$0xff]
        %v943 = vld [vmem:[#allocation3 + $0x48] sm:$0xff]
        %v944 = vld [vmem:[#allocation3 + $0x50] sm:$0xff]
        %v945 = vld [vmem:[#allocation3 + $0x58] sm:$0xff]
        %v946 = vld [vmem:[#allocation3 + $0x60] sm:$0xff]
        %v947 = vld [vmem:[#allocation3 + $0x68] sm:$0xff]
        %v948 = vld [vmem:[#allocation3 + $0x70] sm:$0xff]
        %v949 = vld [vmem:[#allocation3 + $0x78] sm:$0xff]
        %v950 = vld [vmem:[#allocation2] sm:$0xff]
        %v951 = vld [vmem:[#allocation2 + $0x8] sm:$0xff]
        %v952 = vld [vmem:[#allocation2 + $0x10] sm:$0xff]
        %v953 = vld [vmem:[#allocation2 + $0x18] sm:$0xff]
        %v954 = vld [vmem:[#allocation2 + $0x20] sm:$0xff]
        %v955 = vld [vmem:[#allocation2 + $0x28] sm:$0xff]
        %v956 = vld [vmem:[#allocation2 + $0x30] sm:$0xff]
        %v957 = vld [vmem:[#allocation2 + $0x38] sm:$0xff]
        %v958 = vld [vmem:[#allocation2 + $0x40] sm:$0xff]
        %v959 = vld [vmem:[#allocation2 + $0x48] sm:$0xff]
        %v960 = vld [vmem:[#allocation2 + $0x50] sm:$0xff]
        %v961 = vld [vmem:[#allocation2 + $0x58] sm:$0xff]
        %v962 = vld [vmem:[#allocation2 + $0x60] sm:$0xff]
        %v963 = vld [vmem:[#allocation2 + $0x68] sm:$0xff]
        %v964 = vld [vmem:[#allocation2 + $0x70] sm:$0xff]
        %v965 = vld [vmem:[#allocation2 + $0x78] sm:$0xff]
        %v966 = vpack.c.bf16 %v951, %v950
        %v967 = vpack.c.bf16 %v953, %v952
        %v968 = vpack.c.bf16 %v955, %v954
        %v969 = vpack.c.bf16 %v957, %v956
        %v970 = vpack.c.bf16 %v959, %v958
        %v971 = vpack.c.bf16 %v961, %v960
        %v972 = vpack.c.bf16 %v963, %v962
        %v973 = vpack.c.bf16 %v965, %v964
        %v974 = vld [vmem:[%s377] sm:$0xf]
        %v975 = vld [vmem:[%s377 + $0x4] sm:$0xf]
        %v976 = vld [vmem:[%s377 + $0x8] sm:$0xf]
        %v977 = vld [vmem:[%s377 + $0xc] sm:$0xf]
        %v978 = vld [vmem:[%s377 + $0x10] sm:$0xf]
        %v979 = vld [vmem:[%s377 + $0x14] sm:$0xf]
        %v980 = vld [vmem:[%s377 + $0x18] sm:$0xf]
        %v981 = vld [vmem:[%s377 + $0x1c] sm:$0xf]
        %v982 = vld [vmem:[%s377 + $0x20] sm:$0xf]
        %v983 = vld [vmem:[%s377 + $0x24] sm:$0xf]
        %v984 = vld [vmem:[%s377 + $0x28] sm:$0xf]
        %v985 = vld [vmem:[%s377 + $0x2c] sm:$0xf]
        %v986 = vld [vmem:[%s377 + $0x30] sm:$0xf]
        %v987 = vld [vmem:[%s377 + $0x34] sm:$0xf]
        %v988 = vld [vmem:[%s377 + $0x38] sm:$0xf]
        %v989 = vld [vmem:[%s377 + $0x3c] sm:$0xf]
        %v1006 = vunpack.c.l.b16 %v974
        %v1007 = vunpack.c.l.b16 %v975
        %v1008 = vunpack.c.l.b16 %v976
        %v1009 = vunpack.c.l.b16 %v977
        %v1010 = vunpack.c.l.b16 %v978
        %v1011 = vunpack.c.l.b16 %v979
        %v1012 = vunpack.c.l.b16 %v980
        %v1013 = vunpack.c.l.b16 %v981
        %v1014 = vunpack.c.l.b16 %v982
        %v1015 = vunpack.c.l.b16 %v983
        %v1016 = vunpack.c.l.b16 %v984
        %v1017 = vunpack.c.l.b16 %v985
        %v1018 = vunpack.c.l.b16 %v986
        %v1019 = vunpack.c.l.b16 %v987
        %v1020 = vunpack.c.l.b16 %v988
        %v1021 = vunpack.c.l.b16 %v989
        %v1022 = vpack.c.b16 %v1007, %v1006
        %v1023 = vpack.c.b16 %v1009, %v1008
        %v1024 = vpack.c.b16 %v1011, %v1010
        %v1025 = vpack.c.b16 %v1013, %v1012
        %v1026 = vpack.c.b16 %v1015, %v1014
        %v1027 = vpack.c.b16 %v1017, %v1016
        %v1028 = vpack.c.b16 %v1019, %v1018
        %v1029 = vpack.c.b16 %v1021, %v1020
        %1038 = vmatprep.subr.bf16.mxu0 0
        %1039 = vmatpush1.bf16.msra.mxu0 %v1022
        %1040 = vmatprep.subr.bf16.mxu0 0
        %1041 = vmatpush1.bf16.msra.mxu0 %v1023
        %1042 = vmatprep.subr.bf16.mxu0 0
        %1043 = vmatpush1.bf16.msra.mxu0 %v1024
        %1044 = vmatprep.subr.bf16.mxu0 0
        %1045 = vmatpush1.bf16.msra.mxu0 %v1025
        %1046 = vmatprep.subr.bf16.mxu0 0
        %1047 = vmatpush1.bf16.msra.mxu0 %v1026
        %1048 = vmatprep.subr.bf16.mxu0 0
        %1049 = vmatpush1.bf16.msra.mxu0 %v1027
        %1050 = vmatprep.subr.bf16.mxu0 0
        %1051 = vmatpush1.bf16.msra.mxu0 %v1028
        %1052 = vmatprep.subr.bf16.mxu0 0
        %1053 = vmatpush1.bf16.msra.mxu0 %v1029
        %1054 = vmatprep.subr.bf16.mxu0 0
        %1055 = vmatpush1.bf16.msra.mxu0 0
        %1056 = vmatprep.subr.bf16.mxu0 0
        %1057 = vmatpush1.bf16.msra.mxu0 0
        %1058 = vmatprep.subr.bf16.mxu0 0
        %1059 = vmatpush1.bf16.msra.mxu0 0
        %1060 = vmatprep.subr.bf16.mxu0 0
        %1061 = vmatpush1.bf16.msra.mxu0 0
        %1062 = vmatprep.subr.bf16.mxu0 0
        %1063 = vmatpush1.bf16.msra.mxu0 0
        %1064 = vmatprep.subr.bf16.mxu0 0
        %1065 = vmatpush1.bf16.msra.mxu0 0
        %1066 = vmatprep.subr.bf16.mxu0 0
        %1067 = vmatpush1.bf16.msra.mxu0 0
        %1068 = vmatprep.subr.bf16.mxu0 0
        %1069 = vmatpush1.bf16.msra.mxu0 0
        %1070 = vmatprep.mubr.bf16.mxu0 0
        %1071 = vmatmul.mubr.bf16.gmra.mrb[0].mxu0 %v966
        %v1072 = vpop.f32.mrb[0].mxu0
        %v1073 = vadd.f32 0.0, %v1072
        %v1074 = vpop.f32.mrb[0].mxu0
        %v1075 = vpop.f32.mrb[0].mxu0
        %v1076 = vadd.f32 0.0, %v1075
        %v1077 = vpop.f32.mrb[0].mxu0
        %1078 = vmatprep.mubr.bf16.mxu0 0
        %1079 = vmatmul.mubr.bf16.gmra.mrb[0].mxu0 %v967
        %v1080 = vpop.f32.mrb[0].mxu0
        %v1081 = vadd.f32 0.0, %v1080
        %v1082 = vpop.f32.mrb[0].mxu0
        %v1083 = vpop.f32.mrb[0].mxu0
        %v1084 = vadd.f32 0.0, %v1083
        %v1085 = vpop.f32.mrb[0].mxu0
        %1086 = vmatprep.mubr.bf16.mxu0 0
        %1087 = vmatmul.mubr.bf16.gmra.mrb[0].mxu0 %v968
        %v1088 = vpop.f32.mrb[0].mxu0
        %v1089 = vadd.f32 0.0, %v1088
        %v1090 = vpop.f32.mrb[0].mxu0
        %v1091 = vpop.f32.mrb[0].mxu0
        %v1092 = vadd.f32 0.0, %v1091
        %v1093 = vpop.f32.mrb[0].mxu0
        %1094 = vmatprep.mubr.bf16.mxu0 0
        %1095 = vmatmul.mubr.bf16.gmra.mrb[0].mxu0 %v969
        %v1096 = vpop.f32.mrb[0].mxu0
        %v1097 = vadd.f32 0.0, %v1096
        %v1098 = vpop.f32.mrb[0].mxu0
        %v1099 = vpop.f32.mrb[0].mxu0
        %v1100 = vadd.f32 0.0, %v1099
        %v1101 = vpop.f32.mrb[0].mxu0
        %1102 = vmatprep.mubr.bf16.mxu0 0
        %1103 = vmatmul.mubr.bf16.gmra.mrb[0].mxu0 %v970
        %v1104 = vpop.f32.mrb[0].mxu0
        %v1105 = vadd.f32 0.0, %v1104
        %v1106 = vpop.f32.mrb[0].mxu0
        %v1107 = vpop.f32.mrb[0].mxu0
        %v1108 = vadd.f32 0.0, %v1107
        %v1109 = vpop.f32.mrb[0].mxu0
        %1110 = vmatprep.mubr.bf16.mxu0 0
        %1111 = vmatmul.mubr.bf16.gmra.mrb[0].mxu0 %v971
        %v1112 = vpop.f32.mrb[0].mxu0
        %v1113 = vadd.f32 0.0, %v1112
        %v1114 = vpop.f32.mrb[0].mxu0
        %v1115 = vpop.f32.mrb[0].mxu0
        %v1116 = vadd.f32 0.0, %v1115
        %v1117 = vpop.f32.mrb[0].mxu0
        %1118 = vmatprep.mubr.bf16.mxu0 0
        %1119 = vmatmul.mubr.bf16.gmra.mrb[0].mxu0 %v972
        %v1120 = vpop.f32.mrb[0].mxu0
        %v1121 = vadd.f32 0.0, %v1120
        %v1122 = vpop.f32.mrb[0].mxu0
        %v1123 = vpop.f32.mrb[0].mxu0
        %v1124 = vadd.f32 0.0, %v1123
        %v1125 = vpop.f32.mrb[0].mxu0
        %1126 = vmatprep.mubr.bf16.mxu0 0
        %1127 = vmatmul.mubr.bf16.gmra.mrb[0].mxu0 %v973
        %v1128 = vpop.f32.mrb[0].mxu0
        %v1129 = vadd.f32 0.0, %v1128
        %v1130 = vpop.f32.mrb[0].mxu0
        %v1131 = vpop.f32.mrb[0].mxu0
        %v1132 = vadd.f32 0.0, %v1131
        %v1133 = vpop.f32.mrb[0].mxu0
        %1134 = vdwg.mxu0
        %v1135 = vadd.f32 %v934, %v1073
        %v1136 = vadd.f32 %v935, %v1076
        %v1137 = vadd.f32 %v936, %v1081
        %v1138 = vadd.f32 %v937, %v1084
        %v1139 = vadd.f32 %v938, %v1089
        %v1140 = vadd.f32 %v939, %v1092
        %v1141 = vadd.f32 %v940, %v1097
        %v1142 = vadd.f32 %v941, %v1100
        %v1143 = vadd.f32 %v942, %v1105
        %v1144 = vadd.f32 %v943, %v1108
        %v1145 = vadd.f32 %v944, %v1113
        %v1146 = vadd.f32 %v945, %v1116
        %v1147 = vadd.f32 %v946, %v1121
        %v1148 = vadd.f32 %v947, %v1124
        %v1149 = vadd.f32 %v948, %v1129
        %v1150 = vadd.f32 %v949, %v1132
        %1151 = vst [vmem:[#allocation3] sm:$0xff] %v1135
        %1152 = vst [vmem:[#allocation3 + $0x8] sm:$0xff] %v1136
        %1153 = vst [vmem:[#allocation3 + $0x10] sm:$0xff] %v1137
        %1154 = vst [vmem:[#allocation3 + $0x18] sm:$0xff] %v1138
        %1155 = vst [vmem:[#allocation3 + $0x20] sm:$0xff] %v1139
        %1156 = vst [vmem:[#allocation3 + $0x28] sm:$0xff] %v1140
        %1157 = vst [vmem:[#allocation3 + $0x30] sm:$0xff] %v1141
        %1158 = vst [vmem:[#allocation3 + $0x38] sm:$0xff] %v1142
        %1159 = vst [vmem:[#allocation3 + $0x40] sm:$0xff] %v1143
        %1160 = vst [vmem:[#allocation3 + $0x48] sm:$0xff] %v1144
        %1161 = vst [vmem:[#allocation3 + $0x50] sm:$0xff] %v1145
        %1162 = vst [vmem:[#allocation3 + $0x58] sm:$0xff] %v1146
        %1163 = vst [vmem:[#allocation3 + $0x60] sm:$0xff] %v1147
        %1164 = vst [vmem:[#allocation3 + $0x68] sm:$0xff] %v1148
        %1165 = vst [vmem:[#allocation3 + $0x70] sm:$0xff] %v1149
        %1166 = vst [vmem:[#allocation3 + $0x78] sm:$0xff] %v1150
      $region56: #{rgcn_link_prediction_forward.7} parent=43 // pred_fallthru
        _
      %p1167 = scmp.eq.s32.totalorder %s30, 1
      %p1168 = pnand %p1167, %p386
      %p1169 = pneg %p1168
      // Predicated region
      $region57: #{rgcn_link_prediction_forward.7} parent=43 // pred_check
        _
      $region58: #{rgcn_link_prediction_forward.7} parent=43 // pred_check_branch
        %1171 = sbr.rel (%p1168) target = $region60
      $region59: #{rgcn_link_prediction_forward.7} parent=43 // pred_region
        %v1172 = vld [vmem:[#allocation3] sm:$0xff]
        %v1173 = vld [vmem:[#allocation3 + $0x8] sm:$0xff]
        %v1174 = vld [vmem:[#allocation3 + $0x10] sm:$0xff]
        %v1175 = vld [vmem:[#allocation3 + $0x18] sm:$0xff]
        %v1176 = vld [vmem:[#allocation3 + $0x20] sm:$0xff]
        %v1177 = vld [vmem:[#allocation3 + $0x28] sm:$0xff]
        %v1178 = vld [vmem:[#allocation3 + $0x30] sm:$0xff]
        %v1179 = vld [vmem:[#allocation3 + $0x38] sm:$0xff]
        %v1180 = vld [vmem:[#allocation3 + $0x40] sm:$0xff]
        %v1181 = vld [vmem:[#allocation3 + $0x48] sm:$0xff]
        %v1182 = vld [vmem:[#allocation3 + $0x50] sm:$0xff]
        %v1183 = vld [vmem:[#allocation3 + $0x58] sm:$0xff]
        %v1184 = vld [vmem:[#allocation3 + $0x60] sm:$0xff]
        %v1185 = vld [vmem:[#allocation3 + $0x68] sm:$0xff]
        %v1186 = vld [vmem:[#allocation3 + $0x70] sm:$0xff]
        %v1187 = vld [vmem:[#allocation3 + $0x78] sm:$0xff]
        %v1188 = vpack.c.bf16 %v1173, %v1172
        %v1189 = vpack.c.bf16 %v1175, %v1174
        %v1190 = vpack.c.bf16 %v1177, %v1176
        %v1191 = vpack.c.bf16 %v1179, %v1178
        %v1192 = vpack.c.bf16 %v1181, %v1180
        %v1193 = vpack.c.bf16 %v1183, %v1182
        %v1194 = vpack.c.bf16 %v1185, %v1184
        %v1195 = vpack.c.bf16 %v1187, %v1186
        %v1204 = vunpack.c.l.b16 %v1188
        %v1205 = vunpack.c.h.b16 %v1188
        %v1206 = vunpack.c.l.b16 %v1189
        %v1207 = vunpack.c.h.b16 %v1189
        %v1208 = vunpack.c.l.b16 %v1190
        %v1209 = vunpack.c.h.b16 %v1190
        %v1210 = vunpack.c.l.b16 %v1191
        %v1211 = vunpack.c.h.b16 %v1191
        %v1212 = vunpack.c.l.b16 %v1192
        %v1213 = vunpack.c.h.b16 %v1192
        %v1214 = vunpack.c.l.b16 %v1193
        %v1215 = vunpack.c.h.b16 %v1193
        %v1216 = vunpack.c.l.b16 %v1194
        %v1217 = vunpack.c.h.b16 %v1194
        %v1218 = vunpack.c.l.b16 %v1195
        %v1219 = vunpack.c.h.b16 %v1195
        %v1220 = vpack.c.b16 %v1204, %v1204
        %v1221 = vpack.c.b16 %v1205, %v1205
        %v1222 = vpack.c.b16 %v1206, %v1206
        %v1223 = vpack.c.b16 %v1207, %v1207
        %v1224 = vpack.c.b16 %v1208, %v1208
        %v1225 = vpack.c.b16 %v1209, %v1209
        %v1226 = vpack.c.b16 %v1210, %v1210
        %v1227 = vpack.c.b16 %v1211, %v1211
        %v1228 = vpack.c.b16 %v1212, %v1212
        %v1229 = vpack.c.b16 %v1213, %v1213
        %v1230 = vpack.c.b16 %v1214, %v1214
        %v1231 = vpack.c.b16 %v1215, %v1215
        %v1232 = vpack.c.b16 %v1216, %v1216
        %v1233 = vpack.c.b16 %v1217, %v1217
        %v1234 = vpack.c.b16 %v1218, %v1218
        %v1235 = vpack.c.b16 %v1219, %v1219
        %1252 = vst [vmem:[%s382] sm:$0xf] %v1220
        %1253 = vst [vmem:[%s382 + $0x4] sm:$0xf] %v1221
        %1254 = vst [vmem:[%s382 + $0x8] sm:$0xf] %v1222
        %1255 = vst [vmem:[%s382 + $0xc] sm:$0xf] %v1223
        %1256 = vst [vmem:[%s382 + $0x10] sm:$0xf] %v1224
        %1257 = vst [vmem:[%s382 + $0x14] sm:$0xf] %v1225
        %1258 = vst [vmem:[%s382 + $0x18] sm:$0xf] %v1226
        %1259 = vst [vmem:[%s382 + $0x1c] sm:$0xf] %v1227
        %1260 = vst [vmem:[%s382 + $0x20] sm:$0xf] %v1228
        %1261 = vst [vmem:[%s382 + $0x24] sm:$0xf] %v1229
        %1262 = vst [vmem:[%s382 + $0x28] sm:$0xf] %v1230
        %1263 = vst [vmem:[%s382 + $0x2c] sm:$0xf] %v1231
        %1264 = vst [vmem:[%s382 + $0x30] sm:$0xf] %v1232
        %1265 = vst [vmem:[%s382 + $0x34] sm:$0xf] %v1233
        %1266 = vst [vmem:[%s382 + $0x38] sm:$0xf] %v1234
        %1267 = vst [vmem:[%s382 + $0x3c] sm:$0xf] %v1235
      $region60: #{rgcn_link_prediction_forward.7} parent=43 // pred_fallthru
        _
      %s1268 = smul.u32 16, %s29
      %p1269 = scmp.lt.s32.totalorder %s1268, 31
      %s1270 = scalar_select %p1269, %s1268, 31
      %s1271 = smul.addr %s1270, 4
      %s1272 = scalar_lea.vmem %s7, %s1271
      // Predicated region
      $region61: #{rgcn_link_prediction_forward.7} parent=43 // pred_check
        %p1273 = pneg %p215
      $region62: #{rgcn_link_prediction_forward.7} parent=43 // pred_check_branch
        %1275 = sbr.rel (%p1273) target = $region64
      $region63: #{rgcn_link_prediction_forward.7} parent=43 // pred_region
        %s1276 = smul.u32 16, %s29
      $region64: #{rgcn_link_prediction_forward.7} parent=43 // pred_fallthru
        _
    $region44: #{rgcn_link_prediction_forward.7} parent=5 // pred_fallthru
      _
    %p1277 = scmp.le.s32.totalorder 2, %s19
    // Predicated region
    $region65: #{rgcn_link_prediction_forward.7} parent=5 // pred_check
      %p1278 = pneg %p1277
    $region66: #{rgcn_link_prediction_forward.7} parent=5 // pred_check_branch
      %1280 = sbr.rel (%p1278) target = $region68
    $region67: #{rgcn_link_prediction_forward.7} parent=5 // pred_region
      %s1281 = ssub.s32 %s19, 2
      // Predicated region
      $region69: #{rgcn_link_prediction_forward.7} parent=67 // pred_check
        %p1282 = pneg %p221
      $region70: #{rgcn_link_prediction_forward.7} parent=67 // pred_check_branch
        %1284 = sbr.rel (%p1282) target = $region72
      $region71: #{rgcn_link_prediction_forward.7} parent=67 // pred_region
        %s1285 = smul.u32 16, %s32
        %p1286 = scmp.lt.s32.totalorder %s1285, 31
        %s1287 = scalar_select %p1286, %s1285, 31
        %s1288 = smul.addr %s1287, 4
        %s1289 = scalar_lea.vmem %s7, %s1288
      $region72: #{rgcn_link_prediction_forward.7} parent=67 // pred_fallthru
        _
    $region68: #{rgcn_link_prediction_forward.7} parent=5 // pred_fallthru
      _
  $region6: #{rgcn_link_prediction_forward.7} parent=0 // loop_footer
    %s23 = sadd.s32 1, %s19
  $region7: #{rgcn_link_prediction_forward.7} parent=0 // loop_footer_branch
    %18 = sbr.rel target = $region3
  $region8: #{rgcn_link_prediction_forward.7} parent=0 // loop_exit
    _

// kernel: rgcn_link_prediction_forward.9
$region0: #{rgcn_link_prediction_forward.9}
  #allocation0 [shape = 'u32[]', space=smem, size = 0x4, offset = 0x4, fixed_abs, tag = 'smem constant byte address 0x4 - core index']
  #allocation1 [shape = 'u32[144,128]{1,0:T(1,128)}', space=vmem, size = 0x12000, scoped, tag = 'internal scratch']
  %s0 = inlined_call_operand.vmem [shape: bf16[128,256], index: 0, kind: input, shape index: {}]
  %s1 = inlined_call_operand.vmem [shape: bf16[128,256], index: 1, kind: input, shape index: {}]
  %s2 = inlined_call_operand.vmem [shape: bf16[128,256], index: 2, kind: input, shape index: {}]
  %s3 = inlined_call_operand.hbm [shape: f32[1,256], index: 3, kind: output, shape index: {}]
  %s4 = sld [smem:[#allocation0]]
  $region22: #{rgcn_link_prediction_forward.9} parent=0
    _
  %s6 = ssub.s32 1, %s4
  %s7 = scalar_select 0, %s6, %s4
  $region1: #{rgcn_link_prediction_forward.9} parent=0
    #allocation2 [shape = 'u8[1024]{0}', space=vmem, size = 0x400, scoped, tag = 'output window, operand 0, single buffered']
    #allocation3 [shape = 's32[1]{0}', space=sflag, size = 0x4, scoped, tag = 'scoped memory for rgcn_link_prediction_forward.9']
    %8 = vsyncpa [#allocation3], 0
    // Predicated region
    $region2: #{rgcn_link_prediction_forward.9} parent=1 // pred_check
      _
    $region3: #{rgcn_link_prediction_forward.9} parent=1 // pred_check_branch
      %10 = sbr.rel (0) target = $region5
    $region4: #{rgcn_link_prediction_forward.9} parent=1 // pred_region
      _
    $region5: #{rgcn_link_prediction_forward.9} parent=1 // pred_fallthru
      _
    // Predicated region
    $region6: #{rgcn_link_prediction_forward.9} parent=1 // pred_check
      _
    $region7: #{rgcn_link_prediction_forward.9} parent=1 // pred_check_branch
      %12 = sbr.rel (0) target = $region9
    $region8: #{rgcn_link_prediction_forward.9} parent=1 // pred_region
      _
    $region9: #{rgcn_link_prediction_forward.9} parent=1 // pred_fallthru
      _
    // Predicated region
    $region10: #{rgcn_link_prediction_forward.9} parent=1 // pred_check
      _
    $region11: #{rgcn_link_prediction_forward.9} parent=1 // pred_check_branch
      %14 = sbr.rel (0) target = $region13
    $region12: #{rgcn_link_prediction_forward.9} parent=1 // pred_region
      _
    $region13: #{rgcn_link_prediction_forward.9} parent=1 // pred_fallthru
      _
    %v15 = vld [vmem:[%s0] sm:$0xff]
    %v16 = vld [vmem:[%s0 + $0x8] sm:$0xff]
    %v17 = vld [vmem:[%s0 + $0x10] sm:$0xff]
    %v18 = vld [vmem:[%s0 + $0x18] sm:$0xff]
    %v19 = vld [vmem:[%s0 + $0x20] sm:$0xff]
    %v20 = vld [vmem:[%s0 + $0x28] sm:$0xff]
    %v21 = vld [vmem:[%s0 + $0x30] sm:$0xff]
    %v22 = vld [vmem:[%s0 + $0x38] sm:$0xff]
    %v23 = vld [vmem:[%s0 + $0x40] sm:$0xff]
    %v24 = vld [vmem:[%s0 + $0x48] sm:$0xff]
    %v25 = vld [vmem:[%s0 + $0x50] sm:$0xff]
    %v26 = vld [vmem:[%s0 + $0x58] sm:$0xff]
    %v27 = vld [vmem:[%s0 + $0x60] sm:$0xff]
    %v28 = vld [vmem:[%s0 + $0x68] sm:$0xff]
    %v29 = vld [vmem:[%s0 + $0x70] sm:$0xff]
    %v30 = vld [vmem:[%s0 + $0x78] sm:$0xff]
    %v31 = vunpack.c.l.bf16 %v15
    %v32 = vunpack.c.h.bf16 %v15
    %v33 = vunpack.c.l.bf16 %v16
    %v34 = vunpack.c.h.bf16 %v16
    %v35 = vunpack.c.l.bf16 %v17
    %v36 = vunpack.c.h.bf16 %v17
    %v37 = vunpack.c.l.bf16 %v18
    %v38 = vunpack.c.h.bf16 %v18
    %v39 = vunpack.c.l.bf16 %v19
    %v40 = vunpack.c.h.bf16 %v19
    %v41 = vunpack.c.l.bf16 %v20
    %v42 = vunpack.c.h.bf16 %v20
    %v43 = vunpack.c.l.bf16 %v21
    %v44 = vunpack.c.h.bf16 %v21
    %v45 = vunpack.c.l.bf16 %v22
    %v46 = vunpack.c.h.bf16 %v22
    %v47 = vunpack.c.l.bf16 %v23
    %v48 = vunpack.c.h.bf16 %v23
    %v49 = vunpack.c.l.bf16 %v24
    %v50 = vunpack.c.h.bf16 %v24
    %v51 = vunpack.c.l.bf16 %v25
    %v52 = vunpack.c.h.bf16 %v25
    %v53 = vunpack.c.l.bf16 %v26
    %v54 = vunpack.c.h.bf16 %v26
    %v55 = vunpack.c.l.bf16 %v27
    %v56 = vunpack.c.h.bf16 %v27
    %v57 = vunpack.c.l.bf16 %v28
    %v58 = vunpack.c.h.bf16 %v28
    %v59 = vunpack.c.l.bf16 %v29
    %v60 = vunpack.c.h.bf16 %v29
    %v61 = vunpack.c.l.bf16 %v30
    %v62 = vunpack.c.h.bf16 %v30
    %v63 = vld [vmem:[%s2] sm:$0xff]
    %v64 = vld [vmem:[%s2 + $0x8] sm:$0xff]
    %v65 = vld [vmem:[%s2 + $0x10] sm:$0xff]
    %v66 = vld [vmem:[%s2 + $0x18] sm:$0xff]
    %v67 = vld [vmem:[%s2 + $0x20] sm:$0xff]
    %v68 = vld [vmem:[%s2 + $0x28] sm:$0xff]
    %v69 = vld [vmem:[%s2 + $0x30] sm:$0xff]
    %v70 = vld [vmem:[%s2 + $0x38] sm:$0xff]
    %v71 = vld [vmem:[%s2 + $0x40] sm:$0xff]
    %v72 = vld [vmem:[%s2 + $0x48] sm:$0xff]
    %v73 = vld [vmem:[%s2 + $0x50] sm:$0xff]
    %v74 = vld [vmem:[%s2 + $0x58] sm:$0xff]
    %v75 = vld [vmem:[%s2 + $0x60] sm:$0xff]
    %v76 = vld [vmem:[%s2 + $0x68] sm:$0xff]
    %v77 = vld [vmem:[%s2 + $0x70] sm:$0xff]
    %v78 = vld [vmem:[%s2 + $0x78] sm:$0xff]
    %v79 = vunpack.c.l.bf16 %v63
    %v80 = vunpack.c.h.bf16 %v63
    %v81 = vunpack.c.l.bf16 %v64
    %v82 = vunpack.c.h.bf16 %v64
    %v83 = vunpack.c.l.bf16 %v65
    %v84 = vunpack.c.h.bf16 %v65
    %v85 = vunpack.c.l.bf16 %v66
    %v86 = vunpack.c.h.bf16 %v66
    %v87 = vunpack.c.l.bf16 %v67
    %v88 = vunpack.c.h.bf16 %v67
    %v89 = vunpack.c.l.bf16 %v68
    %v90 = vunpack.c.h.bf16 %v68
    %v91 = vunpack.c.l.bf16 %v69
    %v92 = vunpack.c.h.bf16 %v69
    %v93 = vunpack.c.l.bf16 %v70
    %v94 = vunpack.c.h.bf16 %v70
    %v95 = vunpack.c.l.bf16 %v71
    %v96 = vunpack.c.h.bf16 %v71
    %v97 = vunpack.c.l.bf16 %v72
    %v98 = vunpack.c.h.bf16 %v72
    %v99 = vunpack.c.l.bf16 %v73
    %v100 = vunpack.c.h.bf16 %v73
    %v101 = vunpack.c.l.bf16 %v74
    %v102 = vunpack.c.h.bf16 %v74
    %v103 = vunpack.c.l.bf16 %v75
    %v104 = vunpack.c.h.bf16 %v75
    %v105 = vunpack.c.l.bf16 %v76
    %v106 = vunpack.c.h.bf16 %v76
    %v107 = vunpack.c.l.bf16 %v77
    %v108 = vunpack.c.h.bf16 %v77
    %v109 = vunpack.c.l.bf16 %v78
    %v110 = vunpack.c.h.bf16 %v78
    %v111 = vmul.f32 %v31, %v79
    %v112 = vmul.f32 %v32, %v80
    %v113 = vmul.f32 %v33, %v81
    %v114 = vmul.f32 %v34, %v82
    %v115 = vmul.f32 %v35, %v83
    %v116 = vmul.f32 %v36, %v84
    %v117 = vmul.f32 %v37, %v85
    %v118 = vmul.f32 %v38, %v86
    %v119 = vmul.f32 %v39, %v87
    %v120 = vmul.f32 %v40, %v88
    %v121 = vmul.f32 %v41, %v89
    %v122 = vmul.f32 %v42, %v90
    %v123 = vmul.f32 %v43, %v91
    %v124 = vmul.f32 %v44, %v92
    %v125 = vmul.f32 %v45, %v93
    %v126 = vmul.f32 %v46, %v94
    %v127 = vmul.f32 %v47, %v95
    %v128 = vmul.f32 %v48, %v96
    %v129 = vmul.f32 %v49, %v97
    %v130 = vmul.f32 %v50, %v98
    %v131 = vmul.f32 %v51, %v99
    %v132 = vmul.f32 %v52, %v100
    %v133 = vmul.f32 %v53, %v101
    %v134 = vmul.f32 %v54, %v102
    %v135 = vmul.f32 %v55, %v103
    %v136 = vmul.f32 %v56, %v104
    %v137 = vmul.f32 %v57, %v105
    %v138 = vmul.f32 %v58, %v106
    %v139 = vmul.f32 %v59, %v107
    %v140 = vmul.f32 %v60, %v108
    %v141 = vmul.f32 %v61, %v109
    %v142 = vmul.f32 %v62, %v110
    %v143 = vld [vmem:[%s1] sm:$0xff]
    %v144 = vld [vmem:[%s1 + $0x8] sm:$0xff]
    %v145 = vld [vmem:[%s1 + $0x10] sm:$0xff]
    %v146 = vld [vmem:[%s1 + $0x18] sm:$0xff]
    %v147 = vld [vmem:[%s1 + $0x20] sm:$0xff]
    %v148 = vld [vmem:[%s1 + $0x28] sm:$0xff]
    %v149 = vld [vmem:[%s1 + $0x30] sm:$0xff]
    %v150 = vld [vmem:[%s1 + $0x38] sm:$0xff]
    %v151 = vld [vmem:[%s1 + $0x40] sm:$0xff]
    %v152 = vld [vmem:[%s1 + $0x48] sm:$0xff]
    %v153 = vld [vmem:[%s1 + $0x50] sm:$0xff]
    %v154 = vld [vmem:[%s1 + $0x58] sm:$0xff]
    %v155 = vld [vmem:[%s1 + $0x60] sm:$0xff]
    %v156 = vld [vmem:[%s1 + $0x68] sm:$0xff]
    %v157 = vld [vmem:[%s1 + $0x70] sm:$0xff]
    %v158 = vld [vmem:[%s1 + $0x78] sm:$0xff]
    %v159 = vunpack.c.l.bf16 %v143
    %v160 = vunpack.c.h.bf16 %v143
    %v161 = vunpack.c.l.bf16 %v144
    %v162 = vunpack.c.h.bf16 %v144
    %v163 = vunpack.c.l.bf16 %v145
    %v164 = vunpack.c.h.bf16 %v145
    %v165 = vunpack.c.l.bf16 %v146
    %v166 = vunpack.c.h.bf16 %v146
    %v167 = vunpack.c.l.bf16 %v147
    %v168 = vunpack.c.h.bf16 %v147
    %v169 = vunpack.c.l.bf16 %v148
    %v170 = vunpack.c.h.bf16 %v148
    %v171 = vunpack.c.l.bf16 %v149
    %v172 = vunpack.c.h.bf16 %v149
    %v173 = vunpack.c.l.bf16 %v150
    %v174 = vunpack.c.h.bf16 %v150
    %v175 = vunpack.c.l.bf16 %v151
    %v176 = vunpack.c.h.bf16 %v151
    %v177 = vunpack.c.l.bf16 %v152
    %v178 = vunpack.c.h.bf16 %v152
    %v179 = vunpack.c.l.bf16 %v153
    %v180 = vunpack.c.h.bf16 %v153
    %v181 = vunpack.c.l.bf16 %v154
    %v182 = vunpack.c.h.bf16 %v154
    %v183 = vunpack.c.l.bf16 %v155
    %v184 = vunpack.c.h.bf16 %v155
    %v185 = vunpack.c.l.bf16 %v156
    %v186 = vunpack.c.h.bf16 %v156
    %v187 = vunpack.c.l.bf16 %v157
    %v188 = vunpack.c.h.bf16 %v157
    %v189 = vunpack.c.l.bf16 %v158
    %v190 = vunpack.c.h.bf16 %v158
    %v191 = vmul.f32 %v111, %v159
    %v192 = vmul.f32 %v112, %v160
    %v193 = vmul.f32 %v113, %v161
    %v194 = vmul.f32 %v114, %v162
    %v195 = vmul.f32 %v115, %v163
    %v196 = vmul.f32 %v116, %v164
    %v197 = vmul.f32 %v117, %v165
    %v198 = vmul.f32 %v118, %v166
    %v199 = vmul.f32 %v119, %v167
    %v200 = vmul.f32 %v120, %v168
    %v201 = vmul.f32 %v121, %v169
    %v202 = vmul.f32 %v122, %v170
    %v203 = vmul.f32 %v123, %v171
    %v204 = vmul.f32 %v124, %v172
    %v205 = vmul.f32 %v125, %v173
    %v206 = vmul.f32 %v126, %v174
    %v207 = vmul.f32 %v127, %v175
    %v208 = vmul.f32 %v128, %v176
    %v209 = vmul.f32 %v129, %v177
    %v210 = vmul.f32 %v130, %v178
    %v211 = vmul.f32 %v131, %v179
    %v212 = vmul.f32 %v132, %v180
    %v213 = vmul.f32 %v133, %v181
    %v214 = vmul.f32 %v134, %v182
    %v215 = vmul.f32 %v135, %v183
    %v216 = vmul.f32 %v136, %v184
    %v217 = vmul.f32 %v137, %v185
    %v218 = vmul.f32 %v138, %v186
    %v219 = vmul.f32 %v139, %v187
    %v220 = vmul.f32 %v140, %v188
    %v221 = vmul.f32 %v141, %v189
    %v222 = vmul.f32 %v142, %v190
    %v223 = vadd.f32 %v191, %v193
    %v224 = vadd.f32 %v223, %v195
    %v225 = vadd.f32 %v224, %v197
    %v226 = vadd.f32 %v225, %v199
    %v227 = vadd.f32 %v226, %v201
    %v228 = vadd.f32 %v227, %v203
    %v229 = vadd.f32 %v228, %v205
    %v230 = vadd.f32 %v229, %v207
    %v231 = vadd.f32 %v230, %v209
    %v232 = vadd.f32 %v231, %v211
    %v233 = vadd.f32 %v232, %v213
    %v234 = vadd.f32 %v233, %v215
    %v235 = vadd.f32 %v234, %v217
    %v236 = vadd.f32 %v235, %v219
    %v237 = vadd.f32 %v236, %v221
    %v238 = vrot.slane %v237, 4
    %v239 = vadd.f32 %v237, %v238
    %v240 = vrot.slane %v239, 2
    %v241 = vadd.f32 %v239, %v240
    %v242 = vrot.slane %v241, 1
    %v243 = vadd.f32 %v241, %v242
    %v244 = vadd.f32 %v192, %v194
    %v245 = vadd.f32 %v244, %v196
    %v246 = vadd.f32 %v245, %v198
    %v247 = vadd.f32 %v246, %v200
    %v248 = vadd.f32 %v247, %v202
    %v249 = vadd.f32 %v248, %v204
    %v250 = vadd.f32 %v249, %v206
    %v251 = vadd.f32 %v250, %v208
    %v252 = vadd.f32 %v251, %v210
    %v253 = vadd.f32 %v252, %v212
    %v254 = vadd.f32 %v253, %v214
    %v255 = vadd.f32 %v254, %v216
    %v256 = vadd.f32 %v255, %v218
    %v257 = vadd.f32 %v256, %v220
    %v258 = vadd.f32 %v257, %v222
    %v259 = vrot.slane %v258, 4
    %v260 = vadd.f32 %v258, %v259
    %v261 = vrot.slane %v260, 2
    %v262 = vadd.f32 %v260, %v261
    %v263 = vrot.slane %v262, 1
    %v264 = vadd.f32 %v262, %v263
    %v267 = vcombine.low %v243, %v264
    %v269 = vunpack.c.l.s4 1966171168
    %v270 = vunpack.c.0.s8 %v269
    %v271 = vlaneseq
    %v272 = vshrl.u32 %v271, 7
    %v273 = vsub.s32 %v270, %v272
    %v274 = vrot.slane %v267, %v273
    %v276 = vunpack.c.l.s4 1966171168
    %v277 = vunpack.c.0.s8 %v276
    %v278 = vlaneseq
    %v279 = vshrl.u32 %v278, 7
    %v280 = vsub.s32 %v277, %v279
    %v281 = vrot.slane %v274, %v280
    %v283 = vlaneseq
    %vm284 = vcmp.ge.s32.totalorder %v283, 0
    %vm285 = vcmp.lt.s32.totalorder %v283, 256
    %vm286 = vmand %vm284, %vm285
    %287 = vst.msk [vmem:[#allocation2] sm:$0x3] %vm286, %v281
    // Predicated region
    $region14: #{rgcn_link_prediction_forward.9} parent=1 // pred_check
      _
    $region15: #{rgcn_link_prediction_forward.9} parent=1 // pred_check_branch
      %289 = sbr.rel (0) target = $region17
    $region16: #{rgcn_link_prediction_forward.9} parent=1 // pred_region
      %s291 = ssub.s32 32, 32
      %292 = vsyncadd [#allocation3], %s291
      %s294 = sshll.u32 [#allocation2], 4
      %s295 = int_to_ptr.vmem [resolvable:$true] %s294
      %297 = dma.vmem_to_hbm [thread:$0]  %s295, 32, %s3, [#allocation3]
    $region17: #{rgcn_link_prediction_forward.9} parent=1 // pred_fallthru
      _
    // Predicated region
    $region18: #{rgcn_link_prediction_forward.9} parent=1 // pred_check
      _
    $region19: #{rgcn_link_prediction_forward.9} parent=1 // pred_check_branch
      %299 = sbr.rel (0) target = $region21
    $region20: #{rgcn_link_prediction_forward.9} parent=1 // pred_region
      %300 = dma.done [#allocation3], 32
    $region21: #{rgcn_link_prediction_forward.9} parent=1 // pred_fallthru
      _
    %301 = vsyncpa [#allocation3], 1

</llo_original>
